<compile_context>
chip_gen: v6e
topology: v6e:2x2x1
jax: 0.10.0
libtpu: 0.0.40
codegen_flags: <defaults>
</compile_context>

<pallas_src>
import math
from functools import partial

import jax
import jax.numpy as jnp
from jax import lax
from jax.experimental import pallas as pl
from jax.experimental.pallas import tpu as pltpu

CFG = dict(vocab_size=128, context_length=8, emb_dim=32,
           n_heads=4, n_layers=2, drop_rate=0.0, qkv_bias=False)


# ----------------------------- in-kernel helpers -----------------------------

def _layernorm(x, scale, shift, eps=1e-5):
    # x: (N, D) f32; scale/shift: (1, D) f32 -- matches torch var(unbiased=False)
    mean = jnp.mean(x, axis=-1, keepdims=True)
    var = jnp.mean((x - mean) ** 2, axis=-1, keepdims=True)
    return scale * ((x - mean) * lax.rsqrt(var + eps)) + shift   # rsqrt -> EUP slot


def _gelu(x):
    c = jnp.float32(math.sqrt(2.0 / math.pi))
    return 0.5 * x * (1.0 + jnp.tanh(c * (x + 0.044715 * x * x * x)))


# ------------------------------ fused GPT kernel ------------------------------

def gpt_fused_kernel(x_ref,
                     ln1s_ref, ln1b_ref, wqkv_ref, wo_ref, bo_ref,
                     ln2s_ref, ln2b_ref, w1_ref, b1_ref, w2_ref, b2_ref,
                     lnfs_ref, lnfb_ref, wout_ref,
                     logits_ref, *, num_heads, n_layers, seq_len):
    f32, bf16 = jnp.float32, jnp.bfloat16
    x = x_ref[...]                         # (N, D) f32 activations, N = B*T
    N, D = x.shape
    H = num_heads
    hd = D // H
    inv_sqrt = jnp.float32(1.0 / math.sqrt(hd))

    # Additive causal + same-sequence mask, generated once in-kernel (no (N,N) HBM
    # input, no per-layer re-broadcast). Block index via f32 floor -> pure VPU ops.
    row = lax.broadcasted_iota(jnp.int32, (N, N), 0)
    col = lax.broadcasted_iota(jnp.int32, (N, N), 1)
    inv_t = jnp.float32(1.0 / seq_len)
    row_seq = jnp.floor(row.astype(f32) * inv_t)
    col_seq = jnp.floor(col.astype(f32) * inv_t)
    keep = (col <= row) & (row_seq == col_seq)
    bias = jnp.where(keep, 0.0, -1e30).astype(f32)                # (N, N)
    bias_h = jnp.broadcast_to(bias[None, :, :], (H, N, N))        # hoisted out of loop

    for l in range(n_layers):              # static unroll; all weights resident in VMEM
        # ---- attention sub-block (pre-norm + residual) ----
        xn = _layernorm(x, ln1s_ref[l], ln1b_ref[l])
        # fused QKV projection: one MXU launch, one bf16 cast of xn
        qkv = jnp.dot(xn.astype(bf16), wqkv_ref[l],
                      preferred_element_type=f32)                 # (N, 3D) f32

        # head split: single reshape + axis swap per tensor (no slice+stack loop);
        # 1/sqrt(hd) folded into q at the bf16 cast (N*D elems, not H*N*N)
        q3 = jnp.swapaxes((qkv[:, :D] * inv_sqrt).reshape(N, H, hd), 0, 1).astype(bf16)
        k3 = jnp.swapaxes(qkv[:, D:2 * D].reshape(N, H, hd), 0, 1).astype(bf16)
        v3 = jnp.swapaxes(qkv[:, 2 * D:].reshape(N, H, hd), 0, 1).astype(bf16)

        # head-batched contractions (one dot_general each)
        s = jnp.einsum('hnd,hmd->hnm', q3, k3,
                       preferred_element_type=f32)                # (H, N, N)
        s = s + bias_h
        s = s - jnp.max(s, axis=-1, keepdims=True)
        e = jnp.exp(s)
        p = e * pl.reciprocal(jnp.sum(e, axis=-1, keepdims=True), approx=True)
        ctx = jnp.einsum('hnm,hmd->hnd', p.astype(bf16), v3,
                         preferred_element_type=f32)              # (H, N, hd)

        # head concat + single out-projection matmul against un-split Wo
        ctx2 = jnp.swapaxes(ctx, 0, 1).reshape(N, D)              # (N, D)
        attn = jnp.dot(ctx2.astype(bf16), wo_ref[l],
                       preferred_element_type=f32) + bo_ref[l]
        x = x + attn

        # ---- feed-forward sub-block (pre-norm + residual) ----
        xn2 = _layernorm(x, ln2s_ref[l], ln2b_ref[l])
        h1 = _gelu(jnp.dot(xn2.astype(bf16), w1_ref[l],
                           preferred_element_type=f32) + b1_ref[l])
        x = x + jnp.dot(h1.astype(bf16), w2_ref[l],
                        preferred_element_type=f32) + b2_ref[l]

    # ---- final LayerNorm + LM head (lane-dense (N, V=128) store) ----
    xn = _layernorm(x, lnfs_ref[...], lnfb_ref[...])
    logits_ref[...] = jnp.dot(xn.astype(bf16), wout_ref[...],
                              preferred_element_type=f32)


# ------------------------------- model glue -----------------------------------

def init_params(cfg, key):
    D, V, C = cfg['emb_dim'], cfg['vocab_size'], cfg['context_length']
    L = cfg['n_layers']
    keys = jax.random.split(key, 9)

    def w(k, shape):
        return jax.random.normal(k, shape, jnp.float32) * 0.02

    params = dict(
        tok_emb=w(keys[0], (V, D)),
        pos_emb=w(keys[1], (C, D)),
        lnf_s=jnp.ones((1, D), jnp.float32),
        lnf_b=jnp.zeros((1, D), jnp.float32),
        w_out=w(keys[2], (D, V)),
        stacked=dict(                                  # per-layer weights, stacked on axis 0
            ln1_s=jnp.ones((L, 1, D), jnp.float32),
            ln1_b=jnp.zeros((L, 1, D), jnp.float32),
            # fused QKV weight: concat([Wq, Wk, Wv], axis=-1) -> (L, D, 3D)
            w_qkv=jnp.concatenate([w(keys[3], (L, D, D)),
                                   w(keys[4], (L, D, D)),
                                   w(keys[5], (L, D, D))], axis=-1),
            wo=w(keys[6], (L, D, D)),                  # un-split out-projection
            bo=jnp.zeros((L, 1, D), jnp.float32),
            ln2_s=jnp.ones((L, 1, D), jnp.float32),
            ln2_b=jnp.zeros((L, 1, D), jnp.float32),
            w1=w(keys[7], (L, D, 4 * D)),
            b1=jnp.zeros((L, 1, 4 * D), jnp.float32),
            w2=w(keys[8], (L, 4 * D, D)),
            b2=jnp.zeros((L, 1, D), jnp.float32),
        ),
    )
    return params


def gpt_forward(params, in_idx, cfg):
    B, T = in_idx.shape
    D, V = cfg['emb_dim'], cfg['vocab_size']
    H, L = cfg['n_heads'], cfg['n_layers']
    N = B * T

    # embedding gather + positional add (plain JAX glue; dropout is identity at rate 0.0)
    tok = jnp.take(params['tok_emb'], in_idx, axis=0)            # (B, T, D)
    pos = params['pos_emb'][:T][None, :, :]                      # (1, T, D)
    x = (tok + pos).reshape(N, D)                                # flatten batch*seq

    bf16 = jnp.bfloat16
    st = params['stacked']
    vmem = pltpu.MemorySpace.VMEM
    n_inputs = 15

    logits = pl.pallas_call(
        partial(gpt_fused_kernel, num_heads=H, n_layers=L, seq_len=T),
        out_shape=jax.ShapeDtypeStruct((N, V), jnp.float32),
        in_specs=[pl.BlockSpec(memory_space=vmem)] * n_inputs,   # everything resident in VMEM
        out_specs=pl.BlockSpec(memory_space=vmem),
        # grid=() : single invocation (v5e/v6e optimum at this size). On v7x, add a
        # "parallel" grid axis over B once N per core is >= a few hundred rows.
        compiler_params=pltpu.CompilerParams(vmem_limit_bytes=32 * 1024 * 1024),
    )(x,
      st['ln1_s'], st['ln1_b'],
      st['w_qkv'].astype(bf16), st['wo'].astype(bf16), st['bo'],
      st['ln2_s'], st['ln2_b'],
      st['w1'].astype(bf16), st['b1'], st['w2'].astype(bf16), st['b2'],
      params['lnf_s'], params['lnf_b'], params['w_out'].astype(bf16))

    return logits.reshape(B, T, V)


if __name__ == "__main__":
    key = jax.random.PRNGKey(0)
    pkey, ikey = jax.random.split(key)
    params = init_params(CFG, pkey)

    B, T = 2, CFG['context_length']
    in_idx = jax.random.randint(ikey, (B, T), 0, CFG['vocab_size'], dtype=jnp.int32)

    fwd = jax.jit(partial(gpt_forward, cfg=CFG))
    logits = fwd(params, in_idx)
    jax.block_until_ready(logits)
    assert logits.shape == (B, T, CFG['vocab_size'])
    assert logits.dtype == jnp.float32
    assert bool(jnp.all(jnp.isfinite(logits)))
    print("KERNEL_OK")
</pallas_src>

<mosaic_0001>
module attributes {stable_mosaic.version = 11 : i64} {
  func.func @gpt_fused_kernel(%arg0: memref<16x32xf32, #tpu.memory_space<vmem>>, %arg1: memref<2x1x32xf32, #tpu.memory_space<vmem>>, %arg2: memref<2x1x32xf32, #tpu.memory_space<vmem>>, %arg3: memref<2x32x96xbf16, #tpu.memory_space<vmem>>, %arg4: memref<2x32x32xbf16, #tpu.memory_space<vmem>>, %arg5: memref<2x1x32xf32, #tpu.memory_space<vmem>>, %arg6: memref<2x1x32xf32, #tpu.memory_space<vmem>>, %arg7: memref<2x1x32xf32, #tpu.memory_space<vmem>>, %arg8: memref<2x32x128xbf16, #tpu.memory_space<vmem>>, %arg9: memref<2x1x128xf32, #tpu.memory_space<vmem>>, %arg10: memref<2x128x32xbf16, #tpu.memory_space<vmem>>, %arg11: memref<2x1x32xf32, #tpu.memory_space<vmem>>, %arg12: memref<1x32xf32, #tpu.memory_space<vmem>>, %arg13: memref<1x32xf32, #tpu.memory_space<vmem>>, %arg14: memref<32x128xbf16, #tpu.memory_space<vmem>>, %arg15: memref<16x128xf32, #tpu.memory_space<vmem>>) attributes {dimension_semantics = [], scalar_prefetch = 0 : i64, scratch_operands = 0 : i64, tpu.core_type = #tpu.core_type<tc>} {
    %c0 = arith.constant 0 : index
    %c0_0 = arith.constant 0 : index
    %0 = vector.load %arg0[%c0, %c0_0] : memref<16x32xf32, #tpu.memory_space<vmem>>, vector<16x32xf32>
    %1 = tpu.iota {dimensions = array<i32: 0>} : vector<16x16xi32>
    %2 = tpu.iota {dimensions = array<i32: 1>} : vector<16x16xi32>
    %3 = arith.sitofp %1 : vector<16x16xi32> to vector<16x16xf32>
    %cst = arith.constant 1.250000e-01 : f32
    %4 = vector.broadcast %cst : f32 to vector<16x16xf32>
    %5 = arith.mulf %3, %4 : vector<16x16xf32>
    %6 = math.floor %5 : vector<16x16xf32>
    %7 = arith.sitofp %2 : vector<16x16xi32> to vector<16x16xf32>
    %cst_1 = arith.constant 1.250000e-01 : f32
    %8 = vector.broadcast %cst_1 : f32 to vector<16x16xf32>
    %9 = arith.mulf %7, %8 : vector<16x16xf32>
    %10 = math.floor %9 : vector<16x16xf32>
    %11 = arith.cmpi sle, %2, %1 : vector<16x16xi32>
    %12 = arith.cmpf oeq, %6, %10 : vector<16x16xf32>
    %13 = arith.andi %11, %12 : vector<16x16xi1>
    %cst_2 = arith.constant 0.000000e+00 : f32
    %cst_3 = arith.constant -1.000000e+30 : f32
    %14 = vector.broadcast %cst_2 : f32 to vector<16x16xf32>
    %15 = vector.broadcast %cst_3 : f32 to vector<16x16xf32>
    %16 = arith.select %13, %14, %15 : vector<16x16xi1>, vector<16x16xf32>
    %17 = vector.shape_cast %16 : vector<16x16xf32> to vector<1x16x16xf32>
    %18 = vector.shape_cast %17 : vector<1x16x16xf32> to vector<1x16x16xf32>
    %19 = vector.broadcast %18 : vector<1x16x16xf32> to vector<4x16x16xf32>
    %c0_4 = arith.constant 0 : index
    %c0_5 = arith.constant 0 : index
    %c0_6 = arith.constant 0 : index
    %20 = vector.load %arg1[%c0_4, %c0_5, %c0_6] : memref<2x1x32xf32, #tpu.memory_space<vmem>>, vector<1x1x32xf32>
    %21 = vector.shape_cast %20 : vector<1x1x32xf32> to vector<1x32xf32>
    %c0_7 = arith.constant 0 : index
    %c0_8 = arith.constant 0 : index
    %c0_9 = arith.constant 0 : index
    %22 = vector.load %arg2[%c0_7, %c0_8, %c0_9] : memref<2x1x32xf32, #tpu.memory_space<vmem>>, vector<1x1x32xf32>
    %23 = vector.shape_cast %22 : vector<1x1x32xf32> to vector<1x32xf32>
    %cst_10 = arith.constant dense<0.000000e+00> : vector<16xf32>
    %24 = vector.multi_reduction <add>, %0, %cst_10 [1] : vector<16x32xf32> to vector<16xf32>
    %25 = vector.shape_cast %24 : vector<16xf32> to vector<16x1xf32>
    %cst_11 = arith.constant 3.200000e+01 : f32
    %26 = vector.broadcast %cst_11 : f32 to vector<16x1xf32>
    %27 = arith.divf %25, %26 : vector<16x1xf32>
    %28 = vector.broadcast %27 : vector<16x1xf32> to vector<16x32xf32>
    %29 = arith.subf %0, %28 : vector<16x32xf32>
    %30 = arith.mulf %29, %29 : vector<16x32xf32>
    %cst_12 = arith.constant dense<0.000000e+00> : vector<16xf32>
    %31 = vector.multi_reduction <add>, %30, %cst_12 [1] : vector<16x32xf32> to vector<16xf32>
    %32 = vector.shape_cast %31 : vector<16xf32> to vector<16x1xf32>
    %cst_13 = arith.constant 3.200000e+01 : f32
    %33 = vector.broadcast %cst_13 : f32 to vector<16x1xf32>
    %34 = arith.divf %32, %33 : vector<16x1xf32>
    %35 = vector.broadcast %27 : vector<16x1xf32> to vector<16x32xf32>
    %36 = arith.subf %0, %35 : vector<16x32xf32>
    %cst_14 = arith.constant 9.99999974E-6 : f32
    %37 = vector.broadcast %cst_14 : f32 to vector<16x1xf32>
    %38 = arith.addf %34, %37 : vector<16x1xf32>
    %39 = math.rsqrt %38 : vector<16x1xf32>
    %40 = vector.broadcast %39 : vector<16x1xf32> to vector<16x32xf32>
    %41 = arith.mulf %36, %40 : vector<16x32xf32>
    %42 = vector.broadcast %21 : vector<1x32xf32> to vector<16x32xf32>
    %43 = arith.mulf %42, %41 : vector<16x32xf32>
    %44 = vector.broadcast %23 : vector<1x32xf32> to vector<16x32xf32>
    %45 = arith.addf %43, %44 : vector<16x32xf32>
    %46 = arith.truncf %45 : vector<16x32xf32> to vector<16x32xbf16>
    %c0_15 = arith.constant 0 : index
    %c0_16 = arith.constant 0 : index
    %c0_17 = arith.constant 0 : index
    %47 = vector.load %arg3[%c0_15, %c0_16, %c0_17] : memref<2x32x96xbf16, #tpu.memory_space<vmem>>, vector<1x32x96xbf16>
    %48 = vector.shape_cast %47 : vector<1x32x96xbf16> to vector<32x96xbf16>
    %cst_18 = arith.constant dense<0.000000e+00> : vector<16x96xf32>
    %49 = tpu.matmul %46, %48, %cst_18 {dimension_numbers = #tpu.dot_dimension_numbers<[1], [0], [0], [1], [0, 0, 1, 1], [], []>} : vector<16x32xbf16>, vector<32x96xbf16>, vector<16x96xf32> -> vector<16x96xf32>
    %50 = vector.extract_strided_slice %49 {offsets = [0, 0], sizes = [16, 32], strides = [1, 1]} : vector<16x96xf32> to vector<16x32xf32>
    %cst_19 = arith.constant 0.353553385 : f32
    %51 = vector.broadcast %cst_19 : f32 to vector<16x32xf32>
    %52 = arith.mulf %50, %51 : vector<16x32xf32>
    %53 = vector.shape_cast %52 : vector<16x32xf32> to vector<16x4x8xf32>
    %54 = tpu.transpose %53, [1, 0, 2] : vector<16x4x8xf32> -> vector<4x16x8xf32>
    %55 = arith.truncf %54 : vector<4x16x8xf32> to vector<4x16x8xbf16>
    %56 = vector.extract_strided_slice %49 {offsets = [0, 32], sizes = [16, 32], strides = [1, 1]} : vector<16x96xf32> to vector<16x32xf32>
    %57 = vector.shape_cast %56 : vector<16x32xf32> to vector<16x4x8xf32>
    %58 = tpu.transpose %57, [1, 0, 2] : vector<16x4x8xf32> -> vector<4x16x8xf32>
    %59 = arith.truncf %58 : vector<4x16x8xf32> to vector<4x16x8xbf16>
    %60 = vector.extract_strided_slice %49 {offsets = [0, 64], sizes = [16, 32], strides = [1, 1]} : vector<16x96xf32> to vector<16x32xf32>
    %61 = vector.shape_cast %60 : vector<16x32xf32> to vector<16x4x8xf32>
    %62 = tpu.transpose %61, [1, 0, 2] : vector<16x4x8xf32> -> vector<4x16x8xf32>
    %63 = arith.truncf %62 : vector<4x16x8xf32> to vector<4x16x8xbf16>
    "tpu.trace_start"() <{level = 10 : i32, message = "hnd,hmd->hnm"}> : () -> ()
    %cst_20 = arith.constant dense<0.000000e+00> : vector<4x16x16xf32>
    %64 = tpu.matmul %55, %59, %cst_20 {dimension_numbers = #tpu.dot_dimension_numbers<[2], [2], [1], [1], [0, 0, 0, 1, 1, 1], [0], [0]>} : vector<4x16x8xbf16>, vector<4x16x8xbf16>, vector<4x16x16xf32> -> vector<4x16x16xf32>
    "tpu.trace_stop"() : () -> ()
    %65 = arith.addf %64, %19 : vector<4x16x16xf32>
    %cst_21 = arith.constant dense<0xFF800000> : vector<4x16xf32>
    %66 = vector.multi_reduction <maximumf>, %65, %cst_21 [2] : vector<4x16x16xf32> to vector<4x16xf32>
    %67 = vector.shape_cast %66 : vector<4x16xf32> to vector<4x16x1xf32>
    %68 = vector.broadcast %67 : vector<4x16x1xf32> to vector<4x16x16xf32>
    %69 = arith.subf %65, %68 : vector<4x16x16xf32>
    %70 = math.exp %69 : vector<4x16x16xf32>
    %cst_22 = arith.constant dense<0.000000e+00> : vector<4x16xf32>
    %71 = vector.multi_reduction <add>, %70, %cst_22 [2] : vector<4x16x16xf32> to vector<4x16xf32>
    %72 = vector.shape_cast %71 : vector<4x16xf32> to vector<4x16x1xf32>
    %73 = tpu.reciprocal %72 {approx = true} : vector<4x16x1xf32> -> vector<4x16x1xf32>
    %74 = vector.broadcast %73 : vector<4x16x1xf32> to vector<4x16x16xf32>
    %75 = arith.mulf %70, %74 : vector<4x16x16xf32>
    %76 = arith.truncf %75 : vector<4x16x16xf32> to vector<4x16x16xbf16>
    "tpu.trace_start"() <{level = 10 : i32, message = "hnm,hmd->hnd"}> : () -> ()
    %cst_23 = arith.constant dense<0.000000e+00> : vector<4x16x8xf32>
    %77 = tpu.matmul %76, %63, %cst_23 {dimension_numbers = #tpu.dot_dimension_numbers<[2], [1], [1], [2], [0, 0, 0, 1, 1, 2], [0], [0]>} : vector<4x16x16xbf16>, vector<4x16x8xbf16>, vector<4x16x8xf32> -> vector<4x16x8xf32>
    "tpu.trace_stop"() : () -> ()
    %78 = tpu.transpose %77, [1, 0, 2] : vector<4x16x8xf32> -> vector<16x4x8xf32>
    %79 = vector.shape_cast %78 : vector<16x4x8xf32> to vector<16x32xf32>
    %80 = arith.truncf %79 : vector<16x32xf32> to vector<16x32xbf16>
    %c0_24 = arith.constant 0 : index
    %c0_25 = arith.constant 0 : index
    %c0_26 = arith.constant 0 : index
    %81 = vector.load %arg4[%c0_24, %c0_25, %c0_26] : memref<2x32x32xbf16, #tpu.memory_space<vmem>>, vector<1x32x32xbf16>
    %82 = vector.shape_cast %81 : vector<1x32x32xbf16> to vector<32x32xbf16>
    %cst_27 = arith.constant dense<0.000000e+00> : vector<16x32xf32>
    %83 = tpu.matmul %80, %82, %cst_27 {dimension_numbers = #tpu.dot_dimension_numbers<[1], [0], [0], [1], [0, 0, 1, 1], [], []>} : vector<16x32xbf16>, vector<32x32xbf16>, vector<16x32xf32> -> vector<16x32xf32>
    %c0_28 = arith.constant 0 : index
    %c0_29 = arith.constant 0 : index
    %c0_30 = arith.constant 0 : index
    %84 = vector.load %arg5[%c0_28, %c0_29, %c0_30] : memref<2x1x32xf32, #tpu.memory_space<vmem>>, vector<1x1x32xf32>
    %85 = vector.shape_cast %84 : vector<1x1x32xf32> to vector<1x32xf32>
    %86 = vector.broadcast %85 : vector<1x32xf32> to vector<16x32xf32>
    %87 = arith.addf %83, %86 : vector<16x32xf32>
    %88 = arith.addf %0, %87 : vector<16x32xf32>
    %c0_31 = arith.constant 0 : index
    %c0_32 = arith.constant 0 : index
    %c0_33 = arith.constant 0 : index
    %89 = vector.load %arg6[%c0_31, %c0_32, %c0_33] : memref<2x1x32xf32, #tpu.memory_space<vmem>>, vector<1x1x32xf32>
    %90 = vector.shape_cast %89 : vector<1x1x32xf32> to vector<1x32xf32>
    %c0_34 = arith.constant 0 : index
    %c0_35 = arith.constant 0 : index
    %c0_36 = arith.constant 0 : index
    %91 = vector.load %arg7[%c0_34, %c0_35, %c0_36] : memref<2x1x32xf32, #tpu.memory_space<vmem>>, vector<1x1x32xf32>
    %92 = vector.shape_cast %91 : vector<1x1x32xf32> to vector<1x32xf32>
    %cst_37 = arith.constant dense<0.000000e+00> : vector<16xf32>
    %93 = vector.multi_reduction <add>, %88, %cst_37 [1] : vector<16x32xf32> to vector<16xf32>
    %94 = vector.shape_cast %93 : vector<16xf32> to vector<16x1xf32>
    %cst_38 = arith.constant 3.200000e+01 : f32
    %95 = vector.broadcast %cst_38 : f32 to vector<16x1xf32>
    %96 = arith.divf %94, %95 : vector<16x1xf32>
    %97 = vector.broadcast %96 : vector<16x1xf32> to vector<16x32xf32>
    %98 = arith.subf %88, %97 : vector<16x32xf32>
    %99 = arith.mulf %98, %98 : vector<16x32xf32>
    %cst_39 = arith.constant dense<0.000000e+00> : vector<16xf32>
    %100 = vector.multi_reduction <add>, %99, %cst_39 [1] : vector<16x32xf32> to vector<16xf32>
    %101 = vector.shape_cast %100 : vector<16xf32> to vector<16x1xf32>
    %cst_40 = arith.constant 3.200000e+01 : f32
    %102 = vector.broadcast %cst_40 : f32 to vector<16x1xf32>
    %103 = arith.divf %101, %102 : vector<16x1xf32>
    %104 = vector.broadcast %96 : vector<16x1xf32> to vector<16x32xf32>
    %105 = arith.subf %88, %104 : vector<16x32xf32>
    %cst_41 = arith.constant 9.99999974E-6 : f32
    %106 = vector.broadcast %cst_41 : f32 to vector<16x1xf32>
    %107 = arith.addf %103, %106 : vector<16x1xf32>
    %108 = math.rsqrt %107 : vector<16x1xf32>
    %109 = vector.broadcast %108 : vector<16x1xf32> to vector<16x32xf32>
    %110 = arith.mulf %105, %109 : vector<16x32xf32>
    %111 = vector.broadcast %90 : vector<1x32xf32> to vector<16x32xf32>
    %112 = arith.mulf %111, %110 : vector<16x32xf32>
    %113 = vector.broadcast %92 : vector<1x32xf32> to vector<16x32xf32>
    %114 = arith.addf %112, %113 : vector<16x32xf32>
    %115 = arith.truncf %114 : vector<16x32xf32> to vector<16x32xbf16>
    %c0_42 = arith.constant 0 : index
    %c0_43 = arith.constant 0 : index
    %c0_44 = arith.constant 0 : index
    %116 = vector.load %arg8[%c0_42, %c0_43, %c0_44] : memref<2x32x128xbf16, #tpu.memory_space<vmem>>, vector<1x32x128xbf16>
    %117 = vector.shape_cast %116 : vector<1x32x128xbf16> to vector<32x128xbf16>
    %cst_45 = arith.constant dense<0.000000e+00> : vector<16x128xf32>
    %118 = tpu.matmul %115, %117, %cst_45 {dimension_numbers = #tpu.dot_dimension_numbers<[1], [0], [0], [1], [0, 0, 1, 1], [], []>} : vector<16x32xbf16>, vector<32x128xbf16>, vector<16x128xf32> -> vector<16x128xf32>
    %c0_46 = arith.constant 0 : index
    %c0_47 = arith.constant 0 : index
    %c0_48 = arith.constant 0 : index
    %119 = vector.load %arg9[%c0_46, %c0_47, %c0_48] : memref<2x1x128xf32, #tpu.memory_space<vmem>>, vector<1x1x128xf32>
    %120 = vector.shape_cast %119 : vector<1x1x128xf32> to vector<1x128xf32>
    %121 = vector.broadcast %120 : vector<1x128xf32> to vector<16x128xf32>
    %122 = arith.addf %118, %121 : vector<16x128xf32>
    %cst_49 = arith.constant 5.000000e-01 : f32
    %123 = vector.broadcast %cst_49 : f32 to vector<16x128xf32>
    %124 = arith.mulf %123, %122 : vector<16x128xf32>
    %cst_50 = arith.constant 4.471500e-02 : f32
    %125 = vector.broadcast %cst_50 : f32 to vector<16x128xf32>
    %126 = arith.mulf %125, %122 : vector<16x128xf32>
    %127 = arith.mulf %126, %122 : vector<16x128xf32>
    %128 = arith.mulf %127, %122 : vector<16x128xf32>
    %129 = arith.addf %122, %128 : vector<16x128xf32>
    %cst_51 = arith.constant 0.797884583 : f32
    %130 = vector.broadcast %cst_51 : f32 to vector<16x128xf32>
    %131 = arith.mulf %130, %129 : vector<16x128xf32>
    %132 = math.tanh %131 : vector<16x128xf32>
    %cst_52 = arith.constant 1.000000e+00 : f32
    %133 = vector.broadcast %cst_52 : f32 to vector<16x128xf32>
    %134 = arith.addf %133, %132 : vector<16x128xf32>
    %135 = arith.mulf %124, %134 : vector<16x128xf32>
    %136 = arith.truncf %135 : vector<16x128xf32> to vector<16x128xbf16>
    %c0_53 = arith.constant 0 : index
    %c0_54 = arith.constant 0 : index
    %c0_55 = arith.constant 0 : index
    %137 = vector.load %arg10[%c0_53, %c0_54, %c0_55] : memref<2x128x32xbf16, #tpu.memory_space<vmem>>, vector<1x128x32xbf16>
    %138 = vector.shape_cast %137 : vector<1x128x32xbf16> to vector<128x32xbf16>
    %cst_56 = arith.constant dense<0.000000e+00> : vector<16x32xf32>
    %139 = tpu.matmul %136, %138, %cst_56 {dimension_numbers = #tpu.dot_dimension_numbers<[1], [0], [0], [1], [0, 0, 1, 1], [], []>} : vector<16x128xbf16>, vector<128x32xbf16>, vector<16x32xf32> -> vector<16x32xf32>
    %140 = arith.addf %88, %139 : vector<16x32xf32>
    %c0_57 = arith.constant 0 : index
    %c0_58 = arith.constant 0 : index
    %c0_59 = arith.constant 0 : index
    %141 = vector.load %arg11[%c0_57, %c0_58, %c0_59] : memref<2x1x32xf32, #tpu.memory_space<vmem>>, vector<1x1x32xf32>
    %142 = vector.shape_cast %141 : vector<1x1x32xf32> to vector<1x32xf32>
    %143 = vector.broadcast %142 : vector<1x32xf32> to vector<16x32xf32>
    %144 = arith.addf %140, %143 : vector<16x32xf32>
    %c1 = arith.constant 1 : index
    %c0_60 = arith.constant 0 : index
    %c0_61 = arith.constant 0 : index
    %145 = vector.load %arg1[%c1, %c0_60, %c0_61] : memref<2x1x32xf32, #tpu.memory_space<vmem>>, vector<1x1x32xf32>
    %146 = vector.shape_cast %145 : vector<1x1x32xf32> to vector<1x32xf32>
    %c1_62 = arith.constant 1 : index
    %c0_63 = arith.constant 0 : index
    %c0_64 = arith.constant 0 : index
    %147 = vector.load %arg2[%c1_62, %c0_63, %c0_64] : memref<2x1x32xf32, #tpu.memory_space<vmem>>, vector<1x1x32xf32>
    %148 = vector.shape_cast %147 : vector<1x1x32xf32> to vector<1x32xf32>
    %cst_65 = arith.constant dense<0.000000e+00> : vector<16xf32>
    %149 = vector.multi_reduction <add>, %144, %cst_65 [1] : vector<16x32xf32> to vector<16xf32>
    %150 = vector.shape_cast %149 : vector<16xf32> to vector<16x1xf32>
    %cst_66 = arith.constant 3.200000e+01 : f32
    %151 = vector.broadcast %cst_66 : f32 to vector<16x1xf32>
    %152 = arith.divf %150, %151 : vector<16x1xf32>
    %153 = vector.broadcast %152 : vector<16x1xf32> to vector<16x32xf32>
    %154 = arith.subf %144, %153 : vector<16x32xf32>
    %155 = arith.mulf %154, %154 : vector<16x32xf32>
    %cst_67 = arith.constant dense<0.000000e+00> : vector<16xf32>
    %156 = vector.multi_reduction <add>, %155, %cst_67 [1] : vector<16x32xf32> to vector<16xf32>
    %157 = vector.shape_cast %156 : vector<16xf32> to vector<16x1xf32>
    %cst_68 = arith.constant 3.200000e+01 : f32
    %158 = vector.broadcast %cst_68 : f32 to vector<16x1xf32>
    %159 = arith.divf %157, %158 : vector<16x1xf32>
    %160 = vector.broadcast %152 : vector<16x1xf32> to vector<16x32xf32>
    %161 = arith.subf %144, %160 : vector<16x32xf32>
    %cst_69 = arith.constant 9.99999974E-6 : f32
    %162 = vector.broadcast %cst_69 : f32 to vector<16x1xf32>
    %163 = arith.addf %159, %162 : vector<16x1xf32>
    %164 = math.rsqrt %163 : vector<16x1xf32>
    %165 = vector.broadcast %164 : vector<16x1xf32> to vector<16x32xf32>
    %166 = arith.mulf %161, %165 : vector<16x32xf32>
    %167 = vector.broadcast %146 : vector<1x32xf32> to vector<16x32xf32>
    %168 = arith.mulf %167, %166 : vector<16x32xf32>
    %169 = vector.broadcast %148 : vector<1x32xf32> to vector<16x32xf32>
    %170 = arith.addf %168, %169 : vector<16x32xf32>
    %171 = arith.truncf %170 : vector<16x32xf32> to vector<16x32xbf16>
    %c1_70 = arith.constant 1 : index
    %c0_71 = arith.constant 0 : index
    %c0_72 = arith.constant 0 : index
    %172 = vector.load %arg3[%c1_70, %c0_71, %c0_72] : memref<2x32x96xbf16, #tpu.memory_space<vmem>>, vector<1x32x96xbf16>
    %173 = vector.shape_cast %172 : vector<1x32x96xbf16> to vector<32x96xbf16>
    %cst_73 = arith.constant dense<0.000000e+00> : vector<16x96xf32>
    %174 = tpu.matmul %171, %173, %cst_73 {dimension_numbers = #tpu.dot_dimension_numbers<[1], [0], [0], [1], [0, 0, 1, 1], [], []>} : vector<16x32xbf16>, vector<32x96xbf16>, vector<16x96xf32> -> vector<16x96xf32>
    %175 = vector.extract_strided_slice %174 {offsets = [0, 0], sizes = [16, 32], strides = [1, 1]} : vector<16x96xf32> to vector<16x32xf32>
    %cst_74 = arith.constant 0.353553385 : f32
    %176 = vector.broadcast %cst_74 : f32 to vector<16x32xf32>
    %177 = arith.mulf %175, %176 : vector<16x32xf32>
    %178 = vector.shape_cast %177 : vector<16x32xf32> to vector<16x4x8xf32>
    %179 = tpu.transpose %178, [1, 0, 2] : vector<16x4x8xf32> -> vector<4x16x8xf32>
    %180 = arith.truncf %179 : vector<4x16x8xf32> to vector<4x16x8xbf16>
    %181 = vector.extract_strided_slice %174 {offsets = [0, 32], sizes = [16, 32], strides = [1, 1]} : vector<16x96xf32> to vector<16x32xf32>
    %182 = vector.shape_cast %181 : vector<16x32xf32> to vector<16x4x8xf32>
    %183 = tpu.transpose %182, [1, 0, 2] : vector<16x4x8xf32> -> vector<4x16x8xf32>
    %184 = arith.truncf %183 : vector<4x16x8xf32> to vector<4x16x8xbf16>
    %185 = vector.extract_strided_slice %174 {offsets = [0, 64], sizes = [16, 32], strides = [1, 1]} : vector<16x96xf32> to vector<16x32xf32>
    %186 = vector.shape_cast %185 : vector<16x32xf32> to vector<16x4x8xf32>
    %187 = tpu.transpose %186, [1, 0, 2] : vector<16x4x8xf32> -> vector<4x16x8xf32>
    %188 = arith.truncf %187 : vector<4x16x8xf32> to vector<4x16x8xbf16>
    "tpu.trace_start"() <{level = 10 : i32, message = "hnd,hmd->hnm"}> : () -> ()
    %cst_75 = arith.constant dense<0.000000e+00> : vector<4x16x16xf32>
    %189 = tpu.matmul %180, %184, %cst_75 {dimension_numbers = #tpu.dot_dimension_numbers<[2], [2], [1], [1], [0, 0, 0, 1, 1, 1], [0], [0]>} : vector<4x16x8xbf16>, vector<4x16x8xbf16>, vector<4x16x16xf32> -> vector<4x16x16xf32>
    "tpu.trace_stop"() : () -> ()
    %190 = arith.addf %189, %19 : vector<4x16x16xf32>
    %cst_76 = arith.constant dense<0xFF800000> : vector<4x16xf32>
    %191 = vector.multi_reduction <maximumf>, %190, %cst_76 [2] : vector<4x16x16xf32> to vector<4x16xf32>
    %192 = vector.shape_cast %191 : vector<4x16xf32> to vector<4x16x1xf32>
    %193 = vector.broadcast %192 : vector<4x16x1xf32> to vector<4x16x16xf32>
    %194 = arith.subf %190, %193 : vector<4x16x16xf32>
    %195 = math.exp %194 : vector<4x16x16xf32>
    %cst_77 = arith.constant dense<0.000000e+00> : vector<4x16xf32>
    %196 = vector.multi_reduction <add>, %195, %cst_77 [2] : vector<4x16x16xf32> to vector<4x16xf32>
    %197 = vector.shape_cast %196 : vector<4x16xf32> to vector<4x16x1xf32>
    %198 = tpu.reciprocal %197 {approx = true} : vector<4x16x1xf32> -> vector<4x16x1xf32>
    %199 = vector.broadcast %198 : vector<4x16x1xf32> to vector<4x16x16xf32>
    %200 = arith.mulf %195, %199 : vector<4x16x16xf32>
    %201 = arith.truncf %200 : vector<4x16x16xf32> to vector<4x16x16xbf16>
    "tpu.trace_start"() <{level = 10 : i32, message = "hnm,hmd->hnd"}> : () -> ()
    %cst_78 = arith.constant dense<0.000000e+00> : vector<4x16x8xf32>
    %202 = tpu.matmul %201, %188, %cst_78 {dimension_numbers = #tpu.dot_dimension_numbers<[2], [1], [1], [2], [0, 0, 0, 1, 1, 2], [0], [0]>} : vector<4x16x16xbf16>, vector<4x16x8xbf16>, vector<4x16x8xf32> -> vector<4x16x8xf32>
    "tpu.trace_stop"() : () -> ()
    %203 = tpu.transpose %202, [1, 0, 2] : vector<4x16x8xf32> -> vector<16x4x8xf32>
    %204 = vector.shape_cast %203 : vector<16x4x8xf32> to vector<16x32xf32>
    %205 = arith.truncf %204 : vector<16x32xf32> to vector<16x32xbf16>
    %c1_79 = arith.constant 1 : index
    %c0_80 = arith.constant 0 : index
    %c0_81 = arith.constant 0 : index
    %206 = vector.load %arg4[%c1_79, %c0_80, %c0_81] : memref<2x32x32xbf16, #tpu.memory_space<vmem>>, vector<1x32x32xbf16>
    %207 = vector.shape_cast %206 : vector<1x32x32xbf16> to vector<32x32xbf16>
    %cst_82 = arith.constant dense<0.000000e+00> : vector<16x32xf32>
    %208 = tpu.matmul %205, %207, %cst_82 {dimension_numbers = #tpu.dot_dimension_numbers<[1], [0], [0], [1], [0, 0, 1, 1], [], []>} : vector<16x32xbf16>, vector<32x32xbf16>, vector<16x32xf32> -> vector<16x32xf32>
    %c1_83 = arith.constant 1 : index
    %c0_84 = arith.constant 0 : index
    %c0_85 = arith.constant 0 : index
    %209 = vector.load %arg5[%c1_83, %c0_84, %c0_85] : memref<2x1x32xf32, #tpu.memory_space<vmem>>, vector<1x1x32xf32>
    %210 = vector.shape_cast %209 : vector<1x1x32xf32> to vector<1x32xf32>
    %211 = vector.broadcast %210 : vector<1x32xf32> to vector<16x32xf32>
    %212 = arith.addf %208, %211 : vector<16x32xf32>
    %213 = arith.addf %144, %212 : vector<16x32xf32>
    %c1_86 = arith.constant 1 : index
    %c0_87 = arith.constant 0 : index
    %c0_88 = arith.constant 0 : index
    %214 = vector.load %arg6[%c1_86, %c0_87, %c0_88] : memref<2x1x32xf32, #tpu.memory_space<vmem>>, vector<1x1x32xf32>
    %215 = vector.shape_cast %214 : vector<1x1x32xf32> to vector<1x32xf32>
    %c1_89 = arith.constant 1 : index
    %c0_90 = arith.constant 0 : index
    %c0_91 = arith.constant 0 : index
    %216 = vector.load %arg7[%c1_89, %c0_90, %c0_91] : memref<2x1x32xf32, #tpu.memory_space<vmem>>, vector<1x1x32xf32>
    %217 = vector.shape_cast %216 : vector<1x1x32xf32> to vector<1x32xf32>
    %cst_92 = arith.constant dense<0.000000e+00> : vector<16xf32>
    %218 = vector.multi_reduction <add>, %213, %cst_92 [1] : vector<16x32xf32> to vector<16xf32>
    %219 = vector.shape_cast %218 : vector<16xf32> to vector<16x1xf32>
    %cst_93 = arith.constant 3.200000e+01 : f32
    %220 = vector.broadcast %cst_93 : f32 to vector<16x1xf32>
    %221 = arith.divf %219, %220 : vector<16x1xf32>
    %222 = vector.broadcast %221 : vector<16x1xf32> to vector<16x32xf32>
    %223 = arith.subf %213, %222 : vector<16x32xf32>
    %224 = arith.mulf %223, %223 : vector<16x32xf32>
    %cst_94 = arith.constant dense<0.000000e+00> : vector<16xf32>
    %225 = vector.multi_reduction <add>, %224, %cst_94 [1] : vector<16x32xf32> to vector<16xf32>
    %226 = vector.shape_cast %225 : vector<16xf32> to vector<16x1xf32>
    %cst_95 = arith.constant 3.200000e+01 : f32
    %227 = vector.broadcast %cst_95 : f32 to vector<16x1xf32>
    %228 = arith.divf %226, %227 : vector<16x1xf32>
    %229 = vector.broadcast %221 : vector<16x1xf32> to vector<16x32xf32>
    %230 = arith.subf %213, %229 : vector<16x32xf32>
    %cst_96 = arith.constant 9.99999974E-6 : f32
    %231 = vector.broadcast %cst_96 : f32 to vector<16x1xf32>
    %232 = arith.addf %228, %231 : vector<16x1xf32>
    %233 = math.rsqrt %232 : vector<16x1xf32>
    %234 = vector.broadcast %233 : vector<16x1xf32> to vector<16x32xf32>
    %235 = arith.mulf %230, %234 : vector<16x32xf32>
    %236 = vector.broadcast %215 : vector<1x32xf32> to vector<16x32xf32>
    %237 = arith.mulf %236, %235 : vector<16x32xf32>
    %238 = vector.broadcast %217 : vector<1x32xf32> to vector<16x32xf32>
    %239 = arith.addf %237, %238 : vector<16x32xf32>
    %240 = arith.truncf %239 : vector<16x32xf32> to vector<16x32xbf16>
    %c1_97 = arith.constant 1 : index
    %c0_98 = arith.constant 0 : index
    %c0_99 = arith.constant 0 : index
    %241 = vector.load %arg8[%c1_97, %c0_98, %c0_99] : memref<2x32x128xbf16, #tpu.memory_space<vmem>>, vector<1x32x128xbf16>
    %242 = vector.shape_cast %241 : vector<1x32x128xbf16> to vector<32x128xbf16>
    %cst_100 = arith.constant dense<0.000000e+00> : vector<16x128xf32>
    %243 = tpu.matmul %240, %242, %cst_100 {dimension_numbers = #tpu.dot_dimension_numbers<[1], [0], [0], [1], [0, 0, 1, 1], [], []>} : vector<16x32xbf16>, vector<32x128xbf16>, vector<16x128xf32> -> vector<16x128xf32>
    %c1_101 = arith.constant 1 : index
    %c0_102 = arith.constant 0 : index
    %c0_103 = arith.constant 0 : index
    %244 = vector.load %arg9[%c1_101, %c0_102, %c0_103] : memref<2x1x128xf32, #tpu.memory_space<vmem>>, vector<1x1x128xf32>
    %245 = vector.shape_cast %244 : vector<1x1x128xf32> to vector<1x128xf32>
    %246 = vector.broadcast %245 : vector<1x128xf32> to vector<16x128xf32>
    %247 = arith.addf %243, %246 : vector<16x128xf32>
    %cst_104 = arith.constant 5.000000e-01 : f32
    %248 = vector.broadcast %cst_104 : f32 to vector<16x128xf32>
    %249 = arith.mulf %248, %247 : vector<16x128xf32>
    %cst_105 = arith.constant 4.471500e-02 : f32
    %250 = vector.broadcast %cst_105 : f32 to vector<16x128xf32>
    %251 = arith.mulf %250, %247 : vector<16x128xf32>
    %252 = arith.mulf %251, %247 : vector<16x128xf32>
    %253 = arith.mulf %252, %247 : vector<16x128xf32>
    %254 = arith.addf %247, %253 : vector<16x128xf32>
    %cst_106 = arith.constant 0.797884583 : f32
    %255 = vector.broadcast %cst_106 : f32 to vector<16x128xf32>
    %256 = arith.mulf %255, %254 : vector<16x128xf32>
    %257 = math.tanh %256 : vector<16x128xf32>
    %cst_107 = arith.constant 1.000000e+00 : f32
    %258 = vector.broadcast %cst_107 : f32 to vector<16x128xf32>
    %259 = arith.addf %258, %257 : vector<16x128xf32>
    %260 = arith.mulf %249, %259 : vector<16x128xf32>
    %261 = arith.truncf %260 : vector<16x128xf32> to vector<16x128xbf16>
    %c1_108 = arith.constant 1 : index
    %c0_109 = arith.constant 0 : index
    %c0_110 = arith.constant 0 : index
    %262 = vector.load %arg10[%c1_108, %c0_109, %c0_110] : memref<2x128x32xbf16, #tpu.memory_space<vmem>>, vector<1x128x32xbf16>
    %263 = vector.shape_cast %262 : vector<1x128x32xbf16> to vector<128x32xbf16>
    %cst_111 = arith.constant dense<0.000000e+00> : vector<16x32xf32>
    %264 = tpu.matmul %261, %263, %cst_111 {dimension_numbers = #tpu.dot_dimension_numbers<[1], [0], [0], [1], [0, 0, 1, 1], [], []>} : vector<16x128xbf16>, vector<128x32xbf16>, vector<16x32xf32> -> vector<16x32xf32>
    %265 = arith.addf %213, %264 : vector<16x32xf32>
    %c1_112 = arith.constant 1 : index
    %c0_113 = arith.constant 0 : index
    %c0_114 = arith.constant 0 : index
    %266 = vector.load %arg11[%c1_112, %c0_113, %c0_114] : memref<2x1x32xf32, #tpu.memory_space<vmem>>, vector<1x1x32xf32>
    %267 = vector.shape_cast %266 : vector<1x1x32xf32> to vector<1x32xf32>
    %268 = vector.broadcast %267 : vector<1x32xf32> to vector<16x32xf32>
    %269 = arith.addf %265, %268 : vector<16x32xf32>
    %c0_115 = arith.constant 0 : index
    %c0_116 = arith.constant 0 : index
    %270 = vector.load %arg12[%c0_115, %c0_116] : memref<1x32xf32, #tpu.memory_space<vmem>>, vector<1x32xf32>
    %c0_117 = arith.constant 0 : index
    %c0_118 = arith.constant 0 : index
    %271 = vector.load %arg13[%c0_117, %c0_118] : memref<1x32xf32, #tpu.memory_space<vmem>>, vector<1x32xf32>
    %cst_119 = arith.constant dense<0.000000e+00> : vector<16xf32>
    %272 = vector.multi_reduction <add>, %269, %cst_119 [1] : vector<16x32xf32> to vector<16xf32>
    %273 = vector.shape_cast %272 : vector<16xf32> to vector<16x1xf32>
    %cst_120 = arith.constant 3.200000e+01 : f32
    %274 = vector.broadcast %cst_120 : f32 to vector<16x1xf32>
    %275 = arith.divf %273, %274 : vector<16x1xf32>
    %276 = vector.broadcast %275 : vector<16x1xf32> to vector<16x32xf32>
    %277 = arith.subf %269, %276 : vector<16x32xf32>
    %278 = arith.mulf %277, %277 : vector<16x32xf32>
    %cst_121 = arith.constant dense<0.000000e+00> : vector<16xf32>
    %279 = vector.multi_reduction <add>, %278, %cst_121 [1] : vector<16x32xf32> to vector<16xf32>
    %280 = vector.shape_cast %279 : vector<16xf32> to vector<16x1xf32>
    %cst_122 = arith.constant 3.200000e+01 : f32
    %281 = vector.broadcast %cst_122 : f32 to vector<16x1xf32>
    %282 = arith.divf %280, %281 : vector<16x1xf32>
    %283 = vector.broadcast %275 : vector<16x1xf32> to vector<16x32xf32>
    %284 = arith.subf %269, %283 : vector<16x32xf32>
    %cst_123 = arith.constant 9.99999974E-6 : f32
    %285 = vector.broadcast %cst_123 : f32 to vector<16x1xf32>
    %286 = arith.addf %282, %285 : vector<16x1xf32>
    %287 = math.rsqrt %286 : vector<16x1xf32>
    %288 = vector.broadcast %287 : vector<16x1xf32> to vector<16x32xf32>
    %289 = arith.mulf %284, %288 : vector<16x32xf32>
    %290 = vector.broadcast %270 : vector<1x32xf32> to vector<16x32xf32>
    %291 = arith.mulf %290, %289 : vector<16x32xf32>
    %292 = vector.broadcast %271 : vector<1x32xf32> to vector<16x32xf32>
    %293 = arith.addf %291, %292 : vector<16x32xf32>
    %294 = arith.truncf %293 : vector<16x32xf32> to vector<16x32xbf16>
    %c0_124 = arith.constant 0 : index
    %c0_125 = arith.constant 0 : index
    %295 = vector.load %arg14[%c0_124, %c0_125] : memref<32x128xbf16, #tpu.memory_space<vmem>>, vector<32x128xbf16>
    %cst_126 = arith.constant dense<0.000000e+00> : vector<16x128xf32>
    %296 = tpu.matmul %294, %295, %cst_126 {dimension_numbers = #tpu.dot_dimension_numbers<[1], [0], [0], [1], [0, 0, 1, 1], [], []>} : vector<16x32xbf16>, vector<32x128xbf16>, vector<16x128xf32> -> vector<16x128xf32>
    %c0_127 = arith.constant 0 : index
    %c0_128 = arith.constant 0 : index
    %297 = vector.load %arg15[%c0_127, %c0_128] : memref<16x128xf32, #tpu.memory_space<vmem>>, vector<16x128xf32>
    tpu.vector_store %arg15[%c0_127, %c0_128], %296 {strides = array<i32>} : memref<16x128xf32, #tpu.memory_space<vmem>>, vector<16x128xf32>,
    return
  }
}

</mosaic_0001>

<llo_original>
// kernel: gpt_forward.1
$region0: #{gpt_forward.1}
  #allocation0 [shape = 'u32[]', space=smem, size = 0x4, offset = 0x4, fixed_abs, tag = 'smem constant byte address 0x4 - core index']
  #allocation1 [shape = 'u32[144,128]{1,0:T(1,128)}', space=vmem, size = 0x12000, scoped, tag = 'internal scratch']
  %s0 = inlined_call_operand.vmem [shape: f32[16,32], index: 0, kind: input, shape index: {}]
  %s1 = inlined_call_operand.vmem [shape: f32[2,1,32], index: 1, kind: input, shape index: {}]
  %s2 = inlined_call_operand.vmem [shape: f32[2,1,32], index: 2, kind: input, shape index: {}]
  %s3 = inlined_call_operand.vmem [shape: bf16[2,32,96], index: 3, kind: input, shape index: {}]
  %s4 = inlined_call_operand.vmem [shape: bf16[2,32,32], index: 4, kind: input, shape index: {}]
  %s5 = inlined_call_operand.vmem [shape: f32[2,1,32], index: 5, kind: input, shape index: {}]
  %s6 = inlined_call_operand.vmem [shape: f32[2,1,32], index: 6, kind: input, shape index: {}]
  %s7 = inlined_call_operand.vmem [shape: f32[2,1,32], index: 7, kind: input, shape index: {}]
  %s8 = inlined_call_operand.vmem [shape: bf16[2,32,128], index: 8, kind: input, shape index: {}]
  %s9 = inlined_call_operand.vmem [shape: f32[2,1,128], index: 9, kind: input, shape index: {}]
  %s10 = inlined_call_operand.vmem [shape: bf16[2,128,32], index: 10, kind: input, shape index: {}]
  %s11 = inlined_call_operand.vmem [shape: f32[2,1,32], index: 11, kind: input, shape index: {}]
  %s12 = inlined_call_operand.vmem [shape: f32[1,32], index: 12, kind: input, shape index: {}]
  %s13 = inlined_call_operand.vmem [shape: f32[1,32], index: 13, kind: input, shape index: {}]
  %s14 = inlined_call_operand.vmem [shape: bf16[32,128], index: 14, kind: input, shape index: {}]
  %s15 = inlined_call_operand.hbm [shape: f32[16,128], index: 15, kind: output, shape index: {}]
  %s16 = sld [smem:[#allocation0]]
  $region70: #{gpt_forward.1} parent=0
    _
  %s18 = ssub.s32 1, %s16
  %s19 = scalar_select 0, %s18, %s16
  $region1: #{gpt_forward.1} parent=0
    #allocation2 [shape = 'u8[8192]{0}', space=vmem, size = 0x2000, scoped, tag = 'output window, operand 0, single buffered']
    #allocation3 [shape = 's32[1]{0}', space=sflag, size = 0x4, scoped, tag = 'scoped memory for gpt_forward.1']
    %20 = vsyncpa [#allocation3], 0
    // Predicated region
    $region2: #{gpt_forward.1} parent=1 // pred_check
      _
    $region3: #{gpt_forward.1} parent=1 // pred_check_branch
      %22 = sbr.rel (0) target = $region5
    $region4: #{gpt_forward.1} parent=1 // pred_region
      _
    $region5: #{gpt_forward.1} parent=1 // pred_fallthru
      _
    // Predicated region
    $region6: #{gpt_forward.1} parent=1 // pred_check
      _
    $region7: #{gpt_forward.1} parent=1 // pred_check_branch
      %24 = sbr.rel (0) target = $region9
    $region8: #{gpt_forward.1} parent=1 // pred_region
      _
    $region9: #{gpt_forward.1} parent=1 // pred_fallthru
      _
    // Predicated region
    $region10: #{gpt_forward.1} parent=1 // pred_check
      _
    $region11: #{gpt_forward.1} parent=1 // pred_check_branch
      %26 = sbr.rel (0) target = $region13
    $region12: #{gpt_forward.1} parent=1 // pred_region
      _
    $region13: #{gpt_forward.1} parent=1 // pred_fallthru
      _
    // Predicated region
    $region14: #{gpt_forward.1} parent=1 // pred_check
      _
    $region15: #{gpt_forward.1} parent=1 // pred_check_branch
      %28 = sbr.rel (0) target = $region17
    $region16: #{gpt_forward.1} parent=1 // pred_region
      _
    $region17: #{gpt_forward.1} parent=1 // pred_fallthru
      _
    // Predicated region
    $region18: #{gpt_forward.1} parent=1 // pred_check
      _
    $region19: #{gpt_forward.1} parent=1 // pred_check_branch
      %30 = sbr.rel (0) target = $region21
    $region20: #{gpt_forward.1} parent=1 // pred_region
      _
    $region21: #{gpt_forward.1} parent=1 // pred_fallthru
      _
    // Predicated region
    $region22: #{gpt_forward.1} parent=1 // pred_check
      _
    $region23: #{gpt_forward.1} parent=1 // pred_check_branch
      %32 = sbr.rel (0) target = $region25
    $region24: #{gpt_forward.1} parent=1 // pred_region
      _
    $region25: #{gpt_forward.1} parent=1 // pred_fallthru
      _
    // Predicated region
    $region26: #{gpt_forward.1} parent=1 // pred_check
      _
    $region27: #{gpt_forward.1} parent=1 // pred_check_branch
      %34 = sbr.rel (0) target = $region29
    $region28: #{gpt_forward.1} parent=1 // pred_region
      _
    $region29: #{gpt_forward.1} parent=1 // pred_fallthru
      _
    // Predicated region
    $region30: #{gpt_forward.1} parent=1 // pred_check
      _
    $region31: #{gpt_forward.1} parent=1 // pred_check_branch
      %36 = sbr.rel (0) target = $region33
    $region32: #{gpt_forward.1} parent=1 // pred_region
      _
    $region33: #{gpt_forward.1} parent=1 // pred_fallthru
      _
    // Predicated region
    $region34: #{gpt_forward.1} parent=1 // pred_check
      _
    $region35: #{gpt_forward.1} parent=1 // pred_check_branch
      %38 = sbr.rel (0) target = $region37
    $region36: #{gpt_forward.1} parent=1 // pred_region
      _
    $region37: #{gpt_forward.1} parent=1 // pred_fallthru
      _
    // Predicated region
    $region38: #{gpt_forward.1} parent=1 // pred_check
      _
    $region39: #{gpt_forward.1} parent=1 // pred_check_branch
      %40 = sbr.rel (0) target = $region41
    $region40: #{gpt_forward.1} parent=1 // pred_region
      _
    $region41: #{gpt_forward.1} parent=1 // pred_fallthru
      _
    // Predicated region
    $region42: #{gpt_forward.1} parent=1 // pred_check
      _
    $region43: #{gpt_forward.1} parent=1 // pred_check_branch
      %42 = sbr.rel (0) target = $region45
    $region44: #{gpt_forward.1} parent=1 // pred_region
      _
    $region45: #{gpt_forward.1} parent=1 // pred_fallthru
      _
    // Predicated region
    $region46: #{gpt_forward.1} parent=1 // pred_check
      _
    $region47: #{gpt_forward.1} parent=1 // pred_check_branch
      %44 = sbr.rel (0) target = $region49
    $region48: #{gpt_forward.1} parent=1 // pred_region
      _
    $region49: #{gpt_forward.1} parent=1 // pred_fallthru
      _
    // Predicated region
    $region50: #{gpt_forward.1} parent=1 // pred_check
      _
    $region51: #{gpt_forward.1} parent=1 // pred_check_branch
      %46 = sbr.rel (0) target = $region53
    $region52: #{gpt_forward.1} parent=1 // pred_region
      _
    $region53: #{gpt_forward.1} parent=1 // pred_fallthru
      _
    // Predicated region
    $region54: #{gpt_forward.1} parent=1 // pred_check
      _
    $region55: #{gpt_forward.1} parent=1 // pred_check_branch
      %48 = sbr.rel (0) target = $region57
    $region56: #{gpt_forward.1} parent=1 // pred_region
      _
    $region57: #{gpt_forward.1} parent=1 // pred_fallthru
      _
    // Predicated region
    $region58: #{gpt_forward.1} parent=1 // pred_check
      _
    $region59: #{gpt_forward.1} parent=1 // pred_check_branch
      %50 = sbr.rel (0) target = $region61
    $region60: #{gpt_forward.1} parent=1 // pred_region
      _
    $region61: #{gpt_forward.1} parent=1 // pred_fallthru
      _
    %v52 = vld [vmem:[%s0] sm:$0xff]
    %v53 = vld [vmem:[%s0 + $0x8] sm:$0xff]
    %v54 = vlaneseq
    %v55 = vshrl.u32 %v54, 7
    %v56 = vadd.s32 %v55, 8
    %v57 = vlaneseq
    %v58 = vand.u32 %v57, 127
    %v59 = vcvt.s32.f32 %v55
    %v60 = vcvt.s32.f32 %v56
    %v61 = vmul.f32 %v59, 0.125
    %v62 = vmul.f32 %v60, 0.125
    %v63 = vfloor.f32 %v61
    %v64 = vfloor.f32 %v62
    %v65 = vcvt.s32.f32 %v58
    %v66 = vmul.f32 %v65, 0.125
    %v67 = vfloor.f32 %v66
    %vm68 = vcmp.le.s32.totalorder %v58, %v55
    %vm69 = vcmp.le.s32.totalorder %v58, %v56
    %vm70 = vcmp.eq.f32.partialorder %v63, %v67
    %vm71 = vcmp.eq.f32.partialorder %v64, %v67
    %vm72 = vmand %vm68, %vm70
    %vm73 = vmand %vm69, %vm71
    %v74 = vsel %vm72, 0.0, -1e+30
    %v75 = vsel %vm73, 0.0, -1e+30
    %v76 = vld [vmem:[%s1] sm:$0x1]
    %v77 = vld [vmem:[%s2] sm:$0x1]
    %vm78 = vcmask 261120
    %v79 = vsel %vm78, %v52, 0.0
    %80 = vadd.xlane.f32.xlu0 %v79
    %v81 = vpop.xlane.xlu0 %80
    %v82 = vsel %vm78, %v53, 0.0
    %83 = vadd.xlane.f32.xlu0 %v82
    %v84 = vpop.xlane.xlu0 %83
    %v85 = vrcp.pop 32.0
    %v86 = vmul.f32 %v81, %v85
    %v87 = vmul.f32 %v84, %v85
    %v88 = vsub.f32 %v52, %v86
    %v89 = vsub.f32 %v53, %v87
    %v90 = vmul.f32 %v88, %v88
    %v91 = vmul.f32 %v89, %v89
    %v92 = vsel %vm78, %v90, 0.0
    %93 = vadd.xlane.f32.xlu0 %v92
    %v94 = vpop.xlane.xlu0 %93
    %v95 = vsel %vm78, %v91, 0.0
    %96 = vadd.xlane.f32.xlu0 %v95
    %v97 = vpop.xlane.xlu0 %96
    %v98 = vmul.f32 %v94, %v85
    %v99 = vmul.f32 %v97, %v85
    %v100 = vadd.f32 %v98, 1e-05
    %v101 = vadd.f32 %v99, 1e-05
    %v102 = vrsqrt.pop %v100
    %v103 = vrsqrt.pop %v101
    %v104 = vmul.f32 %v88, %v102
    %v105 = vmul.f32 %v89, %v103
    %v107 = vlaneseq
    %v108 = vshrl.u32 %v107, 7
    %v109 = vsub.s32 0, %v108
    %v110 = vrot.slane %v76, %v109
    %v112 = vmul.f32 %v110, %v104
    %v113 = vmul.f32 %v110, %v105
    %v115 = vlaneseq
    %v116 = vshrl.u32 %v115, 7
    %v117 = vsub.s32 0, %v116
    %v118 = vrot.slane %v77, %v117
    %v120 = vadd.f32 %v112, %v118
    %v121 = vadd.f32 %v113, %v118
    %v122 = vpack.c.bf16 %v121, %v120
    %v123 = vld [vmem:[%s3] sm:$0xf]
    %v124 = vld [vmem:[%s3 + $0x4] sm:$0xf]
    %v125 = vld [vmem:[%s3 + $0x8] sm:$0xf]
    %v126 = vld [vmem:[%s3 + $0xc] sm:$0xf]
    %v131 = vunpack.c.l.b16 %v123
    %v132 = vunpack.c.l.b16 %v124
    %v133 = vunpack.c.l.b16 %v125
    %v134 = vunpack.c.l.b16 %v126
    %v135 = vpack.c.b16 %v132, %v131
    %v136 = vpack.c.b16 %v134, %v133
    %v140 = vsel %vm78, %v122, 0
    %142 = vmatprep.subr.bf16.mxu0 0
    %143 = vmatpush1.bf16.msra.mxu0 0
    %144 = vmatprep.subr.bf16.mxu0 0
    %145 = vmatpush1.bf16.msra.mxu0 0
    %146 = vmatprep.subr.bf16.mxu0 0
    %147 = vmatpush1.bf16.msra.mxu0 0
    %148 = vmatprep.subr.bf16.mxu0 0
    %149 = vmatpush1.bf16.msra.mxu0 0
    %150 = vmatprep.subr.bf16.mxu0 0
    %151 = vmatpush1.bf16.msra.mxu0 0
    %152 = vmatprep.subr.bf16.mxu0 0
    %153 = vmatpush1.bf16.msra.mxu0 0
    %154 = vmatprep.subr.bf16.mxu0 0
    %155 = vmatpush1.bf16.msra.mxu0 %v136
    %156 = vmatprep.subr.bf16.mxu0 0
    %157 = vmatpush1.bf16.msra.mxu0 %v135
    %158 = vmatprep.subr.bf16.mxu0 0
    %159 = vmatpush2.bf16.msra.mxu0 0
    %160 = vmatprep.subr.bf16.mxu0 0
    %161 = vmatpush2.bf16.msra.mxu0 0
    %162 = vmatprep.subr.bf16.mxu0 0
    %163 = vmatpush2.bf16.msra.mxu0 0
    %164 = vmatprep.subr.bf16.mxu0 0
    %165 = vmatpush2.bf16.msra.mxu0 0
    %166 = vmatprep.subr.bf16.mxu0 0
    %167 = vmatpush2.bf16.msra.mxu0 0
    %168 = vmatprep.subr.bf16.mxu0 0
    %169 = vmatpush2.bf16.msra.mxu0 0
    %170 = vmatprep.subr.bf16.mxu0 0
    %171 = vmatpush2.bf16.msra.mxu0 0
    %172 = vmatprep.subr.bf16.mxu0 0
    %173 = vmatpush2.bf16.msra.mxu0 0
    %174 = vmatprep.mubr.bf16.mxu0 0
    %175 = vmatmul.mubr.bf16.gmra.mxu0 %v140
    %v176 = vpop.f32.mrf.mxu0
    %v177 = vadd.f32 0.0, %v176
    %v178 = vpop.f32.mrf.mxu0
    %v179 = vpop.f32.mrf.mxu0
    %v180 = vadd.f32 0.0, %v179
    %v181 = vpop.f32.mrf.mxu0
    %182 = vdwg.mxu0
    %v183 = vmul.f32 %v177, 0.35355338
    %v184 = vmul.f32 %v180, 0.35355338
    %187 = vrot.lane.b32.xlu0 %v183, 120
    %v188 = vpop.permute.xlu0 %187
    %189 = vrot.lane.b32.xlu0 %v184, 120
    %v190 = vpop.permute.xlu0 %189
    %193 = vrot.lane.b32.xlu0 %v183, 112
    %v194 = vpop.permute.xlu0 %193
    %195 = vrot.lane.b32.xlu0 %v184, 112
    %v196 = vpop.permute.xlu0 %195
    %199 = vrot.lane.b32.xlu0 %v183, 104
    %v200 = vpop.permute.xlu0 %199
    %201 = vrot.lane.b32.xlu0 %v184, 104
    %v202 = vpop.permute.xlu0 %201
    %v205 = vcombine.low %v183, %v194
    %v206 = vcombine.high %v183, %v194
    %v208 = vunpack.c.l.s4 1983009808
    %v209 = vunpack.c.0.s8 %v208
    %v210 = vlaneseq
    %v211 = vshrl.u32 %v210, 7
    %v212 = vsub.s32 %v209, %v211
    %v213 = vrot.slane %v205, %v212
    %v215 = vunpack.c.l.s4 1983009808
    %v216 = vunpack.c.0.s8 %v215
    %v217 = vlaneseq
    %v218 = vshrl.u32 %v217, 7
    %v219 = vsub.s32 %v216, %v218
    %v220 = vrot.slane %v206, %v219
    %v221 = vcombine.low %v188, %v200
    %v222 = vcombine.high %v188, %v200
    %v224 = vunpack.c.l.s4 1983009808
    %v225 = vunpack.c.0.s8 %v224
    %v226 = vlaneseq
    %v227 = vshrl.u32 %v226, 7
    %v228 = vsub.s32 %v225, %v227
    %v229 = vrot.slane %v221, %v228
    %v231 = vunpack.c.l.s4 1983009808
    %v232 = vunpack.c.0.s8 %v231
    %v233 = vlaneseq
    %v234 = vshrl.u32 %v233, 7
    %v235 = vsub.s32 %v232, %v234
    %v236 = vrot.slane %v222, %v235
    %v237 = vcombine.low %v213, %v229
    %v238 = vcombine.high %v213, %v229
    %v240 = vunpack.c.l.s4 1934713408
    %v241 = vunpack.c.0.s8 %v240
    %v242 = vlaneseq
    %v243 = vshrl.u32 %v242, 7
    %v244 = vsub.s32 %v241, %v243
    %v245 = vrot.slane %v237, %v244
    %v247 = vunpack.c.l.s4 1934713408
    %v248 = vunpack.c.0.s8 %v247
    %v249 = vlaneseq
    %v250 = vshrl.u32 %v249, 7
    %v251 = vsub.s32 %v248, %v250
    %v252 = vrot.slane %v238, %v251
    %v253 = vcombine.low %v220, %v236
    %v254 = vcombine.high %v220, %v236
    %v256 = vunpack.c.l.s4 1934713408
    %v257 = vunpack.c.0.s8 %v256
    %v258 = vlaneseq
    %v259 = vshrl.u32 %v258, 7
    %v260 = vsub.s32 %v257, %v259
    %v261 = vrot.slane %v253, %v260
    %v263 = vunpack.c.l.s4 1934713408
    %v264 = vunpack.c.0.s8 %v263
    %v265 = vlaneseq
    %v266 = vshrl.u32 %v265, 7
    %v267 = vsub.s32 %v264, %v266
    %v268 = vrot.slane %v254, %v267
    %v269 = vcombine.high %v245, 0.0
    %v270 = vcombine.high %v252, 0.0
    %v271 = vcombine.high %v261, 0.0
    %v272 = vcombine.high %v268, 0.0
    %v273 = vcombine.low %v184, %v196
    %v274 = vcombine.high %v184, %v196
    %v276 = vunpack.c.l.s4 1983009808
    %v277 = vunpack.c.0.s8 %v276
    %v278 = vlaneseq
    %v279 = vshrl.u32 %v278, 7
    %v280 = vsub.s32 %v277, %v279
    %v281 = vrot.slane %v273, %v280
    %v283 = vunpack.c.l.s4 1983009808
    %v284 = vunpack.c.0.s8 %v283
    %v285 = vlaneseq
    %v286 = vshrl.u32 %v285, 7
    %v287 = vsub.s32 %v284, %v286
    %v288 = vrot.slane %v274, %v287
    %v289 = vcombine.low %v190, %v202
    %v290 = vcombine.high %v190, %v202
    %v292 = vunpack.c.l.s4 1983009808
    %v293 = vunpack.c.0.s8 %v292
    %v294 = vlaneseq
    %v295 = vshrl.u32 %v294, 7
    %v296 = vsub.s32 %v293, %v295
    %v297 = vrot.slane %v289, %v296
    %v299 = vunpack.c.l.s4 1983009808
    %v300 = vunpack.c.0.s8 %v299
    %v301 = vlaneseq
    %v302 = vshrl.u32 %v301, 7
    %v303 = vsub.s32 %v300, %v302
    %v304 = vrot.slane %v290, %v303
    %v305 = vcombine.low %v281, %v297
    %v306 = vcombine.high %v281, %v297
    %v308 = vunpack.c.l.s4 1934713408
    %v309 = vunpack.c.0.s8 %v308
    %v310 = vlaneseq
    %v311 = vshrl.u32 %v310, 7
    %v312 = vsub.s32 %v309, %v311
    %v313 = vrot.slane %v305, %v312
    %v315 = vunpack.c.l.s4 1934713408
    %v316 = vunpack.c.0.s8 %v315
    %v317 = vlaneseq
    %v318 = vshrl.u32 %v317, 7
    %v319 = vsub.s32 %v316, %v318
    %v320 = vrot.slane %v306, %v319
    %v321 = vcombine.low %v288, %v304
    %v322 = vcombine.high %v288, %v304
    %v324 = vunpack.c.l.s4 1934713408
    %v325 = vunpack.c.0.s8 %v324
    %v326 = vlaneseq
    %v327 = vshrl.u32 %v326, 7
    %v328 = vsub.s32 %v325, %v327
    %v329 = vrot.slane %v321, %v328
    %v331 = vunpack.c.l.s4 1934713408
    %v332 = vunpack.c.0.s8 %v331
    %v333 = vlaneseq
    %v334 = vshrl.u32 %v333, 7
    %v335 = vsub.s32 %v332, %v334
    %v336 = vrot.slane %v322, %v335
    %v337 = vcombine.high %v313, 0.0
    %v338 = vcombine.high %v320, 0.0
    %v339 = vcombine.high %v329, 0.0
    %v340 = vcombine.high %v336, 0.0
    %v341 = vcombine.low %v245, %v252
    %v343 = vunpack.c.l.s4 1983009808
    %v344 = vunpack.c.0.s8 %v343
    %v345 = vlaneseq
    %v346 = vshrl.u32 %v345, 7
    %v347 = vsub.s32 %v344, %v346
    %v348 = vrot.slane %v341, %v347
    %v349 = vcombine.low %v269, %v270
    %v351 = vunpack.c.l.s4 1983009808
    %v352 = vunpack.c.0.s8 %v351
    %v353 = vlaneseq
    %v354 = vshrl.u32 %v353, 7
    %v355 = vsub.s32 %v352, %v354
    %v356 = vrot.slane %v349, %v355
    %v357 = vcombine.low %v261, %v268
    %v359 = vunpack.c.l.s4 1983009808
    %v360 = vunpack.c.0.s8 %v359
    %v361 = vlaneseq
    %v362 = vshrl.u32 %v361, 7
    %v363 = vsub.s32 %v360, %v362
    %v364 = vrot.slane %v357, %v363
    %v365 = vcombine.low %v271, %v272
    %v367 = vunpack.c.l.s4 1983009808
    %v368 = vunpack.c.0.s8 %v367
    %v369 = vlaneseq
    %v370 = vshrl.u32 %v369, 7
    %v371 = vsub.s32 %v368, %v370
    %v372 = vrot.slane %v365, %v371
    %v373 = vcombine.low %v348, %v356
    %v374 = vcombine.high %v348, %v356
    %v376 = vunpack.c.l.s4 1934713408
    %v377 = vunpack.c.0.s8 %v376
    %v378 = vlaneseq
    %v379 = vshrl.u32 %v378, 7
    %v380 = vsub.s32 %v377, %v379
    %v381 = vrot.slane %v373, %v380
    %v383 = vunpack.c.l.s4 1934713408
    %v384 = vunpack.c.0.s8 %v383
    %v385 = vlaneseq
    %v386 = vshrl.u32 %v385, 7
    %v387 = vsub.s32 %v384, %v386
    %v388 = vrot.slane %v374, %v387
    %v389 = vcombine.low %v364, %v372
    %v390 = vcombine.high %v364, %v372
    %v392 = vunpack.c.l.s4 1934713408
    %v393 = vunpack.c.0.s8 %v392
    %v394 = vlaneseq
    %v395 = vshrl.u32 %v394, 7
    %v396 = vsub.s32 %v393, %v395
    %v397 = vrot.slane %v389, %v396
    %v399 = vunpack.c.l.s4 1934713408
    %v400 = vunpack.c.0.s8 %v399
    %v401 = vlaneseq
    %v402 = vshrl.u32 %v401, 7
    %v403 = vsub.s32 %v400, %v402
    %v404 = vrot.slane %v390, %v403
    %v405 = vcombine.low %v381, %v397
    %v406 = vcombine.high %v381, %v397
    %v407 = vcombine.low %v388, %v404
    %v408 = vcombine.high %v388, %v404
    %v409 = vcombine.low %v313, %v320
    %v411 = vunpack.c.l.s4 1983009808
    %v412 = vunpack.c.0.s8 %v411
    %v413 = vlaneseq
    %v414 = vshrl.u32 %v413, 7
    %v415 = vsub.s32 %v412, %v414
    %v416 = vrot.slane %v409, %v415
    %v417 = vcombine.low %v337, %v338
    %v419 = vunpack.c.l.s4 1983009808
    %v420 = vunpack.c.0.s8 %v419
    %v421 = vlaneseq
    %v422 = vshrl.u32 %v421, 7
    %v423 = vsub.s32 %v420, %v422
    %v424 = vrot.slane %v417, %v423
    %v425 = vcombine.low %v329, %v336
    %v427 = vunpack.c.l.s4 1983009808
    %v428 = vunpack.c.0.s8 %v427
    %v429 = vlaneseq
    %v430 = vshrl.u32 %v429, 7
    %v431 = vsub.s32 %v428, %v430
    %v432 = vrot.slane %v425, %v431
    %v433 = vcombine.low %v339, %v340
    %v435 = vunpack.c.l.s4 1983009808
    %v436 = vunpack.c.0.s8 %v435
    %v437 = vlaneseq
    %v438 = vshrl.u32 %v437, 7
    %v439 = vsub.s32 %v436, %v438
    %v440 = vrot.slane %v433, %v439
    %v441 = vcombine.low %v416, %v424
    %v442 = vcombine.high %v416, %v424
    %v444 = vunpack.c.l.s4 1934713408
    %v445 = vunpack.c.0.s8 %v444
    %v446 = vlaneseq
    %v447 = vshrl.u32 %v446, 7
    %v448 = vsub.s32 %v445, %v447
    %v449 = vrot.slane %v441, %v448
    %v451 = vunpack.c.l.s4 1934713408
    %v452 = vunpack.c.0.s8 %v451
    %v453 = vlaneseq
    %v454 = vshrl.u32 %v453, 7
    %v455 = vsub.s32 %v452, %v454
    %v456 = vrot.slane %v442, %v455
    %v457 = vcombine.low %v432, %v440
    %v458 = vcombine.high %v432, %v440
    %v460 = vunpack.c.l.s4 1934713408
    %v461 = vunpack.c.0.s8 %v460
    %v462 = vlaneseq
    %v463 = vshrl.u32 %v462, 7
    %v464 = vsub.s32 %v461, %v463
    %v465 = vrot.slane %v457, %v464
    %v467 = vunpack.c.l.s4 1934713408
    %v468 = vunpack.c.0.s8 %v467
    %v469 = vlaneseq
    %v470 = vshrl.u32 %v469, 7
    %v471 = vsub.s32 %v468, %v470
    %v472 = vrot.slane %v458, %v471
    %v473 = vcombine.low %v449, %v465
    %v474 = vcombine.high %v449, %v465
    %v475 = vcombine.low %v456, %v472
    %v476 = vcombine.high %v456, %v472
    %v477 = vpack.c.bf16 %v473, %v405
    %v478 = vpack.c.bf16 %v474, %v406
    %v479 = vpack.c.bf16 %v475, %v407
    %v480 = vpack.c.bf16 %v476, %v408
    %483 = vrot.lane.b32.xlu0 %v177, 120
    %v484 = vpop.permute.xlu0 %483
    %485 = vrot.lane.b32.xlu0 %v180, 120
    %v486 = vpop.permute.xlu0 %485
    %487 = vrot.lane.b32.xlu0 %v177, 112
    %v488 = vpop.permute.xlu0 %487
    %489 = vrot.lane.b32.xlu0 %v180, 112
    %v490 = vpop.permute.xlu0 %489
    %491 = vrot.lane.b32.xlu0 %v177, 104
    %v492 = vpop.permute.xlu0 %491
    %493 = vrot.lane.b32.xlu0 %v180, 104
    %v494 = vpop.permute.xlu0 %493
    %495 = vrot.lane.b32.xlu0 %v177, 96
    %v496 = vpop.permute.xlu0 %495
    %497 = vrot.lane.b32.xlu0 %v180, 96
    %v498 = vpop.permute.xlu0 %497
    %499 = vrot.lane.b32.xlu0 %v484, 96
    %v500 = vpop.permute.xlu0 %499
    %501 = vrot.lane.b32.xlu0 %v486, 96
    %v502 = vpop.permute.xlu0 %501
    %503 = vrot.lane.b32.xlu0 %v488, 96
    %v504 = vpop.permute.xlu0 %503
    %505 = vrot.lane.b32.xlu0 %v490, 96
    %v506 = vpop.permute.xlu0 %505
    %507 = vrot.lane.b32.xlu0 %v492, 96
    %v508 = vpop.permute.xlu0 %507
    %509 = vrot.lane.b32.xlu0 %v494, 96
    %v510 = vpop.permute.xlu0 %509
    %v519 = vcombine.low %v496, %v504
    %v520 = vcombine.high %v496, %v504
    %v522 = vunpack.c.l.s4 1983009808
    %v523 = vunpack.c.0.s8 %v522
    %v524 = vlaneseq
    %v525 = vshrl.u32 %v524, 7
    %v526 = vsub.s32 %v523, %v525
    %v527 = vrot.slane %v519, %v526
    %v529 = vunpack.c.l.s4 1983009808
    %v530 = vunpack.c.0.s8 %v529
    %v531 = vlaneseq
    %v532 = vshrl.u32 %v531, 7
    %v533 = vsub.s32 %v530, %v532
    %v534 = vrot.slane %v520, %v533
    %v535 = vcombine.low %v500, %v508
    %v536 = vcombine.high %v500, %v508
    %v538 = vunpack.c.l.s4 1983009808
    %v539 = vunpack.c.0.s8 %v538
    %v540 = vlaneseq
    %v541 = vshrl.u32 %v540, 7
    %v542 = vsub.s32 %v539, %v541
    %v543 = vrot.slane %v535, %v542
    %v545 = vunpack.c.l.s4 1983009808
    %v546 = vunpack.c.0.s8 %v545
    %v547 = vlaneseq
    %v548 = vshrl.u32 %v547, 7
    %v549 = vsub.s32 %v546, %v548
    %v550 = vrot.slane %v536, %v549
    %v551 = vcombine.low %v527, %v543
    %v552 = vcombine.high %v527, %v543
    %v554 = vunpack.c.l.s4 1934713408
    %v555 = vunpack.c.0.s8 %v554
    %v556 = vlaneseq
    %v557 = vshrl.u32 %v556, 7
    %v558 = vsub.s32 %v555, %v557
    %v559 = vrot.slane %v551, %v558
    %v561 = vunpack.c.l.s4 1934713408
    %v562 = vunpack.c.0.s8 %v561
    %v563 = vlaneseq
    %v564 = vshrl.u32 %v563, 7
    %v565 = vsub.s32 %v562, %v564
    %v566 = vrot.slane %v552, %v565
    %v567 = vcombine.low %v534, %v550
    %v568 = vcombine.high %v534, %v550
    %v570 = vunpack.c.l.s4 1934713408
    %v571 = vunpack.c.0.s8 %v570
    %v572 = vlaneseq
    %v573 = vshrl.u32 %v572, 7
    %v574 = vsub.s32 %v571, %v573
    %v575 = vrot.slane %v567, %v574
    %v577 = vunpack.c.l.s4 1934713408
    %v578 = vunpack.c.0.s8 %v577
    %v579 = vlaneseq
    %v580 = vshrl.u32 %v579, 7
    %v581 = vsub.s32 %v578, %v580
    %v582 = vrot.slane %v568, %v581
    %v583 = vcombine.high %v559, 0.0
    %v584 = vcombine.high %v566, 0.0
    %v585 = vcombine.high %v575, 0.0
    %v586 = vcombine.high %v582, 0.0
    %v587 = vcombine.low %v498, %v506
    %v588 = vcombine.high %v498, %v506
    %v590 = vunpack.c.l.s4 1983009808
    %v591 = vunpack.c.0.s8 %v590
    %v592 = vlaneseq
    %v593 = vshrl.u32 %v592, 7
    %v594 = vsub.s32 %v591, %v593
    %v595 = vrot.slane %v587, %v594
    %v597 = vunpack.c.l.s4 1983009808
    %v598 = vunpack.c.0.s8 %v597
    %v599 = vlaneseq
    %v600 = vshrl.u32 %v599, 7
    %v601 = vsub.s32 %v598, %v600
    %v602 = vrot.slane %v588, %v601
    %v603 = vcombine.low %v502, %v510
    %v604 = vcombine.high %v502, %v510
    %v606 = vunpack.c.l.s4 1983009808
    %v607 = vunpack.c.0.s8 %v606
    %v608 = vlaneseq
    %v609 = vshrl.u32 %v608, 7
    %v610 = vsub.s32 %v607, %v609
    %v611 = vrot.slane %v603, %v610
    %v613 = vunpack.c.l.s4 1983009808
    %v614 = vunpack.c.0.s8 %v613
    %v615 = vlaneseq
    %v616 = vshrl.u32 %v615, 7
    %v617 = vsub.s32 %v614, %v616
    %v618 = vrot.slane %v604, %v617
    %v619 = vcombine.low %v595, %v611
    %v620 = vcombine.high %v595, %v611
    %v622 = vunpack.c.l.s4 1934713408
    %v623 = vunpack.c.0.s8 %v622
    %v624 = vlaneseq
    %v625 = vshrl.u32 %v624, 7
    %v626 = vsub.s32 %v623, %v625
    %v627 = vrot.slane %v619, %v626
    %v629 = vunpack.c.l.s4 1934713408
    %v630 = vunpack.c.0.s8 %v629
    %v631 = vlaneseq
    %v632 = vshrl.u32 %v631, 7
    %v633 = vsub.s32 %v630, %v632
    %v634 = vrot.slane %v620, %v633
    %v635 = vcombine.low %v602, %v618
    %v636 = vcombine.high %v602, %v618
    %v638 = vunpack.c.l.s4 1934713408
    %v639 = vunpack.c.0.s8 %v638
    %v640 = vlaneseq
    %v641 = vshrl.u32 %v640, 7
    %v642 = vsub.s32 %v639, %v641
    %v643 = vrot.slane %v635, %v642
    %v645 = vunpack.c.l.s4 1934713408
    %v646 = vunpack.c.0.s8 %v645
    %v647 = vlaneseq
    %v648 = vshrl.u32 %v647, 7
    %v649 = vsub.s32 %v646, %v648
    %v650 = vrot.slane %v636, %v649
    %v651 = vcombine.high %v627, 0.0
    %v652 = vcombine.high %v634, 0.0
    %v653 = vcombine.high %v643, 0.0
    %v654 = vcombine.high %v650, 0.0
    %v655 = vcombine.low %v559, %v566
    %v657 = vunpack.c.l.s4 1983009808
    %v658 = vunpack.c.0.s8 %v657
    %v659 = vlaneseq
    %v660 = vshrl.u32 %v659, 7
    %v661 = vsub.s32 %v658, %v660
    %v662 = vrot.slane %v655, %v661
    %v663 = vcombine.low %v583, %v584
    %v665 = vunpack.c.l.s4 1983009808
    %v666 = vunpack.c.0.s8 %v665
    %v667 = vlaneseq
    %v668 = vshrl.u32 %v667, 7
    %v669 = vsub.s32 %v666, %v668
    %v670 = vrot.slane %v663, %v669
    %v671 = vcombine.low %v575, %v582
    %v673 = vunpack.c.l.s4 1983009808
    %v674 = vunpack.c.0.s8 %v673
    %v675 = vlaneseq
    %v676 = vshrl.u32 %v675, 7
    %v677 = vsub.s32 %v674, %v676
    %v678 = vrot.slane %v671, %v677
    %v679 = vcombine.low %v585, %v586
    %v681 = vunpack.c.l.s4 1983009808
    %v682 = vunpack.c.0.s8 %v681
    %v683 = vlaneseq
    %v684 = vshrl.u32 %v683, 7
    %v685 = vsub.s32 %v682, %v684
    %v686 = vrot.slane %v679, %v685
    %v687 = vcombine.low %v662, %v670
    %v688 = vcombine.high %v662, %v670
    %v690 = vunpack.c.l.s4 1934713408
    %v691 = vunpack.c.0.s8 %v690
    %v692 = vlaneseq
    %v693 = vshrl.u32 %v692, 7
    %v694 = vsub.s32 %v691, %v693
    %v695 = vrot.slane %v687, %v694
    %v697 = vunpack.c.l.s4 1934713408
    %v698 = vunpack.c.0.s8 %v697
    %v699 = vlaneseq
    %v700 = vshrl.u32 %v699, 7
    %v701 = vsub.s32 %v698, %v700
    %v702 = vrot.slane %v688, %v701
    %v703 = vcombine.low %v678, %v686
    %v704 = vcombine.high %v678, %v686
    %v706 = vunpack.c.l.s4 1934713408
    %v707 = vunpack.c.0.s8 %v706
    %v708 = vlaneseq
    %v709 = vshrl.u32 %v708, 7
    %v710 = vsub.s32 %v707, %v709
    %v711 = vrot.slane %v703, %v710
    %v713 = vunpack.c.l.s4 1934713408
    %v714 = vunpack.c.0.s8 %v713
    %v715 = vlaneseq
    %v716 = vshrl.u32 %v715, 7
    %v717 = vsub.s32 %v714, %v716
    %v718 = vrot.slane %v704, %v717
    %v719 = vcombine.low %v695, %v711
    %v720 = vcombine.high %v695, %v711
    %v721 = vcombine.low %v702, %v718
    %v722 = vcombine.high %v702, %v718
    %v723 = vcombine.low %v627, %v634
    %v725 = vunpack.c.l.s4 1983009808
    %v726 = vunpack.c.0.s8 %v725
    %v727 = vlaneseq
    %v728 = vshrl.u32 %v727, 7
    %v729 = vsub.s32 %v726, %v728
    %v730 = vrot.slane %v723, %v729
    %v731 = vcombine.low %v651, %v652
    %v733 = vunpack.c.l.s4 1983009808
    %v734 = vunpack.c.0.s8 %v733
    %v735 = vlaneseq
    %v736 = vshrl.u32 %v735, 7
    %v737 = vsub.s32 %v734, %v736
    %v738 = vrot.slane %v731, %v737
    %v739 = vcombine.low %v643, %v650
    %v741 = vunpack.c.l.s4 1983009808
    %v742 = vunpack.c.0.s8 %v741
    %v743 = vlaneseq
    %v744 = vshrl.u32 %v743, 7
    %v745 = vsub.s32 %v742, %v744
    %v746 = vrot.slane %v739, %v745
    %v747 = vcombine.low %v653, %v654
    %v749 = vunpack.c.l.s4 1983009808
    %v750 = vunpack.c.0.s8 %v749
    %v751 = vlaneseq
    %v752 = vshrl.u32 %v751, 7
    %v753 = vsub.s32 %v750, %v752
    %v754 = vrot.slane %v747, %v753
    %v755 = vcombine.low %v730, %v738
    %v756 = vcombine.high %v730, %v738
    %v758 = vunpack.c.l.s4 1934713408
    %v759 = vunpack.c.0.s8 %v758
    %v760 = vlaneseq
    %v761 = vshrl.u32 %v760, 7
    %v762 = vsub.s32 %v759, %v761
    %v763 = vrot.slane %v755, %v762
    %v765 = vunpack.c.l.s4 1934713408
    %v766 = vunpack.c.0.s8 %v765
    %v767 = vlaneseq
    %v768 = vshrl.u32 %v767, 7
    %v769 = vsub.s32 %v766, %v768
    %v770 = vrot.slane %v756, %v769
    %v771 = vcombine.low %v746, %v754
    %v772 = vcombine.high %v746, %v754
    %v774 = vunpack.c.l.s4 1934713408
    %v775 = vunpack.c.0.s8 %v774
    %v776 = vlaneseq
    %v777 = vshrl.u32 %v776, 7
    %v778 = vsub.s32 %v775, %v777
    %v779 = vrot.slane %v771, %v778
    %v781 = vunpack.c.l.s4 1934713408
    %v782 = vunpack.c.0.s8 %v781
    %v783 = vlaneseq
    %v784 = vshrl.u32 %v783, 7
    %v785 = vsub.s32 %v782, %v784
    %v786 = vrot.slane %v772, %v785
    %v787 = vcombine.low %v763, %v779
    %v788 = vcombine.high %v763, %v779
    %v789 = vcombine.low %v770, %v786
    %v790 = vcombine.high %v770, %v786
    %v791 = vpack.c.bf16 %v787, %v719
    %v792 = vpack.c.bf16 %v788, %v720
    %v793 = vpack.c.bf16 %v789, %v721
    %v794 = vpack.c.bf16 %v790, %v722
    %795 = vrot.lane.b32.xlu0 %v177, 64
    %v796 = vpop.permute.xlu0 %795
    %797 = vrot.lane.b32.xlu0 %v180, 64
    %v798 = vpop.permute.xlu0 %797
    %799 = vrot.lane.b32.xlu0 %v484, 64
    %v800 = vpop.permute.xlu0 %799
    %801 = vrot.lane.b32.xlu0 %v486, 64
    %v802 = vpop.permute.xlu0 %801
    %803 = vrot.lane.b32.xlu0 %v488, 64
    %v804 = vpop.permute.xlu0 %803
    %805 = vrot.lane.b32.xlu0 %v490, 64
    %v806 = vpop.permute.xlu0 %805
    %807 = vrot.lane.b32.xlu0 %v492, 64
    %v808 = vpop.permute.xlu0 %807
    %809 = vrot.lane.b32.xlu0 %v494, 64
    %v810 = vpop.permute.xlu0 %809
    %v819 = vcombine.low %v796, %v804
    %v820 = vcombine.high %v796, %v804
    %v822 = vunpack.c.l.s4 1983009808
    %v823 = vunpack.c.0.s8 %v822
    %v824 = vlaneseq
    %v825 = vshrl.u32 %v824, 7
    %v826 = vsub.s32 %v823, %v825
    %v827 = vrot.slane %v819, %v826
    %v829 = vunpack.c.l.s4 1983009808
    %v830 = vunpack.c.0.s8 %v829
    %v831 = vlaneseq
    %v832 = vshrl.u32 %v831, 7
    %v833 = vsub.s32 %v830, %v832
    %v834 = vrot.slane %v820, %v833
    %v835 = vcombine.low %v800, %v808
    %v836 = vcombine.high %v800, %v808
    %v838 = vunpack.c.l.s4 1983009808
    %v839 = vunpack.c.0.s8 %v838
    %v840 = vlaneseq
    %v841 = vshrl.u32 %v840, 7
    %v842 = vsub.s32 %v839, %v841
    %v843 = vrot.slane %v835, %v842
    %v845 = vunpack.c.l.s4 1983009808
    %v846 = vunpack.c.0.s8 %v845
    %v847 = vlaneseq
    %v848 = vshrl.u32 %v847, 7
    %v849 = vsub.s32 %v846, %v848
    %v850 = vrot.slane %v836, %v849
    %v851 = vcombine.low %v827, %v843
    %v852 = vcombine.high %v827, %v843
    %v854 = vunpack.c.l.s4 1934713408
    %v855 = vunpack.c.0.s8 %v854
    %v856 = vlaneseq
    %v857 = vshrl.u32 %v856, 7
    %v858 = vsub.s32 %v855, %v857
    %v859 = vrot.slane %v851, %v858
    %v861 = vunpack.c.l.s4 1934713408
    %v862 = vunpack.c.0.s8 %v861
    %v863 = vlaneseq
    %v864 = vshrl.u32 %v863, 7
    %v865 = vsub.s32 %v862, %v864
    %v866 = vrot.slane %v852, %v865
    %v867 = vcombine.low %v834, %v850
    %v868 = vcombine.high %v834, %v850
    %v870 = vunpack.c.l.s4 1934713408
    %v871 = vunpack.c.0.s8 %v870
    %v872 = vlaneseq
    %v873 = vshrl.u32 %v872, 7
    %v874 = vsub.s32 %v871, %v873
    %v875 = vrot.slane %v867, %v874
    %v877 = vunpack.c.l.s4 1934713408
    %v878 = vunpack.c.0.s8 %v877
    %v879 = vlaneseq
    %v880 = vshrl.u32 %v879, 7
    %v881 = vsub.s32 %v878, %v880
    %v882 = vrot.slane %v868, %v881
    %v883 = vcombine.high %v859, 0.0
    %v884 = vcombine.high %v866, 0.0
    %v885 = vcombine.high %v875, 0.0
    %v886 = vcombine.high %v882, 0.0
    %v887 = vcombine.low %v798, %v806
    %v888 = vcombine.high %v798, %v806
    %v890 = vunpack.c.l.s4 1983009808
    %v891 = vunpack.c.0.s8 %v890
    %v892 = vlaneseq
    %v893 = vshrl.u32 %v892, 7
    %v894 = vsub.s32 %v891, %v893
    %v895 = vrot.slane %v887, %v894
    %v897 = vunpack.c.l.s4 1983009808
    %v898 = vunpack.c.0.s8 %v897
    %v899 = vlaneseq
    %v900 = vshrl.u32 %v899, 7
    %v901 = vsub.s32 %v898, %v900
    %v902 = vrot.slane %v888, %v901
    %v903 = vcombine.low %v802, %v810
    %v904 = vcombine.high %v802, %v810
    %v906 = vunpack.c.l.s4 1983009808
    %v907 = vunpack.c.0.s8 %v906
    %v908 = vlaneseq
    %v909 = vshrl.u32 %v908, 7
    %v910 = vsub.s32 %v907, %v909
    %v911 = vrot.slane %v903, %v910
    %v913 = vunpack.c.l.s4 1983009808
    %v914 = vunpack.c.0.s8 %v913
    %v915 = vlaneseq
    %v916 = vshrl.u32 %v915, 7
    %v917 = vsub.s32 %v914, %v916
    %v918 = vrot.slane %v904, %v917
    %v919 = vcombine.low %v895, %v911
    %v920 = vcombine.high %v895, %v911
    %v922 = vunpack.c.l.s4 1934713408
    %v923 = vunpack.c.0.s8 %v922
    %v924 = vlaneseq
    %v925 = vshrl.u32 %v924, 7
    %v926 = vsub.s32 %v923, %v925
    %v927 = vrot.slane %v919, %v926
    %v929 = vunpack.c.l.s4 1934713408
    %v930 = vunpack.c.0.s8 %v929
    %v931 = vlaneseq
    %v932 = vshrl.u32 %v931, 7
    %v933 = vsub.s32 %v930, %v932
    %v934 = vrot.slane %v920, %v933
    %v935 = vcombine.low %v902, %v918
    %v936 = vcombine.high %v902, %v918
    %v938 = vunpack.c.l.s4 1934713408
    %v939 = vunpack.c.0.s8 %v938
    %v940 = vlaneseq
    %v941 = vshrl.u32 %v940, 7
    %v942 = vsub.s32 %v939, %v941
    %v943 = vrot.slane %v935, %v942
    %v945 = vunpack.c.l.s4 1934713408
    %v946 = vunpack.c.0.s8 %v945
    %v947 = vlaneseq
    %v948 = vshrl.u32 %v947, 7
    %v949 = vsub.s32 %v946, %v948
    %v950 = vrot.slane %v936, %v949
    %v951 = vcombine.high %v927, 0.0
    %v952 = vcombine.high %v934, 0.0
    %v953 = vcombine.high %v943, 0.0
    %v954 = vcombine.high %v950, 0.0
    %v955 = vcombine.low %v859, %v866
    %v957 = vunpack.c.l.s4 1983009808
    %v958 = vunpack.c.0.s8 %v957
    %v959 = vlaneseq
    %v960 = vshrl.u32 %v959, 7
    %v961 = vsub.s32 %v958, %v960
    %v962 = vrot.slane %v955, %v961
    %v963 = vcombine.low %v883, %v884
    %v965 = vunpack.c.l.s4 1983009808
    %v966 = vunpack.c.0.s8 %v965
    %v967 = vlaneseq
    %v968 = vshrl.u32 %v967, 7
    %v969 = vsub.s32 %v966, %v968
    %v970 = vrot.slane %v963, %v969
    %v971 = vcombine.low %v875, %v882
    %v973 = vunpack.c.l.s4 1983009808
    %v974 = vunpack.c.0.s8 %v973
    %v975 = vlaneseq
    %v976 = vshrl.u32 %v975, 7
    %v977 = vsub.s32 %v974, %v976
    %v978 = vrot.slane %v971, %v977
    %v979 = vcombine.low %v885, %v886
    %v981 = vunpack.c.l.s4 1983009808
    %v982 = vunpack.c.0.s8 %v981
    %v983 = vlaneseq
    %v984 = vshrl.u32 %v983, 7
    %v985 = vsub.s32 %v982, %v984
    %v986 = vrot.slane %v979, %v985
    %v987 = vcombine.low %v962, %v970
    %v988 = vcombine.high %v962, %v970
    %v990 = vunpack.c.l.s4 1934713408
    %v991 = vunpack.c.0.s8 %v990
    %v992 = vlaneseq
    %v993 = vshrl.u32 %v992, 7
    %v994 = vsub.s32 %v991, %v993
    %v995 = vrot.slane %v987, %v994
    %v997 = vunpack.c.l.s4 1934713408
    %v998 = vunpack.c.0.s8 %v997
    %v999 = vlaneseq
    %v1000 = vshrl.u32 %v999, 7
    %v1001 = vsub.s32 %v998, %v1000
    %v1002 = vrot.slane %v988, %v1001
    %v1003 = vcombine.low %v978, %v986
    %v1004 = vcombine.high %v978, %v986
    %v1006 = vunpack.c.l.s4 1934713408
    %v1007 = vunpack.c.0.s8 %v1006
    %v1008 = vlaneseq
    %v1009 = vshrl.u32 %v1008, 7
    %v1010 = vsub.s32 %v1007, %v1009
    %v1011 = vrot.slane %v1003, %v1010
    %v1013 = vunpack.c.l.s4 1934713408
    %v1014 = vunpack.c.0.s8 %v1013
    %v1015 = vlaneseq
    %v1016 = vshrl.u32 %v1015, 7
    %v1017 = vsub.s32 %v1014, %v1016
    %v1018 = vrot.slane %v1004, %v1017
    %v1019 = vcombine.low %v995, %v1011
    %v1020 = vcombine.high %v995, %v1011
    %v1021 = vcombine.low %v1002, %v1018
    %v1022 = vcombine.high %v1002, %v1018
    %v1023 = vcombine.low %v927, %v934
    %v1025 = vunpack.c.l.s4 1983009808
    %v1026 = vunpack.c.0.s8 %v1025
    %v1027 = vlaneseq
    %v1028 = vshrl.u32 %v1027, 7
    %v1029 = vsub.s32 %v1026, %v1028
    %v1030 = vrot.slane %v1023, %v1029
    %v1031 = vcombine.low %v951, %v952
    %v1033 = vunpack.c.l.s4 1983009808
    %v1034 = vunpack.c.0.s8 %v1033
    %v1035 = vlaneseq
    %v1036 = vshrl.u32 %v1035, 7
    %v1037 = vsub.s32 %v1034, %v1036
    %v1038 = vrot.slane %v1031, %v1037
    %v1039 = vcombine.low %v943, %v950
    %v1041 = vunpack.c.l.s4 1983009808
    %v1042 = vunpack.c.0.s8 %v1041
    %v1043 = vlaneseq
    %v1044 = vshrl.u32 %v1043, 7
    %v1045 = vsub.s32 %v1042, %v1044
    %v1046 = vrot.slane %v1039, %v1045
    %v1047 = vcombine.low %v953, %v954
    %v1049 = vunpack.c.l.s4 1983009808
    %v1050 = vunpack.c.0.s8 %v1049
    %v1051 = vlaneseq
    %v1052 = vshrl.u32 %v1051, 7
    %v1053 = vsub.s32 %v1050, %v1052
    %v1054 = vrot.slane %v1047, %v1053
    %v1055 = vcombine.low %v1030, %v1038
    %v1056 = vcombine.high %v1030, %v1038
    %v1058 = vunpack.c.l.s4 1934713408
    %v1059 = vunpack.c.0.s8 %v1058
    %v1060 = vlaneseq
    %v1061 = vshrl.u32 %v1060, 7
    %v1062 = vsub.s32 %v1059, %v1061
    %v1063 = vrot.slane %v1055, %v1062
    %v1065 = vunpack.c.l.s4 1934713408
    %v1066 = vunpack.c.0.s8 %v1065
    %v1067 = vlaneseq
    %v1068 = vshrl.u32 %v1067, 7
    %v1069 = vsub.s32 %v1066, %v1068
    %v1070 = vrot.slane %v1056, %v1069
    %v1071 = vcombine.low %v1046, %v1054
    %v1072 = vcombine.high %v1046, %v1054
    %v1074 = vunpack.c.l.s4 1934713408
    %v1075 = vunpack.c.0.s8 %v1074
    %v1076 = vlaneseq
    %v1077 = vshrl.u32 %v1076, 7
    %v1078 = vsub.s32 %v1075, %v1077
    %v1079 = vrot.slane %v1071, %v1078
    %v1081 = vunpack.c.l.s4 1934713408
    %v1082 = vunpack.c.0.s8 %v1081
    %v1083 = vlaneseq
    %v1084 = vshrl.u32 %v1083, 7
    %v1085 = vsub.s32 %v1082, %v1084
    %v1086 = vrot.slane %v1072, %v1085
    %v1087 = vcombine.low %v1063, %v1079
    %v1088 = vcombine.high %v1063, %v1079
    %v1089 = vcombine.low %v1070, %v1086
    %v1090 = vcombine.high %v1070, %v1086
    %v1091 = vpack.c.bf16 %v1087, %v1019
    %v1092 = vpack.c.bf16 %v1088, %v1020
    %v1093 = vpack.c.bf16 %v1089, %v1021
    %v1094 = vpack.c.bf16 %v1090, %v1022
    %vm1095 = vcmask 64512
    %v1097 = vsel %vm1095, %v477, 0
    %v1100 = vsel %vm1095, %v791, 0
    %1102 = vmatprep.subr.bf16.mxu0 0
    %1103 = vmatpush1.bf16.xpose.msra.mxu0 0
    %1104 = vmatprep.subr.bf16.mxu0 0
    %1105 = vmatpush1.bf16.xpose.msra.mxu0 0
    %1106 = vmatprep.subr.bf16.mxu0 0
    %1107 = vmatpush1.bf16.xpose.msra.mxu0 0
    %1108 = vmatprep.subr.bf16.mxu0 0
    %1109 = vmatpush1.bf16.xpose.msra.mxu0 0
    %1110 = vmatprep.subr.bf16.mxu0 0
    %1111 = vmatpush1.bf16.xpose.msra.mxu0 0
    %1112 = vmatprep.subr.bf16.mxu0 0
    %1113 = vmatpush1.bf16.xpose.msra.mxu0 0
    %1114 = vmatprep.subr.bf16.mxu0 0
    %1115 = vmatpush1.bf16.xpose.msra.mxu0 0
    %1116 = vmatprep.subr.bf16.mxu0 0
    %1117 = vmatpush1.bf16.xpose.msra.mxu0 %v1100
    %1118 = vmatprep.subr.bf16.mxu0 0
    %1119 = vmatpush2.bf16.xpose.msra.mxu0 0
    %1120 = vmatprep.subr.bf16.mxu0 0
    %1121 = vmatpush2.bf16.xpose.msra.mxu0 0
    %1122 = vmatprep.subr.bf16.mxu0 0
    %1123 = vmatpush2.bf16.xpose.msra.mxu0 0
    %1124 = vmatprep.subr.bf16.mxu0 0
    %1125 = vmatpush2.bf16.xpose.msra.mxu0 0
    %1126 = vmatprep.subr.bf16.mxu0 0
    %1127 = vmatpush2.bf16.xpose.msra.mxu0 0
    %1128 = vmatprep.subr.bf16.mxu0 0
    %1129 = vmatpush2.bf16.xpose.msra.mxu0 0
    %1130 = vmatprep.subr.bf16.mxu0 0
    %1131 = vmatpush2.bf16.xpose.msra.mxu0 0
    %1132 = vmatprep.subr.bf16.mxu0 0
    %1133 = vmatpush2.bf16.xpose.msra.mxu0 0
    %1134 = vmatprep.mubr.bf16.mxu0 0
    %1135 = vmatmul.mubr.bf16.gmra.mxu0 %v1097
    %v1136 = vpop.f32.mrf.mxu0
    %v1137 = vadd.f32 %v74, %v1136
    %v1138 = vpop.f32.mrf.mxu0
    %v1139 = vpop.f32.mrf.mxu0
    %v1140 = vadd.f32 %v75, %v1139
    %v1141 = vpop.f32.mrf.mxu0
    %1142 = vdwg.mxu0
    %v1144 = vsel %vm1095, %v478, 0
    %v1147 = vsel %vm1095, %v792, 0
    %1149 = vmatprep.subr.bf16.mxu0 0
    %1150 = vmatpush1.bf16.xpose.msra.mxu0 0
    %1151 = vmatprep.subr.bf16.mxu0 0
    %1152 = vmatpush1.bf16.xpose.msra.mxu0 0
    %1153 = vmatprep.subr.bf16.mxu0 0
    %1154 = vmatpush1.bf16.xpose.msra.mxu0 0
    %1155 = vmatprep.subr.bf16.mxu0 0
    %1156 = vmatpush1.bf16.xpose.msra.mxu0 0
    %1157 = vmatprep.subr.bf16.mxu0 0
    %1158 = vmatpush1.bf16.xpose.msra.mxu0 0
    %1159 = vmatprep.subr.bf16.mxu0 0
    %1160 = vmatpush1.bf16.xpose.msra.mxu0 0
    %1161 = vmatprep.subr.bf16.mxu0 0
    %1162 = vmatpush1.bf16.xpose.msra.mxu0 0
    %1163 = vmatprep.subr.bf16.mxu0 0
    %1164 = vmatpush1.bf16.xpose.msra.mxu0 %v1147
    %1165 = vmatprep.subr.bf16.mxu0 0
    %1166 = vmatpush2.bf16.xpose.msra.mxu0 0
    %1167 = vmatprep.subr.bf16.mxu0 0
    %1168 = vmatpush2.bf16.xpose.msra.mxu0 0
    %1169 = vmatprep.subr.bf16.mxu0 0
    %1170 = vmatpush2.bf16.xpose.msra.mxu0 0
    %1171 = vmatprep.subr.bf16.mxu0 0
    %1172 = vmatpush2.bf16.xpose.msra.mxu0 0
    %1173 = vmatprep.subr.bf16.mxu0 0
    %1174 = vmatpush2.bf16.xpose.msra.mxu0 0
    %1175 = vmatprep.subr.bf16.mxu0 0
    %1176 = vmatpush2.bf16.xpose.msra.mxu0 0
    %1177 = vmatprep.subr.bf16.mxu0 0
    %1178 = vmatpush2.bf16.xpose.msra.mxu0 0
    %1179 = vmatprep.subr.bf16.mxu0 0
    %1180 = vmatpush2.bf16.xpose.msra.mxu0 0
    %1181 = vmatprep.mubr.bf16.mxu0 0
    %1182 = vmatmul.mubr.bf16.gmra.mxu0 %v1144
    %v1183 = vpop.f32.mrf.mxu0
    %v1184 = vadd.f32 %v74, %v1183
    %v1185 = vpop.f32.mrf.mxu0
    %v1186 = vpop.f32.mrf.mxu0
    %v1187 = vadd.f32 %v75, %v1186
    %v1188 = vpop.f32.mrf.mxu0
    %1189 = vdwg.mxu0
    %v1191 = vsel %vm1095, %v479, 0
    %v1194 = vsel %vm1095, %v793, 0
    %1196 = vmatprep.subr.bf16.mxu0 0
    %1197 = vmatpush1.bf16.xpose.msra.mxu0 0
    %1198 = vmatprep.subr.bf16.mxu0 0
    %1199 = vmatpush1.bf16.xpose.msra.mxu0 0
    %1200 = vmatprep.subr.bf16.mxu0 0
    %1201 = vmatpush1.bf16.xpose.msra.mxu0 0
    %1202 = vmatprep.subr.bf16.mxu0 0
    %1203 = vmatpush1.bf16.xpose.msra.mxu0 0
    %1204 = vmatprep.subr.bf16.mxu0 0
    %1205 = vmatpush1.bf16.xpose.msra.mxu0 0
    %1206 = vmatprep.subr.bf16.mxu0 0
    %1207 = vmatpush1.bf16.xpose.msra.mxu0 0
    %1208 = vmatprep.subr.bf16.mxu0 0
    %1209 = vmatpush1.bf16.xpose.msra.mxu0 0
    %1210 = vmatprep.subr.bf16.mxu0 0
    %1211 = vmatpush1.bf16.xpose.msra.mxu0 %v1194
    %1212 = vmatprep.subr.bf16.mxu0 0
    %1213 = vmatpush2.bf16.xpose.msra.mxu0 0
    %1214 = vmatprep.subr.bf16.mxu0 0
    %1215 = vmatpush2.bf16.xpose.msra.mxu0 0
    %1216 = vmatprep.subr.bf16.mxu0 0
    %1217 = vmatpush2.bf16.xpose.msra.mxu0 0
    %1218 = vmatprep.subr.bf16.mxu0 0
    %1219 = vmatpush2.bf16.xpose.msra.mxu0 0
    %1220 = vmatprep.subr.bf16.mxu0 0
    %1221 = vmatpush2.bf16.xpose.msra.mxu0 0
    %1222 = vmatprep.subr.bf16.mxu0 0
    %1223 = vmatpush2.bf16.xpose.msra.mxu0 0
    %1224 = vmatprep.subr.bf16.mxu0 0
    %1225 = vmatpush2.bf16.xpose.msra.mxu0 0
    %1226 = vmatprep.subr.bf16.mxu0 0
    %1227 = vmatpush2.bf16.xpose.msra.mxu0 0
    %1228 = vmatprep.mubr.bf16.mxu0 0
    %1229 = vmatmul.mubr.bf16.gmra.mxu0 %v1191
    %v1230 = vpop.f32.mrf.mxu0
    %v1231 = vadd.f32 %v74, %v1230
    %v1232 = vpop.f32.mrf.mxu0
    %v1233 = vpop.f32.mrf.mxu0
    %v1234 = vadd.f32 %v75, %v1233
    %v1235 = vpop.f32.mrf.mxu0
    %1236 = vdwg.mxu0
    %v1238 = vsel %vm1095, %v480, 0
    %v1241 = vsel %vm1095, %v794, 0
    %1243 = vmatprep.subr.bf16.mxu0 0
    %1244 = vmatpush1.bf16.xpose.msra.mxu0 0
    %1245 = vmatprep.subr.bf16.mxu0 0
    %1246 = vmatpush1.bf16.xpose.msra.mxu0 0
    %1247 = vmatprep.subr.bf16.mxu0 0
    %1248 = vmatpush1.bf16.xpose.msra.mxu0 0
    %1249 = vmatprep.subr.bf16.mxu0 0
    %1250 = vmatpush1.bf16.xpose.msra.mxu0 0
    %1251 = vmatprep.subr.bf16.mxu0 0
    %1252 = vmatpush1.bf16.xpose.msra.mxu0 0
    %1253 = vmatprep.subr.bf16.mxu0 0
    %1254 = vmatpush1.bf16.xpose.msra.mxu0 0
    %1255 = vmatprep.subr.bf16.mxu0 0
    %1256 = vmatpush1.bf16.xpose.msra.mxu0 0
    %1257 = vmatprep.subr.bf16.mxu0 0
    %1258 = vmatpush1.bf16.xpose.msra.mxu0 %v1241
    %1259 = vmatprep.subr.bf16.mxu0 0
    %1260 = vmatpush2.bf16.xpose.msra.mxu0 0
    %1261 = vmatprep.subr.bf16.mxu0 0
    %1262 = vmatpush2.bf16.xpose.msra.mxu0 0
    %1263 = vmatprep.subr.bf16.mxu0 0
    %1264 = vmatpush2.bf16.xpose.msra.mxu0 0
    %1265 = vmatprep.subr.bf16.mxu0 0
    %1266 = vmatpush2.bf16.xpose.msra.mxu0 0
    %1267 = vmatprep.subr.bf16.mxu0 0
    %1268 = vmatpush2.bf16.xpose.msra.mxu0 0
    %1269 = vmatprep.subr.bf16.mxu0 0
    %1270 = vmatpush2.bf16.xpose.msra.mxu0 0
    %1271 = vmatprep.subr.bf16.mxu0 0
    %1272 = vmatpush2.bf16.xpose.msra.mxu0 0
    %1273 = vmatprep.subr.bf16.mxu0 0
    %1274 = vmatpush2.bf16.xpose.msra.mxu0 0
    %1275 = vmatprep.mubr.bf16.mxu0 0
    %1276 = vmatmul.mubr.bf16.gmra.mxu0 %v1238
    %v1277 = vpop.f32.mrf.mxu0
    %v1278 = vadd.f32 %v74, %v1277
    %v1279 = vpop.f32.mrf.mxu0
    %v1280 = vpop.f32.mrf.mxu0
    %v1281 = vadd.f32 %v75, %v1280
    %v1282 = vpop.f32.mrf.mxu0
    %1283 = vdwg.mxu0
    %vm1284 = vcmask 130048
    %v1285 = vsel %vm1284, %v1137, -inf
    %1286 = vmax.xlane.f32.xlu0 %v1285
    %v1287 = vpop.xlane.xlu0 %1286
    %v1288 = vsel %vm1284, %v1140, -inf
    %1289 = vmax.xlane.f32.xlu0 %v1288
    %v1290 = vpop.xlane.xlu0 %1289
    %v1291 = vsel %vm1284, %v1184, -inf
    %1292 = vmax.xlane.f32.xlu0 %v1291
    %v1293 = vpop.xlane.xlu0 %1292
    %v1294 = vsel %vm1284, %v1187, -inf
    %1295 = vmax.xlane.f32.xlu0 %v1294
    %v1296 = vpop.xlane.xlu0 %1295
    %v1297 = vsel %vm1284, %v1231, -inf
    %1298 = vmax.xlane.f32.xlu0 %v1297
    %v1299 = vpop.xlane.xlu0 %1298
    %v1300 = vsel %vm1284, %v1234, -inf
    %1301 = vmax.xlane.f32.xlu0 %v1300
    %v1302 = vpop.xlane.xlu0 %1301
    %v1303 = vsel %vm1284, %v1278, -inf
    %1304 = vmax.xlane.f32.xlu0 %v1303
    %v1305 = vpop.xlane.xlu0 %1304
    %v1306 = vsel %vm1284, %v1281, -inf
    %1307 = vmax.xlane.f32.xlu0 %v1306
    %v1308 = vpop.xlane.xlu0 %1307
    %v1309 = vsub.f32 %v1137, %v1287
    %v1310 = vsub.f32 %v1140, %v1290
    %v1311 = vsub.f32 %v1184, %v1293
    %v1312 = vsub.f32 %v1187, %v1296
    %v1313 = vsub.f32 %v1231, %v1299
    %v1314 = vsub.f32 %v1234, %v1302
    %v1315 = vsub.f32 %v1278, %v1305
    %v1316 = vsub.f32 %v1281, %v1308
    %v1317 = vmul.f32 %v1309, 1.442695
    %v1318 = vpow.pop %v1317
    %v1319 = vmul.f32 %v1310, 1.442695
    %v1320 = vpow.pop %v1319
    %v1321 = vmul.f32 %v1311, 1.442695
    %v1322 = vpow.pop %v1321
    %v1323 = vmul.f32 %v1312, 1.442695
    %v1324 = vpow.pop %v1323
    %v1325 = vmul.f32 %v1313, 1.442695
    %v1326 = vpow.pop %v1325
    %v1327 = vmul.f32 %v1314, 1.442695
    %v1328 = vpow.pop %v1327
    %v1329 = vmul.f32 %v1315, 1.442695
    %v1330 = vpow.pop %v1329
    %v1331 = vmul.f32 %v1316, 1.442695
    %v1332 = vpow.pop %v1331
    %v1333 = vsel %vm1284, %v1318, 0.0
    %1334 = vadd.xlane.f32.xlu0 %v1333
    %v1335 = vpop.xlane.xlu0 %1334
    %v1336 = vsel %vm1284, %v1320, 0.0
    %1337 = vadd.xlane.f32.xlu0 %v1336
    %v1338 = vpop.xlane.xlu0 %1337
    %v1339 = vsel %vm1284, %v1322, 0.0
    %1340 = vadd.xlane.f32.xlu0 %v1339
    %v1341 = vpop.xlane.xlu0 %1340
    %v1342 = vsel %vm1284, %v1324, 0.0
    %1343 = vadd.xlane.f32.xlu0 %v1342
    %v1344 = vpop.xlane.xlu0 %1343
    %v1345 = vsel %vm1284, %v1326, 0.0
    %1346 = vadd.xlane.f32.xlu0 %v1345
    %v1347 = vpop.xlane.xlu0 %1346
    %v1348 = vsel %vm1284, %v1328, 0.0
    %1349 = vadd.xlane.f32.xlu0 %v1348
    %v1350 = vpop.xlane.xlu0 %1349
    %v1351 = vsel %vm1284, %v1330, 0.0
    %1352 = vadd.xlane.f32.xlu0 %v1351
    %v1353 = vpop.xlane.xlu0 %1352
    %v1354 = vsel %vm1284, %v1332, 0.0
    %1355 = vadd.xlane.f32.xlu0 %v1354
    %v1356 = vpop.xlane.xlu0 %1355
    %v1357 = vrcp.pop %v1335
    %v1358 = vrcp.pop %v1338
    %v1359 = vrcp.pop %v1341
    %v1360 = vrcp.pop %v1344
    %v1361 = vrcp.pop %v1347
    %v1362 = vrcp.pop %v1350
    %v1363 = vrcp.pop %v1353
    %v1364 = vrcp.pop %v1356
    %v1365 = vmul.f32 %v1318, %v1357
    %v1366 = vmul.f32 %v1320, %v1358
    %v1367 = vmul.f32 %v1322, %v1359
    %v1368 = vmul.f32 %v1324, %v1360
    %v1369 = vmul.f32 %v1326, %v1361
    %v1370 = vmul.f32 %v1328, %v1362
    %v1371 = vmul.f32 %v1330, %v1363
    %v1372 = vmul.f32 %v1332, %v1364
    %v1373 = vpack.c.bf16 %v1366, %v1365
    %v1374 = vpack.c.bf16 %v1368, %v1367
    %v1375 = vpack.c.bf16 %v1370, %v1369
    %v1376 = vpack.c.bf16 %v1372, %v1371
    %v1378 = vsel %vm1284, %v1373, 0
    %1380 = vmatprep.subr.bf16.mxu0 0
    %1381 = vmatpush1.bf16.msra.mxu0 0
    %1382 = vmatprep.subr.bf16.mxu0 0
    %1383 = vmatpush1.bf16.msra.mxu0 0
    %1384 = vmatprep.subr.bf16.mxu0 0
    %1385 = vmatpush1.bf16.msra.mxu0 0
    %1386 = vmatprep.subr.bf16.mxu0 0
    %1387 = vmatpush1.bf16.msra.mxu0 0
    %1388 = vmatprep.subr.bf16.mxu0 0
    %1389 = vmatpush1.bf16.msra.mxu0 0
    %1390 = vmatprep.subr.bf16.mxu0 0
    %1391 = vmatpush1.bf16.msra.mxu0 0
    %1392 = vmatprep.subr.bf16.mxu0 0
    %1393 = vmatpush1.bf16.msra.mxu0 0
    %1394 = vmatprep.subr.bf16.mxu0 0
    %1395 = vmatpush1.bf16.msra.mxu0 %v1091
    %1396 = vmatprep.subr.bf16.mxu0 0
    %1397 = vmatpush2.bf16.msra.mxu0 0
    %1398 = vmatprep.subr.bf16.mxu0 0
    %1399 = vmatpush2.bf16.msra.mxu0 0
    %1400 = vmatprep.subr.bf16.mxu0 0
    %1401 = vmatpush2.bf16.msra.mxu0 0
    %1402 = vmatprep.subr.bf16.mxu0 0
    %1403 = vmatpush2.bf16.msra.mxu0 0
    %1404 = vmatprep.subr.bf16.mxu0 0
    %1405 = vmatpush2.bf16.msra.mxu0 0
    %1406 = vmatprep.subr.bf16.mxu0 0
    %1407 = vmatpush2.bf16.msra.mxu0 0
    %1408 = vmatprep.subr.bf16.mxu0 0
    %1409 = vmatpush2.bf16.msra.mxu0 0
    %1410 = vmatprep.subr.bf16.mxu0 0
    %1411 = vmatpush2.bf16.msra.mxu0 0
    %1412 = vmatprep.mubr.bf16.mxu0 0
    %1413 = vmatmul.mubr.bf16.gmra.mxu0 %v1378
    %v1414 = vpop.f32.mrf.mxu0
    %v1415 = vadd.f32 0.0, %v1414
    %v1416 = vpop.f32.mrf.mxu0
    %v1417 = vpop.f32.mrf.mxu0
    %v1418 = vadd.f32 0.0, %v1417
    %v1419 = vpop.f32.mrf.mxu0
    %1420 = vdwg.mxu0
    %v1422 = vsel %vm1284, %v1374, 0
    %1424 = vmatprep.subr.bf16.mxu0 0
    %1425 = vmatpush1.bf16.msra.mxu0 0
    %1426 = vmatprep.subr.bf16.mxu0 0
    %1427 = vmatpush1.bf16.msra.mxu0 0
    %1428 = vmatprep.subr.bf16.mxu0 0
    %1429 = vmatpush1.bf16.msra.mxu0 0
    %1430 = vmatprep.subr.bf16.mxu0 0
    %1431 = vmatpush1.bf16.msra.mxu0 0
    %1432 = vmatprep.subr.bf16.mxu0 0
    %1433 = vmatpush1.bf16.msra.mxu0 0
    %1434 = vmatprep.subr.bf16.mxu0 0
    %1435 = vmatpush1.bf16.msra.mxu0 0
    %1436 = vmatprep.subr.bf16.mxu0 0
    %1437 = vmatpush1.bf16.msra.mxu0 0
    %1438 = vmatprep.subr.bf16.mxu0 0
    %1439 = vmatpush1.bf16.msra.mxu0 %v1092
    %1440 = vmatprep.subr.bf16.mxu0 0
    %1441 = vmatpush2.bf16.msra.mxu0 0
    %1442 = vmatprep.subr.bf16.mxu0 0
    %1443 = vmatpush2.bf16.msra.mxu0 0
    %1444 = vmatprep.subr.bf16.mxu0 0
    %1445 = vmatpush2.bf16.msra.mxu0 0
    %1446 = vmatprep.subr.bf16.mxu0 0
    %1447 = vmatpush2.bf16.msra.mxu0 0
    %1448 = vmatprep.subr.bf16.mxu0 0
    %1449 = vmatpush2.bf16.msra.mxu0 0
    %1450 = vmatprep.subr.bf16.mxu0 0
    %1451 = vmatpush2.bf16.msra.mxu0 0
    %1452 = vmatprep.subr.bf16.mxu0 0
    %1453 = vmatpush2.bf16.msra.mxu0 0
    %1454 = vmatprep.subr.bf16.mxu0 0
    %1455 = vmatpush2.bf16.msra.mxu0 0
    %1456 = vmatprep.mubr.bf16.mxu0 0
    %1457 = vmatmul.mubr.bf16.gmra.mxu0 %v1422
    %v1458 = vpop.f32.mrf.mxu0
    %v1459 = vadd.f32 0.0, %v1458
    %v1460 = vpop.f32.mrf.mxu0
    %v1461 = vpop.f32.mrf.mxu0
    %v1462 = vadd.f32 0.0, %v1461
    %v1463 = vpop.f32.mrf.mxu0
    %1464 = vdwg.mxu0
    %v1466 = vsel %vm1284, %v1375, 0
    %1468 = vmatprep.subr.bf16.mxu0 0
    %1469 = vmatpush1.bf16.msra.mxu0 0
    %1470 = vmatprep.subr.bf16.mxu0 0
    %1471 = vmatpush1.bf16.msra.mxu0 0
    %1472 = vmatprep.subr.bf16.mxu0 0
    %1473 = vmatpush1.bf16.msra.mxu0 0
    %1474 = vmatprep.subr.bf16.mxu0 0
    %1475 = vmatpush1.bf16.msra.mxu0 0
    %1476 = vmatprep.subr.bf16.mxu0 0
    %1477 = vmatpush1.bf16.msra.mxu0 0
    %1478 = vmatprep.subr.bf16.mxu0 0
    %1479 = vmatpush1.bf16.msra.mxu0 0
    %1480 = vmatprep.subr.bf16.mxu0 0
    %1481 = vmatpush1.bf16.msra.mxu0 0
    %1482 = vmatprep.subr.bf16.mxu0 0
    %1483 = vmatpush1.bf16.msra.mxu0 %v1093
    %1484 = vmatprep.subr.bf16.mxu0 0
    %1485 = vmatpush2.bf16.msra.mxu0 0
    %1486 = vmatprep.subr.bf16.mxu0 0
    %1487 = vmatpush2.bf16.msra.mxu0 0
    %1488 = vmatprep.subr.bf16.mxu0 0
    %1489 = vmatpush2.bf16.msra.mxu0 0
    %1490 = vmatprep.subr.bf16.mxu0 0
    %1491 = vmatpush2.bf16.msra.mxu0 0
    %1492 = vmatprep.subr.bf16.mxu0 0
    %1493 = vmatpush2.bf16.msra.mxu0 0
    %1494 = vmatprep.subr.bf16.mxu0 0
    %1495 = vmatpush2.bf16.msra.mxu0 0
    %1496 = vmatprep.subr.bf16.mxu0 0
    %1497 = vmatpush2.bf16.msra.mxu0 0
    %1498 = vmatprep.subr.bf16.mxu0 0
    %1499 = vmatpush2.bf16.msra.mxu0 0
    %1500 = vmatprep.mubr.bf16.mxu0 0
    %1501 = vmatmul.mubr.bf16.gmra.mxu0 %v1466
    %v1502 = vpop.f32.mrf.mxu0
    %v1503 = vadd.f32 0.0, %v1502
    %v1504 = vpop.f32.mrf.mxu0
    %v1505 = vpop.f32.mrf.mxu0
    %v1506 = vadd.f32 0.0, %v1505
    %v1507 = vpop.f32.mrf.mxu0
    %1508 = vdwg.mxu0
    %v1510 = vsel %vm1284, %v1376, 0
    %1512 = vmatprep.subr.bf16.mxu0 0
    %1513 = vmatpush1.bf16.msra.mxu0 0
    %1514 = vmatprep.subr.bf16.mxu0 0
    %1515 = vmatpush1.bf16.msra.mxu0 0
    %1516 = vmatprep.subr.bf16.mxu0 0
    %1517 = vmatpush1.bf16.msra.mxu0 0
    %1518 = vmatprep.subr.bf16.mxu0 0
    %1519 = vmatpush1.bf16.msra.mxu0 0
    %1520 = vmatprep.subr.bf16.mxu0 0
    %1521 = vmatpush1.bf16.msra.mxu0 0
    %1522 = vmatprep.subr.bf16.mxu0 0
    %1523 = vmatpush1.bf16.msra.mxu0 0
    %1524 = vmatprep.subr.bf16.mxu0 0
    %1525 = vmatpush1.bf16.msra.mxu0 0
    %1526 = vmatprep.subr.bf16.mxu0 0
    %1527 = vmatpush1.bf16.msra.mxu0 %v1094
    %1528 = vmatprep.subr.bf16.mxu0 0
    %1529 = vmatpush2.bf16.msra.mxu0 0
    %1530 = vmatprep.subr.bf16.mxu0 0
    %1531 = vmatpush2.bf16.msra.mxu0 0
    %1532 = vmatprep.subr.bf16.mxu0 0
    %1533 = vmatpush2.bf16.msra.mxu0 0
    %1534 = vmatprep.subr.bf16.mxu0 0
    %1535 = vmatpush2.bf16.msra.mxu0 0
    %1536 = vmatprep.subr.bf16.mxu0 0
    %1537 = vmatpush2.bf16.msra.mxu0 0
    %1538 = vmatprep.subr.bf16.mxu0 0
    %1539 = vmatpush2.bf16.msra.mxu0 0
    %1540 = vmatprep.subr.bf16.mxu0 0
    %1541 = vmatpush2.bf16.msra.mxu0 0
    %1542 = vmatprep.subr.bf16.mxu0 0
    %1543 = vmatpush2.bf16.msra.mxu0 0
    %1544 = vmatprep.mubr.bf16.mxu0 0
    %1545 = vmatmul.mubr.bf16.gmra.mxu0 %v1510
    %v1546 = vpop.f32.mrf.mxu0
    %v1547 = vadd.f32 0.0, %v1546
    %v1548 = vpop.f32.mrf.mxu0
    %v1549 = vpop.f32.mrf.mxu0
    %v1550 = vadd.f32 0.0, %v1549
    %v1551 = vpop.f32.mrf.mxu0
    %1552 = vdwg.mxu0
    %v1553 = vcombine.low %v1415, %v1503
    %v1554 = vcombine.high %v1415, %v1503
    %v1556 = vunpack.c.l.s4 1983009808
    %v1557 = vunpack.c.0.s8 %v1556
    %v1558 = vlaneseq
    %v1559 = vshrl.u32 %v1558, 7
    %v1560 = vsub.s32 %v1557, %v1559
    %v1561 = vrot.slane %v1553, %v1560
    %v1563 = vunpack.c.l.s4 1983009808
    %v1564 = vunpack.c.0.s8 %v1563
    %v1565 = vlaneseq
    %v1566 = vshrl.u32 %v1565, 7
    %v1567 = vsub.s32 %v1564, %v1566
    %v1568 = vrot.slane %v1554, %v1567
    %v1569 = vcombine.low %v1459, %v1547
    %v1570 = vcombine.high %v1459, %v1547
    %v1572 = vunpack.c.l.s4 1983009808
    %v1573 = vunpack.c.0.s8 %v1572
    %v1574 = vlaneseq
    %v1575 = vshrl.u32 %v1574, 7
    %v1576 = vsub.s32 %v1573, %v1575
    %v1577 = vrot.slane %v1569, %v1576
    %v1579 = vunpack.c.l.s4 1983009808
    %v1580 = vunpack.c.0.s8 %v1579
    %v1581 = vlaneseq
    %v1582 = vshrl.u32 %v1581, 7
    %v1583 = vsub.s32 %v1580, %v1582
    %v1584 = vrot.slane %v1570, %v1583
    %v1585 = vcombine.low %v1561, %v1577
    %v1586 = vcombine.high %v1561, %v1577
    %v1588 = vunpack.c.l.s4 1934713408
    %v1589 = vunpack.c.0.s8 %v1588
    %v1590 = vlaneseq
    %v1591 = vshrl.u32 %v1590, 7
    %v1592 = vsub.s32 %v1589, %v1591
    %v1593 = vrot.slane %v1585, %v1592
    %v1595 = vunpack.c.l.s4 1934713408
    %v1596 = vunpack.c.0.s8 %v1595
    %v1597 = vlaneseq
    %v1598 = vshrl.u32 %v1597, 7
    %v1599 = vsub.s32 %v1596, %v1598
    %v1600 = vrot.slane %v1586, %v1599
    %v1601 = vcombine.low %v1568, %v1584
    %v1602 = vcombine.high %v1568, %v1584
    %v1604 = vunpack.c.l.s4 1934713408
    %v1605 = vunpack.c.0.s8 %v1604
    %v1606 = vlaneseq
    %v1607 = vshrl.u32 %v1606, 7
    %v1608 = vsub.s32 %v1605, %v1607
    %v1609 = vrot.slane %v1601, %v1608
    %v1611 = vunpack.c.l.s4 1934713408
    %v1612 = vunpack.c.0.s8 %v1611
    %v1613 = vlaneseq
    %v1614 = vshrl.u32 %v1613, 7
    %v1615 = vsub.s32 %v1612, %v1614
    %v1616 = vrot.slane %v1602, %v1615
    %v1617 = vcombine.high %v1593, 0.0
    %v1618 = vcombine.high %v1600, 0.0
    %v1619 = vcombine.high %v1609, 0.0
    %v1620 = vcombine.high %v1616, 0.0
    %v1621 = vcombine.low %v1418, %v1506
    %v1622 = vcombine.high %v1418, %v1506
    %v1624 = vunpack.c.l.s4 1983009808
    %v1625 = vunpack.c.0.s8 %v1624
    %v1626 = vlaneseq
    %v1627 = vshrl.u32 %v1626, 7
    %v1628 = vsub.s32 %v1625, %v1627
    %v1629 = vrot.slane %v1621, %v1628
    %v1631 = vunpack.c.l.s4 1983009808
    %v1632 = vunpack.c.0.s8 %v1631
    %v1633 = vlaneseq
    %v1634 = vshrl.u32 %v1633, 7
    %v1635 = vsub.s32 %v1632, %v1634
    %v1636 = vrot.slane %v1622, %v1635
    %v1637 = vcombine.low %v1462, %v1550
    %v1638 = vcombine.high %v1462, %v1550
    %v1640 = vunpack.c.l.s4 1983009808
    %v1641 = vunpack.c.0.s8 %v1640
    %v1642 = vlaneseq
    %v1643 = vshrl.u32 %v1642, 7
    %v1644 = vsub.s32 %v1641, %v1643
    %v1645 = vrot.slane %v1637, %v1644
    %v1647 = vunpack.c.l.s4 1983009808
    %v1648 = vunpack.c.0.s8 %v1647
    %v1649 = vlaneseq
    %v1650 = vshrl.u32 %v1649, 7
    %v1651 = vsub.s32 %v1648, %v1650
    %v1652 = vrot.slane %v1638, %v1651
    %v1653 = vcombine.low %v1629, %v1645
    %v1654 = vcombine.high %v1629, %v1645
    %v1656 = vunpack.c.l.s4 1934713408
    %v1657 = vunpack.c.0.s8 %v1656
    %v1658 = vlaneseq
    %v1659 = vshrl.u32 %v1658, 7
    %v1660 = vsub.s32 %v1657, %v1659
    %v1661 = vrot.slane %v1653, %v1660
    %v1663 = vunpack.c.l.s4 1934713408
    %v1664 = vunpack.c.0.s8 %v1663
    %v1665 = vlaneseq
    %v1666 = vshrl.u32 %v1665, 7
    %v1667 = vsub.s32 %v1664, %v1666
    %v1668 = vrot.slane %v1654, %v1667
    %v1669 = vcombine.low %v1636, %v1652
    %v1670 = vcombine.high %v1636, %v1652
    %v1672 = vunpack.c.l.s4 1934713408
    %v1673 = vunpack.c.0.s8 %v1672
    %v1674 = vlaneseq
    %v1675 = vshrl.u32 %v1674, 7
    %v1676 = vsub.s32 %v1673, %v1675
    %v1677 = vrot.slane %v1669, %v1676
    %v1679 = vunpack.c.l.s4 1934713408
    %v1680 = vunpack.c.0.s8 %v1679
    %v1681 = vlaneseq
    %v1682 = vshrl.u32 %v1681, 7
    %v1683 = vsub.s32 %v1680, %v1682
    %v1684 = vrot.slane %v1670, %v1683
    %v1685 = vcombine.high %v1661, 0.0
    %v1686 = vcombine.high %v1668, 0.0
    %v1687 = vcombine.high %v1677, 0.0
    %v1688 = vcombine.high %v1684, 0.0
    %v1689 = vcombine.low %v1593, %v1600
    %v1691 = vunpack.c.l.s4 1983009808
    %v1692 = vunpack.c.0.s8 %v1691
    %v1693 = vlaneseq
    %v1694 = vshrl.u32 %v1693, 7
    %v1695 = vsub.s32 %v1692, %v1694
    %v1696 = vrot.slane %v1689, %v1695
    %v1697 = vcombine.low %v1617, %v1618
    %v1699 = vunpack.c.l.s4 1983009808
    %v1700 = vunpack.c.0.s8 %v1699
    %v1701 = vlaneseq
    %v1702 = vshrl.u32 %v1701, 7
    %v1703 = vsub.s32 %v1700, %v1702
    %v1704 = vrot.slane %v1697, %v1703
    %v1705 = vcombine.low %v1609, %v1616
    %v1707 = vunpack.c.l.s4 1983009808
    %v1708 = vunpack.c.0.s8 %v1707
    %v1709 = vlaneseq
    %v1710 = vshrl.u32 %v1709, 7
    %v1711 = vsub.s32 %v1708, %v1710
    %v1712 = vrot.slane %v1705, %v1711
    %v1713 = vcombine.low %v1619, %v1620
    %v1715 = vunpack.c.l.s4 1983009808
    %v1716 = vunpack.c.0.s8 %v1715
    %v1717 = vlaneseq
    %v1718 = vshrl.u32 %v1717, 7
    %v1719 = vsub.s32 %v1716, %v1718
    %v1720 = vrot.slane %v1713, %v1719
    %v1721 = vcombine.low %v1696, %v1704
    %v1722 = vcombine.high %v1696, %v1704
    %v1724 = vunpack.c.l.s4 1934713408
    %v1725 = vunpack.c.0.s8 %v1724
    %v1726 = vlaneseq
    %v1727 = vshrl.u32 %v1726, 7
    %v1728 = vsub.s32 %v1725, %v1727
    %v1729 = vrot.slane %v1721, %v1728
    %v1731 = vunpack.c.l.s4 1934713408
    %v1732 = vunpack.c.0.s8 %v1731
    %v1733 = vlaneseq
    %v1734 = vshrl.u32 %v1733, 7
    %v1735 = vsub.s32 %v1732, %v1734
    %v1736 = vrot.slane %v1722, %v1735
    %v1737 = vcombine.low %v1712, %v1720
    %v1738 = vcombine.high %v1712, %v1720
    %v1740 = vunpack.c.l.s4 1934713408
    %v1741 = vunpack.c.0.s8 %v1740
    %v1742 = vlaneseq
    %v1743 = vshrl.u32 %v1742, 7
    %v1744 = vsub.s32 %v1741, %v1743
    %v1745 = vrot.slane %v1737, %v1744
    %v1747 = vunpack.c.l.s4 1934713408
    %v1748 = vunpack.c.0.s8 %v1747
    %v1749 = vlaneseq
    %v1750 = vshrl.u32 %v1749, 7
    %v1751 = vsub.s32 %v1748, %v1750
    %v1752 = vrot.slane %v1738, %v1751
    %v1753 = vcombine.low %v1729, %v1745
    %v1754 = vcombine.high %v1729, %v1745
    %v1755 = vcombine.low %v1736, %v1752
    %v1756 = vcombine.high %v1736, %v1752
    %v1757 = vcombine.low %v1661, %v1668
    %v1759 = vunpack.c.l.s4 1983009808
    %v1760 = vunpack.c.0.s8 %v1759
    %v1761 = vlaneseq
    %v1762 = vshrl.u32 %v1761, 7
    %v1763 = vsub.s32 %v1760, %v1762
    %v1764 = vrot.slane %v1757, %v1763
    %v1765 = vcombine.low %v1685, %v1686
    %v1767 = vunpack.c.l.s4 1983009808
    %v1768 = vunpack.c.0.s8 %v1767
    %v1769 = vlaneseq
    %v1770 = vshrl.u32 %v1769, 7
    %v1771 = vsub.s32 %v1768, %v1770
    %v1772 = vrot.slane %v1765, %v1771
    %v1773 = vcombine.low %v1677, %v1684
    %v1775 = vunpack.c.l.s4 1983009808
    %v1776 = vunpack.c.0.s8 %v1775
    %v1777 = vlaneseq
    %v1778 = vshrl.u32 %v1777, 7
    %v1779 = vsub.s32 %v1776, %v1778
    %v1780 = vrot.slane %v1773, %v1779
    %v1781 = vcombine.low %v1687, %v1688
    %v1783 = vunpack.c.l.s4 1983009808
    %v1784 = vunpack.c.0.s8 %v1783
    %v1785 = vlaneseq
    %v1786 = vshrl.u32 %v1785, 7
    %v1787 = vsub.s32 %v1784, %v1786
    %v1788 = vrot.slane %v1781, %v1787
    %v1789 = vcombine.low %v1764, %v1772
    %v1790 = vcombine.high %v1764, %v1772
    %v1792 = vunpack.c.l.s4 1934713408
    %v1793 = vunpack.c.0.s8 %v1792
    %v1794 = vlaneseq
    %v1795 = vshrl.u32 %v1794, 7
    %v1796 = vsub.s32 %v1793, %v1795
    %v1797 = vrot.slane %v1789, %v1796
    %v1799 = vunpack.c.l.s4 1934713408
    %v1800 = vunpack.c.0.s8 %v1799
    %v1801 = vlaneseq
    %v1802 = vshrl.u32 %v1801, 7
    %v1803 = vsub.s32 %v1800, %v1802
    %v1804 = vrot.slane %v1790, %v1803
    %v1805 = vcombine.low %v1780, %v1788
    %v1806 = vcombine.high %v1780, %v1788
    %v1808 = vunpack.c.l.s4 1934713408
    %v1809 = vunpack.c.0.s8 %v1808
    %v1810 = vlaneseq
    %v1811 = vshrl.u32 %v1810, 7
    %v1812 = vsub.s32 %v1809, %v1811
    %v1813 = vrot.slane %v1805, %v1812
    %v1815 = vunpack.c.l.s4 1934713408
    %v1816 = vunpack.c.0.s8 %v1815
    %v1817 = vlaneseq
    %v1818 = vshrl.u32 %v1817, 7
    %v1819 = vsub.s32 %v1816, %v1818
    %v1820 = vrot.slane %v1806, %v1819
    %v1821 = vcombine.low %v1797, %v1813
    %v1822 = vcombine.high %v1797, %v1813
    %v1823 = vcombine.low %v1804, %v1820
    %v1824 = vcombine.high %v1804, %v1820
    %1827 = vrot.lane.b32.xlu0 %v1754, 8
    %v1828 = vpop.permute.xlu0 %1827
    %1829 = vrot.lane.b32.xlu0 %v1822, 8
    %v1830 = vpop.permute.xlu0 %1829
    %1835 = vrot.lane.b32.xlu0 %v1755, 16
    %v1836 = vpop.permute.xlu0 %1835
    %1837 = vrot.lane.b32.xlu0 %v1823, 16
    %v1838 = vpop.permute.xlu0 %1837
    %1843 = vrot.lane.b32.xlu0 %v1756, 24
    %v1844 = vpop.permute.xlu0 %1843
    %1845 = vrot.lane.b32.xlu0 %v1824, 24
    %v1846 = vpop.permute.xlu0 %1845
    %v1849 = vsel %vm1095, %v1753, %v1828
    %v1850 = vsel %vm1095, %v1821, %v1830
    %v1851 = vsel %vm1284, %v1849, %v1836
    %v1852 = vsel %vm1284, %v1850, %v1838
    %vm1853 = vcmask 195584
    %v1854 = vsel %vm1853, %v1851, %v1844
    %v1855 = vsel %vm1853, %v1852, %v1846
    %v1856 = vpack.c.bf16 %v1855, %v1854
    %v1857 = vld [vmem:[%s4] sm:$0xf]
    %v1858 = vld [vmem:[%s4 + $0x4] sm:$0xf]
    %v1859 = vld [vmem:[%s4 + $0x8] sm:$0xf]
    %v1860 = vld [vmem:[%s4 + $0xc] sm:$0xf]
    %v1861 = vld [vmem:[%s5] sm:$0x1]
    %v1863 = vlaneseq
    %v1864 = vshrl.u32 %v1863, 7
    %v1865 = vsub.s32 0, %v1864
    %v1866 = vrot.slane %v1861, %v1865
    %v1872 = vunpack.c.l.b16 %v1857
    %v1873 = vunpack.c.l.b16 %v1858
    %v1874 = vunpack.c.l.b16 %v1859
    %v1875 = vunpack.c.l.b16 %v1860
    %v1876 = vpack.c.b16 %v1873, %v1872
    %v1877 = vpack.c.b16 %v1875, %v1874
    %v1881 = vsel %vm78, %v1856, 0
    %1883 = vmatprep.subr.bf16.mxu0 0
    %1884 = vmatpush1.bf16.msra.mxu0 0
    %1885 = vmatprep.subr.bf16.mxu0 0
    %1886 = vmatpush1.bf16.msra.mxu0 0
    %1887 = vmatprep.subr.bf16.mxu0 0
    %1888 = vmatpush1.bf16.msra.mxu0 0
    %1889 = vmatprep.subr.bf16.mxu0 0
    %1890 = vmatpush1.bf16.msra.mxu0 0
    %1891 = vmatprep.subr.bf16.mxu0 0
    %1892 = vmatpush1.bf16.msra.mxu0 0
    %1893 = vmatprep.subr.bf16.mxu0 0
    %1894 = vmatpush1.bf16.msra.mxu0 0
    %1895 = vmatprep.subr.bf16.mxu0 0
    %1896 = vmatpush1.bf16.msra.mxu0 %v1877
    %1897 = vmatprep.subr.bf16.mxu0 0
    %1898 = vmatpush1.bf16.msra.mxu0 %v1876
    %1899 = vmatprep.subr.bf16.mxu0 0
    %1900 = vmatpush2.bf16.msra.mxu0 0
    %1901 = vmatprep.subr.bf16.mxu0 0
    %1902 = vmatpush2.bf16.msra.mxu0 0
    %1903 = vmatprep.subr.bf16.mxu0 0
    %1904 = vmatpush2.bf16.msra.mxu0 0
    %1905 = vmatprep.subr.bf16.mxu0 0
    %1906 = vmatpush2.bf16.msra.mxu0 0
    %1907 = vmatprep.subr.bf16.mxu0 0
    %1908 = vmatpush2.bf16.msra.mxu0 0
    %1909 = vmatprep.subr.bf16.mxu0 0
    %1910 = vmatpush2.bf16.msra.mxu0 0
    %1911 = vmatprep.subr.bf16.mxu0 0
    %1912 = vmatpush2.bf16.msra.mxu0 0
    %1913 = vmatprep.subr.bf16.mxu0 0
    %1914 = vmatpush2.bf16.msra.mxu0 0
    %1915 = vmatprep.mubr.bf16.mxu0 0
    %1916 = vmatmul.mubr.bf16.gmra.mxu0 %v1881
    %v1917 = vpop.f32.mrf.mxu0
    %v1918 = vadd.f32 %v1866, %v1917
    %v1919 = vpop.f32.mrf.mxu0
    %v1920 = vpop.f32.mrf.mxu0
    %v1921 = vadd.f32 %v1866, %v1920
    %v1922 = vpop.f32.mrf.mxu0
    %1923 = vdwg.mxu0
    %v1924 = vadd.f32 %v52, %v1918
    %v1925 = vadd.f32 %v53, %v1921
    %v1926 = vld [vmem:[%s6] sm:$0x1]
    %v1927 = vld [vmem:[%s7] sm:$0x1]
    %v1928 = vsel %vm78, %v1924, 0.0
    %1929 = vadd.xlane.f32.xlu0 %v1928
    %v1930 = vpop.xlane.xlu0 %1929
    %v1931 = vsel %vm78, %v1925, 0.0
    %1932 = vadd.xlane.f32.xlu0 %v1931
    %v1933 = vpop.xlane.xlu0 %1932
    %v1934 = vmul.f32 %v1930, %v85
    %v1935 = vmul.f32 %v1933, %v85
    %v1936 = vsub.f32 %v1924, %v1934
    %v1937 = vsub.f32 %v1925, %v1935
    %v1938 = vmul.f32 %v1936, %v1936
    %v1939 = vmul.f32 %v1937, %v1937
    %v1940 = vsel %vm78, %v1938, 0.0
    %1941 = vadd.xlane.f32.xlu0 %v1940
    %v1942 = vpop.xlane.xlu0 %1941
    %v1943 = vsel %vm78, %v1939, 0.0
    %1944 = vadd.xlane.f32.xlu0 %v1943
    %v1945 = vpop.xlane.xlu0 %1944
    %v1946 = vmul.f32 %v1942, %v85
    %v1947 = vmul.f32 %v1945, %v85
    %v1948 = vadd.f32 %v1946, 1e-05
    %v1949 = vadd.f32 %v1947, 1e-05
    %v1950 = vrsqrt.pop %v1948
    %v1951 = vrsqrt.pop %v1949
    %v1952 = vmul.f32 %v1936, %v1950
    %v1953 = vmul.f32 %v1937, %v1951
    %v1955 = vlaneseq
    %v1956 = vshrl.u32 %v1955, 7
    %v1957 = vsub.s32 0, %v1956
    %v1958 = vrot.slane %v1926, %v1957
    %v1960 = vmul.f32 %v1958, %v1952
    %v1961 = vmul.f32 %v1958, %v1953
    %v1963 = vlaneseq
    %v1964 = vshrl.u32 %v1963, 7
    %v1965 = vsub.s32 0, %v1964
    %v1966 = vrot.slane %v1927, %v1965
    %v1968 = vadd.f32 %v1960, %v1966
    %v1969 = vadd.f32 %v1961, %v1966
    %v1970 = vpack.c.bf16 %v1969, %v1968
    %v1971 = vld [vmem:[%s8] sm:$0xf]
    %v1972 = vld [vmem:[%s8 + $0x4] sm:$0xf]
    %v1973 = vld [vmem:[%s8 + $0x8] sm:$0xf]
    %v1974 = vld [vmem:[%s8 + $0xc] sm:$0xf]
    %v1975 = vld [vmem:[%s9] sm:$0x1]
    %v1977 = vlaneseq
    %v1978 = vshrl.u32 %v1977, 7
    %v1979 = vsub.s32 0, %v1978
    %v1980 = vrot.slane %v1975, %v1979
    %v1986 = vunpack.c.l.b16 %v1971
    %v1987 = vunpack.c.l.b16 %v1972
    %v1988 = vunpack.c.l.b16 %v1973
    %v1989 = vunpack.c.l.b16 %v1974
    %v1990 = vpack.c.b16 %v1987, %v1986
    %v1991 = vpack.c.b16 %v1989, %v1988
    %v1995 = vsel %vm78, %v1970, 0
    %1997 = vmatprep.subr.bf16.mxu0 0
    %1998 = vmatpush1.bf16.msra.mxu0 0
    %1999 = vmatprep.subr.bf16.mxu0 0
    %2000 = vmatpush1.bf16.msra.mxu0 0
    %2001 = vmatprep.subr.bf16.mxu0 0
    %2002 = vmatpush1.bf16.msra.mxu0 0
    %2003 = vmatprep.subr.bf16.mxu0 0
    %2004 = vmatpush1.bf16.msra.mxu0 0
    %2005 = vmatprep.subr.bf16.mxu0 0
    %2006 = vmatpush1.bf16.msra.mxu0 0
    %2007 = vmatprep.subr.bf16.mxu0 0
    %2008 = vmatpush1.bf16.msra.mxu0 0
    %2009 = vmatprep.subr.bf16.mxu0 0
    %2010 = vmatpush1.bf16.msra.mxu0 %v1991
    %2011 = vmatprep.subr.bf16.mxu0 0
    %2012 = vmatpush1.bf16.msra.mxu0 %v1990
    %2013 = vmatprep.subr.bf16.mxu0 0
    %2014 = vmatpush2.bf16.msra.mxu0 0
    %2015 = vmatprep.subr.bf16.mxu0 0
    %2016 = vmatpush2.bf16.msra.mxu0 0
    %2017 = vmatprep.subr.bf16.mxu0 0
    %2018 = vmatpush2.bf16.msra.mxu0 0
    %2019 = vmatprep.subr.bf16.mxu0 0
    %2020 = vmatpush2.bf16.msra.mxu0 0
    %2021 = vmatprep.subr.bf16.mxu0 0
    %2022 = vmatpush2.bf16.msra.mxu0 0
    %2023 = vmatprep.subr.bf16.mxu0 0
    %2024 = vmatpush2.bf16.msra.mxu0 0
    %2025 = vmatprep.subr.bf16.mxu0 0
    %2026 = vmatpush2.bf16.msra.mxu0 0
    %2027 = vmatprep.subr.bf16.mxu0 0
    %2028 = vmatpush2.bf16.msra.mxu0 0
    %2029 = vmatprep.mubr.bf16.mxu0 0
    %2030 = vmatmul.mubr.bf16.gmra.mxu0 %v1995
    %v2031 = vpop.f32.mrf.mxu0
    %v2032 = vadd.f32 %v1980, %v2031
    %v2033 = vpop.f32.mrf.mxu0
    %v2034 = vpop.f32.mrf.mxu0
    %v2035 = vadd.f32 %v1980, %v2034
    %v2036 = vpop.f32.mrf.mxu0
    %2037 = vdwg.mxu0
    %v2038 = vmul.f32 %v2032, 0.5
    %v2039 = vmul.f32 %v2035, 0.5
    %v2040 = vmul.f32 %v2032, 0.044715
    %v2041 = vmul.f32 %v2035, 0.044715
    %v2042 = vmul.f32 %v2040, %v2032
    %v2043 = vmul.f32 %v2041, %v2035
    %v2044 = vmul.f32 %v2042, %v2032
    %v2045 = vmul.f32 %v2043, %v2035
    %v2046 = vadd.f32 %v2032, %v2044
    %v2047 = vadd.f32 %v2035, %v2045
    %v2048 = vmul.f32 %v2046, 0.7978846
    %v2049 = vmul.f32 %v2047, 0.7978846
    %v2050 = vtanh.pop %v2048
    %v2051 = vtanh.pop %v2049
    %v2052 = vadd.f32 %v2050, 1.0
    %v2053 = vadd.f32 %v2051, 1.0
    %v2054 = vmul.f32 %v2038, %v2052
    %v2055 = vmul.f32 %v2039, %v2053
    %v2056 = vpack.c.bf16 %v2055, %v2054
    %v2057 = vld [vmem:[%s10] sm:$0xf]
    %v2058 = vld [vmem:[%s10 + $0x4] sm:$0xf]
    %v2059 = vld [vmem:[%s10 + $0x8] sm:$0xf]
    %v2060 = vld [vmem:[%s10 + $0xc] sm:$0xf]
    %v2061 = vld [vmem:[%s10 + $0x10] sm:$0xf]
    %v2062 = vld [vmem:[%s10 + $0x14] sm:$0xf]
    %v2063 = vld [vmem:[%s10 + $0x18] sm:$0xf]
    %v2064 = vld [vmem:[%s10 + $0x1c] sm:$0xf]
    %v2065 = vld [vmem:[%s10 + $0x20] sm:$0xf]
    %v2066 = vld [vmem:[%s10 + $0x24] sm:$0xf]
    %v2067 = vld [vmem:[%s10 + $0x28] sm:$0xf]
    %v2068 = vld [vmem:[%s10 + $0x2c] sm:$0xf]
    %v2069 = vld [vmem:[%s10 + $0x30] sm:$0xf]
    %v2070 = vld [vmem:[%s10 + $0x34] sm:$0xf]
    %v2071 = vld [vmem:[%s10 + $0x38] sm:$0xf]
    %v2072 = vld [vmem:[%s10 + $0x3c] sm:$0xf]
    %v2089 = vunpack.c.l.b16 %v2057
    %v2090 = vunpack.c.l.b16 %v2058
    %v2091 = vunpack.c.l.b16 %v2059
    %v2092 = vunpack.c.l.b16 %v2060
    %v2093 = vunpack.c.l.b16 %v2061
    %v2094 = vunpack.c.l.b16 %v2062
    %v2095 = vunpack.c.l.b16 %v2063
    %v2096 = vunpack.c.l.b16 %v2064
    %v2097 = vunpack.c.l.b16 %v2065
    %v2098 = vunpack.c.l.b16 %v2066
    %v2099 = vunpack.c.l.b16 %v2067
    %v2100 = vunpack.c.l.b16 %v2068
    %v2101 = vunpack.c.l.b16 %v2069
    %v2102 = vunpack.c.l.b16 %v2070
    %v2103 = vunpack.c.l.b16 %v2071
    %v2104 = vunpack.c.l.b16 %v2072
    %v2105 = vpack.c.b16 %v2090, %v2089
    %v2106 = vpack.c.b16 %v2092, %v2091
    %v2107 = vpack.c.b16 %v2094, %v2093
    %v2108 = vpack.c.b16 %v2096, %v2095
    %v2109 = vpack.c.b16 %v2098, %v2097
    %v2110 = vpack.c.b16 %v2100, %v2099
    %v2111 = vpack.c.b16 %v2102, %v2101
    %v2112 = vpack.c.b16 %v2104, %v2103
    %2121 = vmatprep.subr.bf16.mxu0 0
    %2122 = vmatpush1.bf16.msra.mxu0 %v2112
    %2123 = vmatprep.subr.bf16.mxu0 0
    %2124 = vmatpush1.bf16.msra.mxu0 %v2111
    %2125 = vmatprep.subr.bf16.mxu0 0
    %2126 = vmatpush1.bf16.msra.mxu0 %v2110
    %2127 = vmatprep.subr.bf16.mxu0 0
    %2128 = vmatpush1.bf16.msra.mxu0 %v2109
    %2129 = vmatprep.subr.bf16.mxu0 0
    %2130 = vmatpush1.bf16.msra.mxu0 %v2108
    %2131 = vmatprep.subr.bf16.mxu0 0
    %2132 = vmatpush1.bf16.msra.mxu0 %v2107
    %2133 = vmatprep.subr.bf16.mxu0 0
    %2134 = vmatpush1.bf16.msra.mxu0 %v2106
    %2135 = vmatprep.subr.bf16.mxu0 0
    %2136 = vmatpush1.bf16.msra.mxu0 %v2105
    %2137 = vmatprep.subr.bf16.mxu0 0
    %2138 = vmatpush2.bf16.msra.mxu0 0
    %2139 = vmatprep.subr.bf16.mxu0 0
    %2140 = vmatpush2.bf16.msra.mxu0 0
    %2141 = vmatprep.subr.bf16.mxu0 0
    %2142 = vmatpush2.bf16.msra.mxu0 0
    %2143 = vmatprep.subr.bf16.mxu0 0
    %2144 = vmatpush2.bf16.msra.mxu0 0
    %2145 = vmatprep.subr.bf16.mxu0 0
    %2146 = vmatpush2.bf16.msra.mxu0 0
    %2147 = vmatprep.subr.bf16.mxu0 0
    %2148 = vmatpush2.bf16.msra.mxu0 0
    %2149 = vmatprep.subr.bf16.mxu0 0
    %2150 = vmatpush2.bf16.msra.mxu0 0
    %2151 = vmatprep.subr.bf16.mxu0 0
    %2152 = vmatpush2.bf16.msra.mxu0 0
    %2153 = vmatprep.mubr.bf16.mxu0 0
    %2154 = vmatmul.mubr.bf16.gmra.mxu0 %v2056
    %v2155 = vpop.f32.mrf.mxu0
    %v2156 = vadd.f32 0.0, %v2155
    %v2157 = vpop.f32.mrf.mxu0
    %v2158 = vpop.f32.mrf.mxu0
    %v2159 = vadd.f32 0.0, %v2158
    %v2160 = vpop.f32.mrf.mxu0
    %2161 = vdwg.mxu0
    %v2162 = vadd.f32 %v1924, %v2156
    %v2163 = vadd.f32 %v1925, %v2159
    %v2164 = vld [vmem:[%s11] sm:$0x1]
    %v2166 = vlaneseq
    %v2167 = vshrl.u32 %v2166, 7
    %v2168 = vsub.s32 0, %v2167
    %v2169 = vrot.slane %v2164, %v2168
    %v2171 = vadd.f32 %v2162, %v2169
    %v2172 = vadd.f32 %v2163, %v2169
    %s2173 = scalar_lea.vmem %s1, 1
    %v2174 = vld [vmem:[%s2173] sm:$0x1]
    %s2175 = scalar_lea.vmem %s2, 1
    %v2176 = vld [vmem:[%s2175] sm:$0x1]
    %v2177 = vsel %vm78, %v2171, 0.0
    %2178 = vadd.xlane.f32.xlu0 %v2177
    %v2179 = vpop.xlane.xlu0 %2178
    %v2180 = vsel %vm78, %v2172, 0.0
    %2181 = vadd.xlane.f32.xlu0 %v2180
    %v2182 = vpop.xlane.xlu0 %2181
    %v2183 = vmul.f32 %v2179, %v85
    %v2184 = vmul.f32 %v2182, %v85
    %v2185 = vsub.f32 %v2171, %v2183
    %v2186 = vsub.f32 %v2172, %v2184
    %v2187 = vmul.f32 %v2185, %v2185
    %v2188 = vmul.f32 %v2186, %v2186
    %v2189 = vsel %vm78, %v2187, 0.0
    %2190 = vadd.xlane.f32.xlu0 %v2189
    %v2191 = vpop.xlane.xlu0 %2190
    %v2192 = vsel %vm78, %v2188, 0.0
    %2193 = vadd.xlane.f32.xlu0 %v2192
    %v2194 = vpop.xlane.xlu0 %2193
    %v2195 = vmul.f32 %v2191, %v85
    %v2196 = vmul.f32 %v2194, %v85
    %v2197 = vadd.f32 %v2195, 1e-05
    %v2198 = vadd.f32 %v2196, 1e-05
    %v2199 = vrsqrt.pop %v2197
    %v2200 = vrsqrt.pop %v2198
    %v2201 = vmul.f32 %v2185, %v2199
    %v2202 = vmul.f32 %v2186, %v2200
    %v2204 = vlaneseq
    %v2205 = vshrl.u32 %v2204, 7
    %v2206 = vsub.s32 0, %v2205
    %v2207 = vrot.slane %v2174, %v2206
    %v2209 = vmul.f32 %v2207, %v2201
    %v2210 = vmul.f32 %v2207, %v2202
    %v2212 = vlaneseq
    %v2213 = vshrl.u32 %v2212, 7
    %v2214 = vsub.s32 0, %v2213
    %v2215 = vrot.slane %v2176, %v2214
    %v2217 = vadd.f32 %v2209, %v2215
    %v2218 = vadd.f32 %v2210, %v2215
    %v2219 = vpack.c.bf16 %v2218, %v2217
    %s2220 = scalar_lea.vmem %s3, 16
    %v2221 = vld [vmem:[%s2220] sm:$0xf]
    %v2222 = vld [vmem:[%s2220 + $0x4] sm:$0xf]
    %v2223 = vld [vmem:[%s2220 + $0x8] sm:$0xf]
    %v2224 = vld [vmem:[%s2220 + $0xc] sm:$0xf]
    %v2229 = vunpack.c.l.b16 %v2221
    %v2230 = vunpack.c.l.b16 %v2222
    %v2231 = vunpack.c.l.b16 %v2223
    %v2232 = vunpack.c.l.b16 %v2224
    %v2233 = vpack.c.b16 %v2230, %v2229
    %v2234 = vpack.c.b16 %v2232, %v2231
    %v2238 = vsel %vm78, %v2219, 0
    %2240 = vmatprep.subr.bf16.mxu0 0
    %2241 = vmatpush1.bf16.msra.mxu0 0
    %2242 = vmatprep.subr.bf16.mxu0 0
    %2243 = vmatpush1.bf16.msra.mxu0 0
    %2244 = vmatprep.subr.bf16.mxu0 0
    %2245 = vmatpush1.bf16.msra.mxu0 0
    %2246 = vmatprep.subr.bf16.mxu0 0
    %2247 = vmatpush1.bf16.msra.mxu0 0
    %2248 = vmatprep.subr.bf16.mxu0 0
    %2249 = vmatpush1.bf16.msra.mxu0 0
    %2250 = vmatprep.subr.bf16.mxu0 0
    %2251 = vmatpush1.bf16.msra.mxu0 0
    %2252 = vmatprep.subr.bf16.mxu0 0
    %2253 = vmatpush1.bf16.msra.mxu0 %v2234
    %2254 = vmatprep.subr.bf16.mxu0 0
    %2255 = vmatpush1.bf16.msra.mxu0 %v2233
    %2256 = vmatprep.subr.bf16.mxu0 0
    %2257 = vmatpush2.bf16.msra.mxu0 0
    %2258 = vmatprep.subr.bf16.mxu0 0
    %2259 = vmatpush2.bf16.msra.mxu0 0
    %2260 = vmatprep.subr.bf16.mxu0 0
    %2261 = vmatpush2.bf16.msra.mxu0 0
    %2262 = vmatprep.subr.bf16.mxu0 0
    %2263 = vmatpush2.bf16.msra.mxu0 0
    %2264 = vmatprep.subr.bf16.mxu0 0
    %2265 = vmatpush2.bf16.msra.mxu0 0
    %2266 = vmatprep.subr.bf16.mxu0 0
    %2267 = vmatpush2.bf16.msra.mxu0 0
    %2268 = vmatprep.subr.bf16.mxu0 0
    %2269 = vmatpush2.bf16.msra.mxu0 0
    %2270 = vmatprep.subr.bf16.mxu0 0
    %2271 = vmatpush2.bf16.msra.mxu0 0
    %2272 = vmatprep.mubr.bf16.mxu0 0
    %2273 = vmatmul.mubr.bf16.gmra.mxu0 %v2238
    %v2274 = vpop.f32.mrf.mxu0
    %v2275 = vadd.f32 0.0, %v2274
    %v2276 = vpop.f32.mrf.mxu0
    %v2277 = vpop.f32.mrf.mxu0
    %v2278 = vadd.f32 0.0, %v2277
    %v2279 = vpop.f32.mrf.mxu0
    %2280 = vdwg.mxu0
    %v2281 = vmul.f32 %v2275, 0.35355338
    %v2282 = vmul.f32 %v2278, 0.35355338
    %2285 = vrot.lane.b32.xlu0 %v2281, 120
    %v2286 = vpop.permute.xlu0 %2285
    %2287 = vrot.lane.b32.xlu0 %v2282, 120
    %v2288 = vpop.permute.xlu0 %2287
    %2291 = vrot.lane.b32.xlu0 %v2281, 112
    %v2292 = vpop.permute.xlu0 %2291
    %2293 = vrot.lane.b32.xlu0 %v2282, 112
    %v2294 = vpop.permute.xlu0 %2293
    %2297 = vrot.lane.b32.xlu0 %v2281, 104
    %v2298 = vpop.permute.xlu0 %2297
    %2299 = vrot.lane.b32.xlu0 %v2282, 104
    %v2300 = vpop.permute.xlu0 %2299
    %v2303 = vcombine.low %v2281, %v2292
    %v2304 = vcombine.high %v2281, %v2292
    %v2306 = vunpack.c.l.s4 1983009808
    %v2307 = vunpack.c.0.s8 %v2306
    %v2308 = vlaneseq
    %v2309 = vshrl.u32 %v2308, 7
    %v2310 = vsub.s32 %v2307, %v2309
    %v2311 = vrot.slane %v2303, %v2310
    %v2313 = vunpack.c.l.s4 1983009808
    %v2314 = vunpack.c.0.s8 %v2313
    %v2315 = vlaneseq
    %v2316 = vshrl.u32 %v2315, 7
    %v2317 = vsub.s32 %v2314, %v2316
    %v2318 = vrot.slane %v2304, %v2317
    %v2319 = vcombine.low %v2286, %v2298
    %v2320 = vcombine.high %v2286, %v2298
    %v2322 = vunpack.c.l.s4 1983009808
    %v2323 = vunpack.c.0.s8 %v2322
    %v2324 = vlaneseq
    %v2325 = vshrl.u32 %v2324, 7
    %v2326 = vsub.s32 %v2323, %v2325
    %v2327 = vrot.slane %v2319, %v2326
    %v2329 = vunpack.c.l.s4 1983009808
    %v2330 = vunpack.c.0.s8 %v2329
    %v2331 = vlaneseq
    %v2332 = vshrl.u32 %v2331, 7
    %v2333 = vsub.s32 %v2330, %v2332
    %v2334 = vrot.slane %v2320, %v2333
    %v2335 = vcombine.low %v2311, %v2327
    %v2336 = vcombine.high %v2311, %v2327
    %v2338 = vunpack.c.l.s4 1934713408
    %v2339 = vunpack.c.0.s8 %v2338
    %v2340 = vlaneseq
    %v2341 = vshrl.u32 %v2340, 7
    %v2342 = vsub.s32 %v2339, %v2341
    %v2343 = vrot.slane %v2335, %v2342
    %v2345 = vunpack.c.l.s4 1934713408
    %v2346 = vunpack.c.0.s8 %v2345
    %v2347 = vlaneseq
    %v2348 = vshrl.u32 %v2347, 7
    %v2349 = vsub.s32 %v2346, %v2348
    %v2350 = vrot.slane %v2336, %v2349
    %v2351 = vcombine.low %v2318, %v2334
    %v2352 = vcombine.high %v2318, %v2334
    %v2354 = vunpack.c.l.s4 1934713408
    %v2355 = vunpack.c.0.s8 %v2354
    %v2356 = vlaneseq
    %v2357 = vshrl.u32 %v2356, 7
    %v2358 = vsub.s32 %v2355, %v2357
    %v2359 = vrot.slane %v2351, %v2358
    %v2361 = vunpack.c.l.s4 1934713408
    %v2362 = vunpack.c.0.s8 %v2361
    %v2363 = vlaneseq
    %v2364 = vshrl.u32 %v2363, 7
    %v2365 = vsub.s32 %v2362, %v2364
    %v2366 = vrot.slane %v2352, %v2365
    %v2367 = vcombine.high %v2343, 0.0
    %v2368 = vcombine.high %v2350, 0.0
    %v2369 = vcombine.high %v2359, 0.0
    %v2370 = vcombine.high %v2366, 0.0
    %v2371 = vcombine.low %v2282, %v2294
    %v2372 = vcombine.high %v2282, %v2294
    %v2374 = vunpack.c.l.s4 1983009808
    %v2375 = vunpack.c.0.s8 %v2374
    %v2376 = vlaneseq
    %v2377 = vshrl.u32 %v2376, 7
    %v2378 = vsub.s32 %v2375, %v2377
    %v2379 = vrot.slane %v2371, %v2378
    %v2381 = vunpack.c.l.s4 1983009808
    %v2382 = vunpack.c.0.s8 %v2381
    %v2383 = vlaneseq
    %v2384 = vshrl.u32 %v2383, 7
    %v2385 = vsub.s32 %v2382, %v2384
    %v2386 = vrot.slane %v2372, %v2385
    %v2387 = vcombine.low %v2288, %v2300
    %v2388 = vcombine.high %v2288, %v2300
    %v2390 = vunpack.c.l.s4 1983009808
    %v2391 = vunpack.c.0.s8 %v2390
    %v2392 = vlaneseq
    %v2393 = vshrl.u32 %v2392, 7
    %v2394 = vsub.s32 %v2391, %v2393
    %v2395 = vrot.slane %v2387, %v2394
    %v2397 = vunpack.c.l.s4 1983009808
    %v2398 = vunpack.c.0.s8 %v2397
    %v2399 = vlaneseq
    %v2400 = vshrl.u32 %v2399, 7
    %v2401 = vsub.s32 %v2398, %v2400
    %v2402 = vrot.slane %v2388, %v2401
    %v2403 = vcombine.low %v2379, %v2395
    %v2404 = vcombine.high %v2379, %v2395
    %v2406 = vunpack.c.l.s4 1934713408
    %v2407 = vunpack.c.0.s8 %v2406
    %v2408 = vlaneseq
    %v2409 = vshrl.u32 %v2408, 7
    %v2410 = vsub.s32 %v2407, %v2409
    %v2411 = vrot.slane %v2403, %v2410
    %v2413 = vunpack.c.l.s4 1934713408
    %v2414 = vunpack.c.0.s8 %v2413
    %v2415 = vlaneseq
    %v2416 = vshrl.u32 %v2415, 7
    %v2417 = vsub.s32 %v2414, %v2416
    %v2418 = vrot.slane %v2404, %v2417
    %v2419 = vcombine.low %v2386, %v2402
    %v2420 = vcombine.high %v2386, %v2402
    %v2422 = vunpack.c.l.s4 1934713408
    %v2423 = vunpack.c.0.s8 %v2422
    %v2424 = vlaneseq
    %v2425 = vshrl.u32 %v2424, 7
    %v2426 = vsub.s32 %v2423, %v2425
    %v2427 = vrot.slane %v2419, %v2426
    %v2429 = vunpack.c.l.s4 1934713408
    %v2430 = vunpack.c.0.s8 %v2429
    %v2431 = vlaneseq
    %v2432 = vshrl.u32 %v2431, 7
    %v2433 = vsub.s32 %v2430, %v2432
    %v2434 = vrot.slane %v2420, %v2433
    %v2435 = vcombine.high %v2411, 0.0
    %v2436 = vcombine.high %v2418, 0.0
    %v2437 = vcombine.high %v2427, 0.0
    %v2438 = vcombine.high %v2434, 0.0
    %v2439 = vcombine.low %v2343, %v2350
    %v2441 = vunpack.c.l.s4 1983009808
    %v2442 = vunpack.c.0.s8 %v2441
    %v2443 = vlaneseq
    %v2444 = vshrl.u32 %v2443, 7
    %v2445 = vsub.s32 %v2442, %v2444
    %v2446 = vrot.slane %v2439, %v2445
    %v2447 = vcombine.low %v2367, %v2368
    %v2449 = vunpack.c.l.s4 1983009808
    %v2450 = vunpack.c.0.s8 %v2449
    %v2451 = vlaneseq
    %v2452 = vshrl.u32 %v2451, 7
    %v2453 = vsub.s32 %v2450, %v2452
    %v2454 = vrot.slane %v2447, %v2453
    %v2455 = vcombine.low %v2359, %v2366
    %v2457 = vunpack.c.l.s4 1983009808
    %v2458 = vunpack.c.0.s8 %v2457
    %v2459 = vlaneseq
    %v2460 = vshrl.u32 %v2459, 7
    %v2461 = vsub.s32 %v2458, %v2460
    %v2462 = vrot.slane %v2455, %v2461
    %v2463 = vcombine.low %v2369, %v2370
    %v2465 = vunpack.c.l.s4 1983009808
    %v2466 = vunpack.c.0.s8 %v2465
    %v2467 = vlaneseq
    %v2468 = vshrl.u32 %v2467, 7
    %v2469 = vsub.s32 %v2466, %v2468
    %v2470 = vrot.slane %v2463, %v2469
    %v2471 = vcombine.low %v2446, %v2454
    %v2472 = vcombine.high %v2446, %v2454
    %v2474 = vunpack.c.l.s4 1934713408
    %v2475 = vunpack.c.0.s8 %v2474
    %v2476 = vlaneseq
    %v2477 = vshrl.u32 %v2476, 7
    %v2478 = vsub.s32 %v2475, %v2477
    %v2479 = vrot.slane %v2471, %v2478
    %v2481 = vunpack.c.l.s4 1934713408
    %v2482 = vunpack.c.0.s8 %v2481
    %v2483 = vlaneseq
    %v2484 = vshrl.u32 %v2483, 7
    %v2485 = vsub.s32 %v2482, %v2484
    %v2486 = vrot.slane %v2472, %v2485
    %v2487 = vcombine.low %v2462, %v2470
    %v2488 = vcombine.high %v2462, %v2470
    %v2490 = vunpack.c.l.s4 1934713408
    %v2491 = vunpack.c.0.s8 %v2490
    %v2492 = vlaneseq
    %v2493 = vshrl.u32 %v2492, 7
    %v2494 = vsub.s32 %v2491, %v2493
    %v2495 = vrot.slane %v2487, %v2494
    %v2497 = vunpack.c.l.s4 1934713408
    %v2498 = vunpack.c.0.s8 %v2497
    %v2499 = vlaneseq
    %v2500 = vshrl.u32 %v2499, 7
    %v2501 = vsub.s32 %v2498, %v2500
    %v2502 = vrot.slane %v2488, %v2501
    %v2503 = vcombine.low %v2479, %v2495
    %v2504 = vcombine.high %v2479, %v2495
    %v2505 = vcombine.low %v2486, %v2502
    %v2506 = vcombine.high %v2486, %v2502
    %v2507 = vcombine.low %v2411, %v2418
    %v2509 = vunpack.c.l.s4 1983009808
    %v2510 = vunpack.c.0.s8 %v2509
    %v2511 = vlaneseq
    %v2512 = vshrl.u32 %v2511, 7
    %v2513 = vsub.s32 %v2510, %v2512
    %v2514 = vrot.slane %v2507, %v2513
    %v2515 = vcombine.low %v2435, %v2436
    %v2517 = vunpack.c.l.s4 1983009808
    %v2518 = vunpack.c.0.s8 %v2517
    %v2519 = vlaneseq
    %v2520 = vshrl.u32 %v2519, 7
    %v2521 = vsub.s32 %v2518, %v2520
    %v2522 = vrot.slane %v2515, %v2521
    %v2523 = vcombine.low %v2427, %v2434
    %v2525 = vunpack.c.l.s4 1983009808
    %v2526 = vunpack.c.0.s8 %v2525
    %v2527 = vlaneseq
    %v2528 = vshrl.u32 %v2527, 7
    %v2529 = vsub.s32 %v2526, %v2528
    %v2530 = vrot.slane %v2523, %v2529
    %v2531 = vcombine.low %v2437, %v2438
    %v2533 = vunpack.c.l.s4 1983009808
    %v2534 = vunpack.c.0.s8 %v2533
    %v2535 = vlaneseq
    %v2536 = vshrl.u32 %v2535, 7
    %v2537 = vsub.s32 %v2534, %v2536
    %v2538 = vrot.slane %v2531, %v2537
    %v2539 = vcombine.low %v2514, %v2522
    %v2540 = vcombine.high %v2514, %v2522
    %v2542 = vunpack.c.l.s4 1934713408
    %v2543 = vunpack.c.0.s8 %v2542
    %v2544 = vlaneseq
    %v2545 = vshrl.u32 %v2544, 7
    %v2546 = vsub.s32 %v2543, %v2545
    %v2547 = vrot.slane %v2539, %v2546
    %v2549 = vunpack.c.l.s4 1934713408
    %v2550 = vunpack.c.0.s8 %v2549
    %v2551 = vlaneseq
    %v2552 = vshrl.u32 %v2551, 7
    %v2553 = vsub.s32 %v2550, %v2552
    %v2554 = vrot.slane %v2540, %v2553
    %v2555 = vcombine.low %v2530, %v2538
    %v2556 = vcombine.high %v2530, %v2538
    %v2558 = vunpack.c.l.s4 1934713408
    %v2559 = vunpack.c.0.s8 %v2558
    %v2560 = vlaneseq
    %v2561 = vshrl.u32 %v2560, 7
    %v2562 = vsub.s32 %v2559, %v2561
    %v2563 = vrot.slane %v2555, %v2562
    %v2565 = vunpack.c.l.s4 1934713408
    %v2566 = vunpack.c.0.s8 %v2565
    %v2567 = vlaneseq
    %v2568 = vshrl.u32 %v2567, 7
    %v2569 = vsub.s32 %v2566, %v2568
    %v2570 = vrot.slane %v2556, %v2569
    %v2571 = vcombine.low %v2547, %v2563
    %v2572 = vcombine.high %v2547, %v2563
    %v2573 = vcombine.low %v2554, %v2570
    %v2574 = vcombine.high %v2554, %v2570
    %v2575 = vpack.c.bf16 %v2571, %v2503
    %v2576 = vpack.c.bf16 %v2572, %v2504
    %v2577 = vpack.c.bf16 %v2573, %v2505
    %v2578 = vpack.c.bf16 %v2574, %v2506
    %2581 = vrot.lane.b32.xlu0 %v2275, 120
    %v2582 = vpop.permute.xlu0 %2581
    %2583 = vrot.lane.b32.xlu0 %v2278, 120
    %v2584 = vpop.permute.xlu0 %2583
    %2585 = vrot.lane.b32.xlu0 %v2275, 112
    %v2586 = vpop.permute.xlu0 %2585
    %2587 = vrot.lane.b32.xlu0 %v2278, 112
    %v2588 = vpop.permute.xlu0 %2587
    %2589 = vrot.lane.b32.xlu0 %v2275, 104
    %v2590 = vpop.permute.xlu0 %2589
    %2591 = vrot.lane.b32.xlu0 %v2278, 104
    %v2592 = vpop.permute.xlu0 %2591
    %2593 = vrot.lane.b32.xlu0 %v2275, 96
    %v2594 = vpop.permute.xlu0 %2593
    %2595 = vrot.lane.b32.xlu0 %v2278, 96
    %v2596 = vpop.permute.xlu0 %2595
    %2597 = vrot.lane.b32.xlu0 %v2582, 96
    %v2598 = vpop.permute.xlu0 %2597
    %2599 = vrot.lane.b32.xlu0 %v2584, 96
    %v2600 = vpop.permute.xlu0 %2599
    %2601 = vrot.lane.b32.xlu0 %v2586, 96
    %v2602 = vpop.permute.xlu0 %2601
    %2603 = vrot.lane.b32.xlu0 %v2588, 96
    %v2604 = vpop.permute.xlu0 %2603
    %2605 = vrot.lane.b32.xlu0 %v2590, 96
    %v2606 = vpop.permute.xlu0 %2605
    %2607 = vrot.lane.b32.xlu0 %v2592, 96
    %v2608 = vpop.permute.xlu0 %2607
    %v2617 = vcombine.low %v2594, %v2602
    %v2618 = vcombine.high %v2594, %v2602
    %v2620 = vunpack.c.l.s4 1983009808
    %v2621 = vunpack.c.0.s8 %v2620
    %v2622 = vlaneseq
    %v2623 = vshrl.u32 %v2622, 7
    %v2624 = vsub.s32 %v2621, %v2623
    %v2625 = vrot.slane %v2617, %v2624
    %v2627 = vunpack.c.l.s4 1983009808
    %v2628 = vunpack.c.0.s8 %v2627
    %v2629 = vlaneseq
    %v2630 = vshrl.u32 %v2629, 7
    %v2631 = vsub.s32 %v2628, %v2630
    %v2632 = vrot.slane %v2618, %v2631
    %v2633 = vcombine.low %v2598, %v2606
    %v2634 = vcombine.high %v2598, %v2606
    %v2636 = vunpack.c.l.s4 1983009808
    %v2637 = vunpack.c.0.s8 %v2636
    %v2638 = vlaneseq
    %v2639 = vshrl.u32 %v2638, 7
    %v2640 = vsub.s32 %v2637, %v2639
    %v2641 = vrot.slane %v2633, %v2640
    %v2643 = vunpack.c.l.s4 1983009808
    %v2644 = vunpack.c.0.s8 %v2643
    %v2645 = vlaneseq
    %v2646 = vshrl.u32 %v2645, 7
    %v2647 = vsub.s32 %v2644, %v2646
    %v2648 = vrot.slane %v2634, %v2647
    %v2649 = vcombine.low %v2625, %v2641
    %v2650 = vcombine.high %v2625, %v2641
    %v2652 = vunpack.c.l.s4 1934713408
    %v2653 = vunpack.c.0.s8 %v2652
    %v2654 = vlaneseq
    %v2655 = vshrl.u32 %v2654, 7
    %v2656 = vsub.s32 %v2653, %v2655
    %v2657 = vrot.slane %v2649, %v2656
    %v2659 = vunpack.c.l.s4 1934713408
    %v2660 = vunpack.c.0.s8 %v2659
    %v2661 = vlaneseq
    %v2662 = vshrl.u32 %v2661, 7
    %v2663 = vsub.s32 %v2660, %v2662
    %v2664 = vrot.slane %v2650, %v2663
    %v2665 = vcombine.low %v2632, %v2648
    %v2666 = vcombine.high %v2632, %v2648
    %v2668 = vunpack.c.l.s4 1934713408
    %v2669 = vunpack.c.0.s8 %v2668
    %v2670 = vlaneseq
    %v2671 = vshrl.u32 %v2670, 7
    %v2672 = vsub.s32 %v2669, %v2671
    %v2673 = vrot.slane %v2665, %v2672
    %v2675 = vunpack.c.l.s4 1934713408
    %v2676 = vunpack.c.0.s8 %v2675
    %v2677 = vlaneseq
    %v2678 = vshrl.u32 %v2677, 7
    %v2679 = vsub.s32 %v2676, %v2678
    %v2680 = vrot.slane %v2666, %v2679
    %v2681 = vcombine.high %v2657, 0.0
    %v2682 = vcombine.high %v2664, 0.0
    %v2683 = vcombine.high %v2673, 0.0
    %v2684 = vcombine.high %v2680, 0.0
    %v2685 = vcombine.low %v2596, %v2604
    %v2686 = vcombine.high %v2596, %v2604
    %v2688 = vunpack.c.l.s4 1983009808
    %v2689 = vunpack.c.0.s8 %v2688
    %v2690 = vlaneseq
    %v2691 = vshrl.u32 %v2690, 7
    %v2692 = vsub.s32 %v2689, %v2691
    %v2693 = vrot.slane %v2685, %v2692
    %v2695 = vunpack.c.l.s4 1983009808
    %v2696 = vunpack.c.0.s8 %v2695
    %v2697 = vlaneseq
    %v2698 = vshrl.u32 %v2697, 7
    %v2699 = vsub.s32 %v2696, %v2698
    %v2700 = vrot.slane %v2686, %v2699
    %v2701 = vcombine.low %v2600, %v2608
    %v2702 = vcombine.high %v2600, %v2608
    %v2704 = vunpack.c.l.s4 1983009808
    %v2705 = vunpack.c.0.s8 %v2704
    %v2706 = vlaneseq
    %v2707 = vshrl.u32 %v2706, 7
    %v2708 = vsub.s32 %v2705, %v2707
    %v2709 = vrot.slane %v2701, %v2708
    %v2711 = vunpack.c.l.s4 1983009808
    %v2712 = vunpack.c.0.s8 %v2711
    %v2713 = vlaneseq
    %v2714 = vshrl.u32 %v2713, 7
    %v2715 = vsub.s32 %v2712, %v2714
    %v2716 = vrot.slane %v2702, %v2715
    %v2717 = vcombine.low %v2693, %v2709
    %v2718 = vcombine.high %v2693, %v2709
    %v2720 = vunpack.c.l.s4 1934713408
    %v2721 = vunpack.c.0.s8 %v2720
    %v2722 = vlaneseq
    %v2723 = vshrl.u32 %v2722, 7
    %v2724 = vsub.s32 %v2721, %v2723
    %v2725 = vrot.slane %v2717, %v2724
    %v2727 = vunpack.c.l.s4 1934713408
    %v2728 = vunpack.c.0.s8 %v2727
    %v2729 = vlaneseq
    %v2730 = vshrl.u32 %v2729, 7
    %v2731 = vsub.s32 %v2728, %v2730
    %v2732 = vrot.slane %v2718, %v2731
    %v2733 = vcombine.low %v2700, %v2716
    %v2734 = vcombine.high %v2700, %v2716
    %v2736 = vunpack.c.l.s4 1934713408
    %v2737 = vunpack.c.0.s8 %v2736
    %v2738 = vlaneseq
    %v2739 = vshrl.u32 %v2738, 7
    %v2740 = vsub.s32 %v2737, %v2739
    %v2741 = vrot.slane %v2733, %v2740
    %v2743 = vunpack.c.l.s4 1934713408
    %v2744 = vunpack.c.0.s8 %v2743
    %v2745 = vlaneseq
    %v2746 = vshrl.u32 %v2745, 7
    %v2747 = vsub.s32 %v2744, %v2746
    %v2748 = vrot.slane %v2734, %v2747
    %v2749 = vcombine.high %v2725, 0.0
    %v2750 = vcombine.high %v2732, 0.0
    %v2751 = vcombine.high %v2741, 0.0
    %v2752 = vcombine.high %v2748, 0.0
    %v2753 = vcombine.low %v2657, %v2664
    %v2755 = vunpack.c.l.s4 1983009808
    %v2756 = vunpack.c.0.s8 %v2755
    %v2757 = vlaneseq
    %v2758 = vshrl.u32 %v2757, 7
    %v2759 = vsub.s32 %v2756, %v2758
    %v2760 = vrot.slane %v2753, %v2759
    %v2761 = vcombine.low %v2681, %v2682
    %v2763 = vunpack.c.l.s4 1983009808
    %v2764 = vunpack.c.0.s8 %v2763
    %v2765 = vlaneseq
    %v2766 = vshrl.u32 %v2765, 7
    %v2767 = vsub.s32 %v2764, %v2766
    %v2768 = vrot.slane %v2761, %v2767
    %v2769 = vcombine.low %v2673, %v2680
    %v2771 = vunpack.c.l.s4 1983009808
    %v2772 = vunpack.c.0.s8 %v2771
    %v2773 = vlaneseq
    %v2774 = vshrl.u32 %v2773, 7
    %v2775 = vsub.s32 %v2772, %v2774
    %v2776 = vrot.slane %v2769, %v2775
    %v2777 = vcombine.low %v2683, %v2684
    %v2779 = vunpack.c.l.s4 1983009808
    %v2780 = vunpack.c.0.s8 %v2779
    %v2781 = vlaneseq
    %v2782 = vshrl.u32 %v2781, 7
    %v2783 = vsub.s32 %v2780, %v2782
    %v2784 = vrot.slane %v2777, %v2783
    %v2785 = vcombine.low %v2760, %v2768
    %v2786 = vcombine.high %v2760, %v2768
    %v2788 = vunpack.c.l.s4 1934713408
    %v2789 = vunpack.c.0.s8 %v2788
    %v2790 = vlaneseq
    %v2791 = vshrl.u32 %v2790, 7
    %v2792 = vsub.s32 %v2789, %v2791
    %v2793 = vrot.slane %v2785, %v2792
    %v2795 = vunpack.c.l.s4 1934713408
    %v2796 = vunpack.c.0.s8 %v2795
    %v2797 = vlaneseq
    %v2798 = vshrl.u32 %v2797, 7
    %v2799 = vsub.s32 %v2796, %v2798
    %v2800 = vrot.slane %v2786, %v2799
    %v2801 = vcombine.low %v2776, %v2784
    %v2802 = vcombine.high %v2776, %v2784
    %v2804 = vunpack.c.l.s4 1934713408
    %v2805 = vunpack.c.0.s8 %v2804
    %v2806 = vlaneseq
    %v2807 = vshrl.u32 %v2806, 7
    %v2808 = vsub.s32 %v2805, %v2807
    %v2809 = vrot.slane %v2801, %v2808
    %v2811 = vunpack.c.l.s4 1934713408
    %v2812 = vunpack.c.0.s8 %v2811
    %v2813 = vlaneseq
    %v2814 = vshrl.u32 %v2813, 7
    %v2815 = vsub.s32 %v2812, %v2814
    %v2816 = vrot.slane %v2802, %v2815
    %v2817 = vcombine.low %v2793, %v2809
    %v2818 = vcombine.high %v2793, %v2809
    %v2819 = vcombine.low %v2800, %v2816
    %v2820 = vcombine.high %v2800, %v2816
    %v2821 = vcombine.low %v2725, %v2732
    %v2823 = vunpack.c.l.s4 1983009808
    %v2824 = vunpack.c.0.s8 %v2823
    %v2825 = vlaneseq
    %v2826 = vshrl.u32 %v2825, 7
    %v2827 = vsub.s32 %v2824, %v2826
    %v2828 = vrot.slane %v2821, %v2827
    %v2829 = vcombine.low %v2749, %v2750
    %v2831 = vunpack.c.l.s4 1983009808
    %v2832 = vunpack.c.0.s8 %v2831
    %v2833 = vlaneseq
    %v2834 = vshrl.u32 %v2833, 7
    %v2835 = vsub.s32 %v2832, %v2834
    %v2836 = vrot.slane %v2829, %v2835
    %v2837 = vcombine.low %v2741, %v2748
    %v2839 = vunpack.c.l.s4 1983009808
    %v2840 = vunpack.c.0.s8 %v2839
    %v2841 = vlaneseq
    %v2842 = vshrl.u32 %v2841, 7
    %v2843 = vsub.s32 %v2840, %v2842
    %v2844 = vrot.slane %v2837, %v2843
    %v2845 = vcombine.low %v2751, %v2752
    %v2847 = vunpack.c.l.s4 1983009808
    %v2848 = vunpack.c.0.s8 %v2847
    %v2849 = vlaneseq
    %v2850 = vshrl.u32 %v2849, 7
    %v2851 = vsub.s32 %v2848, %v2850
    %v2852 = vrot.slane %v2845, %v2851
    %v2853 = vcombine.low %v2828, %v2836
    %v2854 = vcombine.high %v2828, %v2836
    %v2856 = vunpack.c.l.s4 1934713408
    %v2857 = vunpack.c.0.s8 %v2856
    %v2858 = vlaneseq
    %v2859 = vshrl.u32 %v2858, 7
    %v2860 = vsub.s32 %v2857, %v2859
    %v2861 = vrot.slane %v2853, %v2860
    %v2863 = vunpack.c.l.s4 1934713408
    %v2864 = vunpack.c.0.s8 %v2863
    %v2865 = vlaneseq
    %v2866 = vshrl.u32 %v2865, 7
    %v2867 = vsub.s32 %v2864, %v2866
    %v2868 = vrot.slane %v2854, %v2867
    %v2869 = vcombine.low %v2844, %v2852
    %v2870 = vcombine.high %v2844, %v2852
    %v2872 = vunpack.c.l.s4 1934713408
    %v2873 = vunpack.c.0.s8 %v2872
    %v2874 = vlaneseq
    %v2875 = vshrl.u32 %v2874, 7
    %v2876 = vsub.s32 %v2873, %v2875
    %v2877 = vrot.slane %v2869, %v2876
    %v2879 = vunpack.c.l.s4 1934713408
    %v2880 = vunpack.c.0.s8 %v2879
    %v2881 = vlaneseq
    %v2882 = vshrl.u32 %v2881, 7
    %v2883 = vsub.s32 %v2880, %v2882
    %v2884 = vrot.slane %v2870, %v2883
    %v2885 = vcombine.low %v2861, %v2877
    %v2886 = vcombine.high %v2861, %v2877
    %v2887 = vcombine.low %v2868, %v2884
    %v2888 = vcombine.high %v2868, %v2884
    %v2889 = vpack.c.bf16 %v2885, %v2817
    %v2890 = vpack.c.bf16 %v2886, %v2818
    %v2891 = vpack.c.bf16 %v2887, %v2819
    %v2892 = vpack.c.bf16 %v2888, %v2820
    %2893 = vrot.lane.b32.xlu0 %v2275, 64
    %v2894 = vpop.permute.xlu0 %2893
    %2895 = vrot.lane.b32.xlu0 %v2278, 64
    %v2896 = vpop.permute.xlu0 %2895
    %2897 = vrot.lane.b32.xlu0 %v2582, 64
    %v2898 = vpop.permute.xlu0 %2897
    %2899 = vrot.lane.b32.xlu0 %v2584, 64
    %v2900 = vpop.permute.xlu0 %2899
    %2901 = vrot.lane.b32.xlu0 %v2586, 64
    %v2902 = vpop.permute.xlu0 %2901
    %2903 = vrot.lane.b32.xlu0 %v2588, 64
    %v2904 = vpop.permute.xlu0 %2903
    %2905 = vrot.lane.b32.xlu0 %v2590, 64
    %v2906 = vpop.permute.xlu0 %2905
    %2907 = vrot.lane.b32.xlu0 %v2592, 64
    %v2908 = vpop.permute.xlu0 %2907
    %v2917 = vcombine.low %v2894, %v2902
    %v2918 = vcombine.high %v2894, %v2902
    %v2920 = vunpack.c.l.s4 1983009808
    %v2921 = vunpack.c.0.s8 %v2920
    %v2922 = vlaneseq
    %v2923 = vshrl.u32 %v2922, 7
    %v2924 = vsub.s32 %v2921, %v2923
    %v2925 = vrot.slane %v2917, %v2924
    %v2927 = vunpack.c.l.s4 1983009808
    %v2928 = vunpack.c.0.s8 %v2927
    %v2929 = vlaneseq
    %v2930 = vshrl.u32 %v2929, 7
    %v2931 = vsub.s32 %v2928, %v2930
    %v2932 = vrot.slane %v2918, %v2931
    %v2933 = vcombine.low %v2898, %v2906
    %v2934 = vcombine.high %v2898, %v2906
    %v2936 = vunpack.c.l.s4 1983009808
    %v2937 = vunpack.c.0.s8 %v2936
    %v2938 = vlaneseq
    %v2939 = vshrl.u32 %v2938, 7
    %v2940 = vsub.s32 %v2937, %v2939
    %v2941 = vrot.slane %v2933, %v2940
    %v2943 = vunpack.c.l.s4 1983009808
    %v2944 = vunpack.c.0.s8 %v2943
    %v2945 = vlaneseq
    %v2946 = vshrl.u32 %v2945, 7
    %v2947 = vsub.s32 %v2944, %v2946
    %v2948 = vrot.slane %v2934, %v2947
    %v2949 = vcombine.low %v2925, %v2941
    %v2950 = vcombine.high %v2925, %v2941
    %v2952 = vunpack.c.l.s4 1934713408
    %v2953 = vunpack.c.0.s8 %v2952
    %v2954 = vlaneseq
    %v2955 = vshrl.u32 %v2954, 7
    %v2956 = vsub.s32 %v2953, %v2955
    %v2957 = vrot.slane %v2949, %v2956
    %v2959 = vunpack.c.l.s4 1934713408
    %v2960 = vunpack.c.0.s8 %v2959
    %v2961 = vlaneseq
    %v2962 = vshrl.u32 %v2961, 7
    %v2963 = vsub.s32 %v2960, %v2962
    %v2964 = vrot.slane %v2950, %v2963
    %v2965 = vcombine.low %v2932, %v2948
    %v2966 = vcombine.high %v2932, %v2948
    %v2968 = vunpack.c.l.s4 1934713408
    %v2969 = vunpack.c.0.s8 %v2968
    %v2970 = vlaneseq
    %v2971 = vshrl.u32 %v2970, 7
    %v2972 = vsub.s32 %v2969, %v2971
    %v2973 = vrot.slane %v2965, %v2972
    %v2975 = vunpack.c.l.s4 1934713408
    %v2976 = vunpack.c.0.s8 %v2975
    %v2977 = vlaneseq
    %v2978 = vshrl.u32 %v2977, 7
    %v2979 = vsub.s32 %v2976, %v2978
    %v2980 = vrot.slane %v2966, %v2979
    %v2981 = vcombine.high %v2957, 0.0
    %v2982 = vcombine.high %v2964, 0.0
    %v2983 = vcombine.high %v2973, 0.0
    %v2984 = vcombine.high %v2980, 0.0
    %v2985 = vcombine.low %v2896, %v2904
    %v2986 = vcombine.high %v2896, %v2904
    %v2988 = vunpack.c.l.s4 1983009808
    %v2989 = vunpack.c.0.s8 %v2988
    %v2990 = vlaneseq
    %v2991 = vshrl.u32 %v2990, 7
    %v2992 = vsub.s32 %v2989, %v2991
    %v2993 = vrot.slane %v2985, %v2992
    %v2995 = vunpack.c.l.s4 1983009808
    %v2996 = vunpack.c.0.s8 %v2995
    %v2997 = vlaneseq
    %v2998 = vshrl.u32 %v2997, 7
    %v2999 = vsub.s32 %v2996, %v2998
    %v3000 = vrot.slane %v2986, %v2999
    %v3001 = vcombine.low %v2900, %v2908
    %v3002 = vcombine.high %v2900, %v2908
    %v3004 = vunpack.c.l.s4 1983009808
    %v3005 = vunpack.c.0.s8 %v3004
    %v3006 = vlaneseq
    %v3007 = vshrl.u32 %v3006, 7
    %v3008 = vsub.s32 %v3005, %v3007
    %v3009 = vrot.slane %v3001, %v3008
    %v3011 = vunpack.c.l.s4 1983009808
    %v3012 = vunpack.c.0.s8 %v3011
    %v3013 = vlaneseq
    %v3014 = vshrl.u32 %v3013, 7
    %v3015 = vsub.s32 %v3012, %v3014
    %v3016 = vrot.slane %v3002, %v3015
    %v3017 = vcombine.low %v2993, %v3009
    %v3018 = vcombine.high %v2993, %v3009
    %v3020 = vunpack.c.l.s4 1934713408
    %v3021 = vunpack.c.0.s8 %v3020
    %v3022 = vlaneseq
    %v3023 = vshrl.u32 %v3022, 7
    %v3024 = vsub.s32 %v3021, %v3023
    %v3025 = vrot.slane %v3017, %v3024
    %v3027 = vunpack.c.l.s4 1934713408
    %v3028 = vunpack.c.0.s8 %v3027
    %v3029 = vlaneseq
    %v3030 = vshrl.u32 %v3029, 7
    %v3031 = vsub.s32 %v3028, %v3030
    %v3032 = vrot.slane %v3018, %v3031
    %v3033 = vcombine.low %v3000, %v3016
    %v3034 = vcombine.high %v3000, %v3016
    %v3036 = vunpack.c.l.s4 1934713408
    %v3037 = vunpack.c.0.s8 %v3036
    %v3038 = vlaneseq
    %v3039 = vshrl.u32 %v3038, 7
    %v3040 = vsub.s32 %v3037, %v3039
    %v3041 = vrot.slane %v3033, %v3040
    %v3043 = vunpack.c.l.s4 1934713408
    %v3044 = vunpack.c.0.s8 %v3043
    %v3045 = vlaneseq
    %v3046 = vshrl.u32 %v3045, 7
    %v3047 = vsub.s32 %v3044, %v3046
    %v3048 = vrot.slane %v3034, %v3047
    %v3049 = vcombine.high %v3025, 0.0
    %v3050 = vcombine.high %v3032, 0.0
    %v3051 = vcombine.high %v3041, 0.0
    %v3052 = vcombine.high %v3048, 0.0
    %v3053 = vcombine.low %v2957, %v2964
    %v3055 = vunpack.c.l.s4 1983009808
    %v3056 = vunpack.c.0.s8 %v3055
    %v3057 = vlaneseq
    %v3058 = vshrl.u32 %v3057, 7
    %v3059 = vsub.s32 %v3056, %v3058
    %v3060 = vrot.slane %v3053, %v3059
    %v3061 = vcombine.low %v2981, %v2982
    %v3063 = vunpack.c.l.s4 1983009808
    %v3064 = vunpack.c.0.s8 %v3063
    %v3065 = vlaneseq
    %v3066 = vshrl.u32 %v3065, 7
    %v3067 = vsub.s32 %v3064, %v3066
    %v3068 = vrot.slane %v3061, %v3067
    %v3069 = vcombine.low %v2973, %v2980
    %v3071 = vunpack.c.l.s4 1983009808
    %v3072 = vunpack.c.0.s8 %v3071
    %v3073 = vlaneseq
    %v3074 = vshrl.u32 %v3073, 7
    %v3075 = vsub.s32 %v3072, %v3074
    %v3076 = vrot.slane %v3069, %v3075
    %v3077 = vcombine.low %v2983, %v2984
    %v3079 = vunpack.c.l.s4 1983009808
    %v3080 = vunpack.c.0.s8 %v3079
    %v3081 = vlaneseq
    %v3082 = vshrl.u32 %v3081, 7
    %v3083 = vsub.s32 %v3080, %v3082
    %v3084 = vrot.slane %v3077, %v3083
    %v3085 = vcombine.low %v3060, %v3068
    %v3086 = vcombine.high %v3060, %v3068
    %v3088 = vunpack.c.l.s4 1934713408
    %v3089 = vunpack.c.0.s8 %v3088
    %v3090 = vlaneseq
    %v3091 = vshrl.u32 %v3090, 7
    %v3092 = vsub.s32 %v3089, %v3091
    %v3093 = vrot.slane %v3085, %v3092
    %v3095 = vunpack.c.l.s4 1934713408
    %v3096 = vunpack.c.0.s8 %v3095
    %v3097 = vlaneseq
    %v3098 = vshrl.u32 %v3097, 7
    %v3099 = vsub.s32 %v3096, %v3098
    %v3100 = vrot.slane %v3086, %v3099
    %v3101 = vcombine.low %v3076, %v3084
    %v3102 = vcombine.high %v3076, %v3084
    %v3104 = vunpack.c.l.s4 1934713408
    %v3105 = vunpack.c.0.s8 %v3104
    %v3106 = vlaneseq
    %v3107 = vshrl.u32 %v3106, 7
    %v3108 = vsub.s32 %v3105, %v3107
    %v3109 = vrot.slane %v3101, %v3108
    %v3111 = vunpack.c.l.s4 1934713408
    %v3112 = vunpack.c.0.s8 %v3111
    %v3113 = vlaneseq
    %v3114 = vshrl.u32 %v3113, 7
    %v3115 = vsub.s32 %v3112, %v3114
    %v3116 = vrot.slane %v3102, %v3115
    %v3117 = vcombine.low %v3093, %v3109
    %v3118 = vcombine.high %v3093, %v3109
    %v3119 = vcombine.low %v3100, %v3116
    %v3120 = vcombine.high %v3100, %v3116
    %v3121 = vcombine.low %v3025, %v3032
    %v3123 = vunpack.c.l.s4 1983009808
    %v3124 = vunpack.c.0.s8 %v3123
    %v3125 = vlaneseq
    %v3126 = vshrl.u32 %v3125, 7
    %v3127 = vsub.s32 %v3124, %v3126
    %v3128 = vrot.slane %v3121, %v3127
    %v3129 = vcombine.low %v3049, %v3050
    %v3131 = vunpack.c.l.s4 1983009808
    %v3132 = vunpack.c.0.s8 %v3131
    %v3133 = vlaneseq
    %v3134 = vshrl.u32 %v3133, 7
    %v3135 = vsub.s32 %v3132, %v3134
    %v3136 = vrot.slane %v3129, %v3135
    %v3137 = vcombine.low %v3041, %v3048
    %v3139 = vunpack.c.l.s4 1983009808
    %v3140 = vunpack.c.0.s8 %v3139
    %v3141 = vlaneseq
    %v3142 = vshrl.u32 %v3141, 7
    %v3143 = vsub.s32 %v3140, %v3142
    %v3144 = vrot.slane %v3137, %v3143
    %v3145 = vcombine.low %v3051, %v3052
    %v3147 = vunpack.c.l.s4 1983009808
    %v3148 = vunpack.c.0.s8 %v3147
    %v3149 = vlaneseq
    %v3150 = vshrl.u32 %v3149, 7
    %v3151 = vsub.s32 %v3148, %v3150
    %v3152 = vrot.slane %v3145, %v3151
    %v3153 = vcombine.low %v3128, %v3136
    %v3154 = vcombine.high %v3128, %v3136
    %v3156 = vunpack.c.l.s4 1934713408
    %v3157 = vunpack.c.0.s8 %v3156
    %v3158 = vlaneseq
    %v3159 = vshrl.u32 %v3158, 7
    %v3160 = vsub.s32 %v3157, %v3159
    %v3161 = vrot.slane %v3153, %v3160
    %v3163 = vunpack.c.l.s4 1934713408
    %v3164 = vunpack.c.0.s8 %v3163
    %v3165 = vlaneseq
    %v3166 = vshrl.u32 %v3165, 7
    %v3167 = vsub.s32 %v3164, %v3166
    %v3168 = vrot.slane %v3154, %v3167
    %v3169 = vcombine.low %v3144, %v3152
    %v3170 = vcombine.high %v3144, %v3152
    %v3172 = vunpack.c.l.s4 1934713408
    %v3173 = vunpack.c.0.s8 %v3172
    %v3174 = vlaneseq
    %v3175 = vshrl.u32 %v3174, 7
    %v3176 = vsub.s32 %v3173, %v3175
    %v3177 = vrot.slane %v3169, %v3176
    %v3179 = vunpack.c.l.s4 1934713408
    %v3180 = vunpack.c.0.s8 %v3179
    %v3181 = vlaneseq
    %v3182 = vshrl.u32 %v3181, 7
    %v3183 = vsub.s32 %v3180, %v3182
    %v3184 = vrot.slane %v3170, %v3183
    %v3185 = vcombine.low %v3161, %v3177
    %v3186 = vcombine.high %v3161, %v3177
    %v3187 = vcombine.low %v3168, %v3184
    %v3188 = vcombine.high %v3168, %v3184
    %v3189 = vpack.c.bf16 %v3185, %v3117
    %v3190 = vpack.c.bf16 %v3186, %v3118
    %v3191 = vpack.c.bf16 %v3187, %v3119
    %v3192 = vpack.c.bf16 %v3188, %v3120
    %v3194 = vsel %vm1095, %v2575, 0
    %v3197 = vsel %vm1095, %v2889, 0
    %3199 = vmatprep.subr.bf16.mxu0 0
    %3200 = vmatpush1.bf16.xpose.msra.mxu0 0
    %3201 = vmatprep.subr.bf16.mxu0 0
    %3202 = vmatpush1.bf16.xpose.msra.mxu0 0
    %3203 = vmatprep.subr.bf16.mxu0 0
    %3204 = vmatpush1.bf16.xpose.msra.mxu0 0
    %3205 = vmatprep.subr.bf16.mxu0 0
    %3206 = vmatpush1.bf16.xpose.msra.mxu0 0
    %3207 = vmatprep.subr.bf16.mxu0 0
    %3208 = vmatpush1.bf16.xpose.msra.mxu0 0
    %3209 = vmatprep.subr.bf16.mxu0 0
    %3210 = vmatpush1.bf16.xpose.msra.mxu0 0
    %3211 = vmatprep.subr.bf16.mxu0 0
    %3212 = vmatpush1.bf16.xpose.msra.mxu0 0
    %3213 = vmatprep.subr.bf16.mxu0 0
    %3214 = vmatpush1.bf16.xpose.msra.mxu0 %v3197
    %3215 = vmatprep.subr.bf16.mxu0 0
    %3216 = vmatpush2.bf16.xpose.msra.mxu0 0
    %3217 = vmatprep.subr.bf16.mxu0 0
    %3218 = vmatpush2.bf16.xpose.msra.mxu0 0
    %3219 = vmatprep.subr.bf16.mxu0 0
    %3220 = vmatpush2.bf16.xpose.msra.mxu0 0
    %3221 = vmatprep.subr.bf16.mxu0 0
    %3222 = vmatpush2.bf16.xpose.msra.mxu0 0
    %3223 = vmatprep.subr.bf16.mxu0 0
    %3224 = vmatpush2.bf16.xpose.msra.mxu0 0
    %3225 = vmatprep.subr.bf16.mxu0 0
    %3226 = vmatpush2.bf16.xpose.msra.mxu0 0
    %3227 = vmatprep.subr.bf16.mxu0 0
    %3228 = vmatpush2.bf16.xpose.msra.mxu0 0
    %3229 = vmatprep.subr.bf16.mxu0 0
    %3230 = vmatpush2.bf16.xpose.msra.mxu0 0
    %3231 = vmatprep.mubr.bf16.mxu0 0
    %3232 = vmatmul.mubr.bf16.gmra.mxu0 %v3194
    %v3233 = vpop.f32.mrf.mxu0
    %v3234 = vadd.f32 %v74, %v3233
    %v3235 = vpop.f32.mrf.mxu0
    %v3236 = vpop.f32.mrf.mxu0
    %v3237 = vadd.f32 %v75, %v3236
    %v3238 = vpop.f32.mrf.mxu0
    %3239 = vdwg.mxu0
    %v3241 = vsel %vm1095, %v2576, 0
    %v3244 = vsel %vm1095, %v2890, 0
    %3246 = vmatprep.subr.bf16.mxu0 0
    %3247 = vmatpush1.bf16.xpose.msra.mxu0 0
    %3248 = vmatprep.subr.bf16.mxu0 0
    %3249 = vmatpush1.bf16.xpose.msra.mxu0 0
    %3250 = vmatprep.subr.bf16.mxu0 0
    %3251 = vmatpush1.bf16.xpose.msra.mxu0 0
    %3252 = vmatprep.subr.bf16.mxu0 0
    %3253 = vmatpush1.bf16.xpose.msra.mxu0 0
    %3254 = vmatprep.subr.bf16.mxu0 0
    %3255 = vmatpush1.bf16.xpose.msra.mxu0 0
    %3256 = vmatprep.subr.bf16.mxu0 0
    %3257 = vmatpush1.bf16.xpose.msra.mxu0 0
    %3258 = vmatprep.subr.bf16.mxu0 0
    %3259 = vmatpush1.bf16.xpose.msra.mxu0 0
    %3260 = vmatprep.subr.bf16.mxu0 0
    %3261 = vmatpush1.bf16.xpose.msra.mxu0 %v3244
    %3262 = vmatprep.subr.bf16.mxu0 0
    %3263 = vmatpush2.bf16.xpose.msra.mxu0 0
    %3264 = vmatprep.subr.bf16.mxu0 0
    %3265 = vmatpush2.bf16.xpose.msra.mxu0 0
    %3266 = vmatprep.subr.bf16.mxu0 0
    %3267 = vmatpush2.bf16.xpose.msra.mxu0 0
    %3268 = vmatprep.subr.bf16.mxu0 0
    %3269 = vmatpush2.bf16.xpose.msra.mxu0 0
    %3270 = vmatprep.subr.bf16.mxu0 0
    %3271 = vmatpush2.bf16.xpose.msra.mxu0 0
    %3272 = vmatprep.subr.bf16.mxu0 0
    %3273 = vmatpush2.bf16.xpose.msra.mxu0 0
    %3274 = vmatprep.subr.bf16.mxu0 0
    %3275 = vmatpush2.bf16.xpose.msra.mxu0 0
    %3276 = vmatprep.subr.bf16.mxu0 0
    %3277 = vmatpush2.bf16.xpose.msra.mxu0 0
    %3278 = vmatprep.mubr.bf16.mxu0 0
    %3279 = vmatmul.mubr.bf16.gmra.mxu0 %v3241
    %v3280 = vpop.f32.mrf.mxu0
    %v3281 = vadd.f32 %v74, %v3280
    %v3282 = vpop.f32.mrf.mxu0
    %v3283 = vpop.f32.mrf.mxu0
    %v3284 = vadd.f32 %v75, %v3283
    %v3285 = vpop.f32.mrf.mxu0
    %3286 = vdwg.mxu0
    %v3288 = vsel %vm1095, %v2577, 0
    %v3291 = vsel %vm1095, %v2891, 0
    %3293 = vmatprep.subr.bf16.mxu0 0
    %3294 = vmatpush1.bf16.xpose.msra.mxu0 0
    %3295 = vmatprep.subr.bf16.mxu0 0
    %3296 = vmatpush1.bf16.xpose.msra.mxu0 0
    %3297 = vmatprep.subr.bf16.mxu0 0
    %3298 = vmatpush1.bf16.xpose.msra.mxu0 0
    %3299 = vmatprep.subr.bf16.mxu0 0
    %3300 = vmatpush1.bf16.xpose.msra.mxu0 0
    %3301 = vmatprep.subr.bf16.mxu0 0
    %3302 = vmatpush1.bf16.xpose.msra.mxu0 0
    %3303 = vmatprep.subr.bf16.mxu0 0
    %3304 = vmatpush1.bf16.xpose.msra.mxu0 0
    %3305 = vmatprep.subr.bf16.mxu0 0
    %3306 = vmatpush1.bf16.xpose.msra.mxu0 0
    %3307 = vmatprep.subr.bf16.mxu0 0
    %3308 = vmatpush1.bf16.xpose.msra.mxu0 %v3291
    %3309 = vmatprep.subr.bf16.mxu0 0
    %3310 = vmatpush2.bf16.xpose.msra.mxu0 0
    %3311 = vmatprep.subr.bf16.mxu0 0
    %3312 = vmatpush2.bf16.xpose.msra.mxu0 0
    %3313 = vmatprep.subr.bf16.mxu0 0
    %3314 = vmatpush2.bf16.xpose.msra.mxu0 0
    %3315 = vmatprep.subr.bf16.mxu0 0
    %3316 = vmatpush2.bf16.xpose.msra.mxu0 0
    %3317 = vmatprep.subr.bf16.mxu0 0
    %3318 = vmatpush2.bf16.xpose.msra.mxu0 0
    %3319 = vmatprep.subr.bf16.mxu0 0
    %3320 = vmatpush2.bf16.xpose.msra.mxu0 0
    %3321 = vmatprep.subr.bf16.mxu0 0
    %3322 = vmatpush2.bf16.xpose.msra.mxu0 0
    %3323 = vmatprep.subr.bf16.mxu0 0
    %3324 = vmatpush2.bf16.xpose.msra.mxu0 0
    %3325 = vmatprep.mubr.bf16.mxu0 0
    %3326 = vmatmul.mubr.bf16.gmra.mxu0 %v3288
    %v3327 = vpop.f32.mrf.mxu0
    %v3328 = vadd.f32 %v74, %v3327
    %v3329 = vpop.f32.mrf.mxu0
    %v3330 = vpop.f32.mrf.mxu0
    %v3331 = vadd.f32 %v75, %v3330
    %v3332 = vpop.f32.mrf.mxu0
    %3333 = vdwg.mxu0
    %v3335 = vsel %vm1095, %v2578, 0
    %v3338 = vsel %vm1095, %v2892, 0
    %3340 = vmatprep.subr.bf16.mxu0 0
    %3341 = vmatpush1.bf16.xpose.msra.mxu0 0
    %3342 = vmatprep.subr.bf16.mxu0 0
    %3343 = vmatpush1.bf16.xpose.msra.mxu0 0
    %3344 = vmatprep.subr.bf16.mxu0 0
    %3345 = vmatpush1.bf16.xpose.msra.mxu0 0
    %3346 = vmatprep.subr.bf16.mxu0 0
    %3347 = vmatpush1.bf16.xpose.msra.mxu0 0
    %3348 = vmatprep.subr.bf16.mxu0 0
    %3349 = vmatpush1.bf16.xpose.msra.mxu0 0
    %3350 = vmatprep.subr.bf16.mxu0 0
    %3351 = vmatpush1.bf16.xpose.msra.mxu0 0
    %3352 = vmatprep.subr.bf16.mxu0 0
    %3353 = vmatpush1.bf16.xpose.msra.mxu0 0
    %3354 = vmatprep.subr.bf16.mxu0 0
    %3355 = vmatpush1.bf16.xpose.msra.mxu0 %v3338
    %3356 = vmatprep.subr.bf16.mxu0 0
    %3357 = vmatpush2.bf16.xpose.msra.mxu0 0
    %3358 = vmatprep.subr.bf16.mxu0 0
    %3359 = vmatpush2.bf16.xpose.msra.mxu0 0
    %3360 = vmatprep.subr.bf16.mxu0 0
    %3361 = vmatpush2.bf16.xpose.msra.mxu0 0
    %3362 = vmatprep.subr.bf16.mxu0 0
    %3363 = vmatpush2.bf16.xpose.msra.mxu0 0
    %3364 = vmatprep.subr.bf16.mxu0 0
    %3365 = vmatpush2.bf16.xpose.msra.mxu0 0
    %3366 = vmatprep.subr.bf16.mxu0 0
    %3367 = vmatpush2.bf16.xpose.msra.mxu0 0
    %3368 = vmatprep.subr.bf16.mxu0 0
    %3369 = vmatpush2.bf16.xpose.msra.mxu0 0
    %3370 = vmatprep.subr.bf16.mxu0 0
    %3371 = vmatpush2.bf16.xpose.msra.mxu0 0
    %3372 = vmatprep.mubr.bf16.mxu0 0
    %3373 = vmatmul.mubr.bf16.gmra.mxu0 %v3335
    %v3374 = vpop.f32.mrf.mxu0
    %v3375 = vadd.f32 %v74, %v3374
    %v3376 = vpop.f32.mrf.mxu0
    %v3377 = vpop.f32.mrf.mxu0
    %v3378 = vadd.f32 %v75, %v3377
    %v3379 = vpop.f32.mrf.mxu0
    %3380 = vdwg.mxu0
    %v3381 = vsel %vm1284, %v3234, -inf
    %3382 = vmax.xlane.f32.xlu0 %v3381
    %v3383 = vpop.xlane.xlu0 %3382
    %v3384 = vsel %vm1284, %v3237, -inf
    %3385 = vmax.xlane.f32.xlu0 %v3384
    %v3386 = vpop.xlane.xlu0 %3385
    %v3387 = vsel %vm1284, %v3281, -inf
    %3388 = vmax.xlane.f32.xlu0 %v3387
    %v3389 = vpop.xlane.xlu0 %3388
    %v3390 = vsel %vm1284, %v3284, -inf
    %3391 = vmax.xlane.f32.xlu0 %v3390
    %v3392 = vpop.xlane.xlu0 %3391
    %v3393 = vsel %vm1284, %v3328, -inf
    %3394 = vmax.xlane.f32.xlu0 %v3393
    %v3395 = vpop.xlane.xlu0 %3394
    %v3396 = vsel %vm1284, %v3331, -inf
    %3397 = vmax.xlane.f32.xlu0 %v3396
    %v3398 = vpop.xlane.xlu0 %3397
    %v3399 = vsel %vm1284, %v3375, -inf
    %3400 = vmax.xlane.f32.xlu0 %v3399
    %v3401 = vpop.xlane.xlu0 %3400
    %v3402 = vsel %vm1284, %v3378, -inf
    %3403 = vmax.xlane.f32.xlu0 %v3402
    %v3404 = vpop.xlane.xlu0 %3403
    %v3405 = vsub.f32 %v3234, %v3383
    %v3406 = vsub.f32 %v3237, %v3386
    %v3407 = vsub.f32 %v3281, %v3389
    %v3408 = vsub.f32 %v3284, %v3392
    %v3409 = vsub.f32 %v3328, %v3395
    %v3410 = vsub.f32 %v3331, %v3398
    %v3411 = vsub.f32 %v3375, %v3401
    %v3412 = vsub.f32 %v3378, %v3404
    %v3413 = vmul.f32 %v3405, 1.442695
    %v3414 = vpow.pop %v3413
    %v3415 = vmul.f32 %v3406, 1.442695
    %v3416 = vpow.pop %v3415
    %v3417 = vmul.f32 %v3407, 1.442695
    %v3418 = vpow.pop %v3417
    %v3419 = vmul.f32 %v3408, 1.442695
    %v3420 = vpow.pop %v3419
    %v3421 = vmul.f32 %v3409, 1.442695
    %v3422 = vpow.pop %v3421
    %v3423 = vmul.f32 %v3410, 1.442695
    %v3424 = vpow.pop %v3423
    %v3425 = vmul.f32 %v3411, 1.442695
    %v3426 = vpow.pop %v3425
    %v3427 = vmul.f32 %v3412, 1.442695
    %v3428 = vpow.pop %v3427
    %v3429 = vsel %vm1284, %v3414, 0.0
    %3430 = vadd.xlane.f32.xlu0 %v3429
    %v3431 = vpop.xlane.xlu0 %3430
    %v3432 = vsel %vm1284, %v3416, 0.0
    %3433 = vadd.xlane.f32.xlu0 %v3432
    %v3434 = vpop.xlane.xlu0 %3433
    %v3435 = vsel %vm1284, %v3418, 0.0
    %3436 = vadd.xlane.f32.xlu0 %v3435
    %v3437 = vpop.xlane.xlu0 %3436
    %v3438 = vsel %vm1284, %v3420, 0.0
    %3439 = vadd.xlane.f32.xlu0 %v3438
    %v3440 = vpop.xlane.xlu0 %3439
    %v3441 = vsel %vm1284, %v3422, 0.0
    %3442 = vadd.xlane.f32.xlu0 %v3441
    %v3443 = vpop.xlane.xlu0 %3442
    %v3444 = vsel %vm1284, %v3424, 0.0
    %3445 = vadd.xlane.f32.xlu0 %v3444
    %v3446 = vpop.xlane.xlu0 %3445
    %v3447 = vsel %vm1284, %v3426, 0.0
    %3448 = vadd.xlane.f32.xlu0 %v3447
    %v3449 = vpop.xlane.xlu0 %3448
    %v3450 = vsel %vm1284, %v3428, 0.0
    %3451 = vadd.xlane.f32.xlu0 %v3450
    %v3452 = vpop.xlane.xlu0 %3451
    %v3453 = vrcp.pop %v3431
    %v3454 = vrcp.pop %v3434
    %v3455 = vrcp.pop %v3437
    %v3456 = vrcp.pop %v3440
    %v3457 = vrcp.pop %v3443
    %v3458 = vrcp.pop %v3446
    %v3459 = vrcp.pop %v3449
    %v3460 = vrcp.pop %v3452
    %v3461 = vmul.f32 %v3414, %v3453
    %v3462 = vmul.f32 %v3416, %v3454
    %v3463 = vmul.f32 %v3418, %v3455
    %v3464 = vmul.f32 %v3420, %v3456
    %v3465 = vmul.f32 %v3422, %v3457
    %v3466 = vmul.f32 %v3424, %v3458
    %v3467 = vmul.f32 %v3426, %v3459
    %v3468 = vmul.f32 %v3428, %v3460
    %v3469 = vpack.c.bf16 %v3462, %v3461
    %v3470 = vpack.c.bf16 %v3464, %v3463
    %v3471 = vpack.c.bf16 %v3466, %v3465
    %v3472 = vpack.c.bf16 %v3468, %v3467
    %v3474 = vsel %vm1284, %v3469, 0
    %3476 = vmatprep.subr.bf16.mxu0 0
    %3477 = vmatpush1.bf16.msra.mxu0 0
    %3478 = vmatprep.subr.bf16.mxu0 0
    %3479 = vmatpush1.bf16.msra.mxu0 0
    %3480 = vmatprep.subr.bf16.mxu0 0
    %3481 = vmatpush1.bf16.msra.mxu0 0
    %3482 = vmatprep.subr.bf16.mxu0 0
    %3483 = vmatpush1.bf16.msra.mxu0 0
    %3484 = vmatprep.subr.bf16.mxu0 0
    %3485 = vmatpush1.bf16.msra.mxu0 0
    %3486 = vmatprep.subr.bf16.mxu0 0
    %3487 = vmatpush1.bf16.msra.mxu0 0
    %3488 = vmatprep.subr.bf16.mxu0 0
    %3489 = vmatpush1.bf16.msra.mxu0 0
    %3490 = vmatprep.subr.bf16.mxu0 0
    %3491 = vmatpush1.bf16.msra.mxu0 %v3189
    %3492 = vmatprep.subr.bf16.mxu0 0
    %3493 = vmatpush2.bf16.msra.mxu0 0
    %3494 = vmatprep.subr.bf16.mxu0 0
    %3495 = vmatpush2.bf16.msra.mxu0 0
    %3496 = vmatprep.subr.bf16.mxu0 0
    %3497 = vmatpush2.bf16.msra.mxu0 0
    %3498 = vmatprep.subr.bf16.mxu0 0
    %3499 = vmatpush2.bf16.msra.mxu0 0
    %3500 = vmatprep.subr.bf16.mxu0 0
    %3501 = vmatpush2.bf16.msra.mxu0 0
    %3502 = vmatprep.subr.bf16.mxu0 0
    %3503 = vmatpush2.bf16.msra.mxu0 0
    %3504 = vmatprep.subr.bf16.mxu0 0
    %3505 = vmatpush2.bf16.msra.mxu0 0
    %3506 = vmatprep.subr.bf16.mxu0 0
    %3507 = vmatpush2.bf16.msra.mxu0 0
    %3508 = vmatprep.mubr.bf16.mxu0 0
    %3509 = vmatmul.mubr.bf16.gmra.mxu0 %v3474
    %v3510 = vpop.f32.mrf.mxu0
    %v3511 = vadd.f32 0.0, %v3510
    %v3512 = vpop.f32.mrf.mxu0
    %v3513 = vpop.f32.mrf.mxu0
    %v3514 = vadd.f32 0.0, %v3513
    %v3515 = vpop.f32.mrf.mxu0
    %3516 = vdwg.mxu0
    %v3518 = vsel %vm1284, %v3470, 0
    %3520 = vmatprep.subr.bf16.mxu0 0
    %3521 = vmatpush1.bf16.msra.mxu0 0
    %3522 = vmatprep.subr.bf16.mxu0 0
    %3523 = vmatpush1.bf16.msra.mxu0 0
    %3524 = vmatprep.subr.bf16.mxu0 0
    %3525 = vmatpush1.bf16.msra.mxu0 0
    %3526 = vmatprep.subr.bf16.mxu0 0
    %3527 = vmatpush1.bf16.msra.mxu0 0
    %3528 = vmatprep.subr.bf16.mxu0 0
    %3529 = vmatpush1.bf16.msra.mxu0 0
    %3530 = vmatprep.subr.bf16.mxu0 0
    %3531 = vmatpush1.bf16.msra.mxu0 0
    %3532 = vmatprep.subr.bf16.mxu0 0
    %3533 = vmatpush1.bf16.msra.mxu0 0
    %3534 = vmatprep.subr.bf16.mxu0 0
    %3535 = vmatpush1.bf16.msra.mxu0 %v3190
    %3536 = vmatprep.subr.bf16.mxu0 0
    %3537 = vmatpush2.bf16.msra.mxu0 0
    %3538 = vmatprep.subr.bf16.mxu0 0
    %3539 = vmatpush2.bf16.msra.mxu0 0
    %3540 = vmatprep.subr.bf16.mxu0 0
    %3541 = vmatpush2.bf16.msra.mxu0 0
    %3542 = vmatprep.subr.bf16.mxu0 0
    %3543 = vmatpush2.bf16.msra.mxu0 0
    %3544 = vmatprep.subr.bf16.mxu0 0
    %3545 = vmatpush2.bf16.msra.mxu0 0
    %3546 = vmatprep.subr.bf16.mxu0 0
    %3547 = vmatpush2.bf16.msra.mxu0 0
    %3548 = vmatprep.subr.bf16.mxu0 0
    %3549 = vmatpush2.bf16.msra.mxu0 0
    %3550 = vmatprep.subr.bf16.mxu0 0
    %3551 = vmatpush2.bf16.msra.mxu0 0
    %3552 = vmatprep.mubr.bf16.mxu0 0
    %3553 = vmatmul.mubr.bf16.gmra.mxu0 %v3518
    %v3554 = vpop.f32.mrf.mxu0
    %v3555 = vadd.f32 0.0, %v3554
    %v3556 = vpop.f32.mrf.mxu0
    %v3557 = vpop.f32.mrf.mxu0
    %v3558 = vadd.f32 0.0, %v3557
    %v3559 = vpop.f32.mrf.mxu0
    %3560 = vdwg.mxu0
    %v3562 = vsel %vm1284, %v3471, 0
    %3564 = vmatprep.subr.bf16.mxu0 0
    %3565 = vmatpush1.bf16.msra.mxu0 0
    %3566 = vmatprep.subr.bf16.mxu0 0
    %3567 = vmatpush1.bf16.msra.mxu0 0
    %3568 = vmatprep.subr.bf16.mxu0 0
    %3569 = vmatpush1.bf16.msra.mxu0 0
    %3570 = vmatprep.subr.bf16.mxu0 0
    %3571 = vmatpush1.bf16.msra.mxu0 0
    %3572 = vmatprep.subr.bf16.mxu0 0
    %3573 = vmatpush1.bf16.msra.mxu0 0
    %3574 = vmatprep.subr.bf16.mxu0 0
    %3575 = vmatpush1.bf16.msra.mxu0 0
    %3576 = vmatprep.subr.bf16.mxu0 0
    %3577 = vmatpush1.bf16.msra.mxu0 0
    %3578 = vmatprep.subr.bf16.mxu0 0
    %3579 = vmatpush1.bf16.msra.mxu0 %v3191
    %3580 = vmatprep.subr.bf16.mxu0 0
    %3581 = vmatpush2.bf16.msra.mxu0 0
    %3582 = vmatprep.subr.bf16.mxu0 0
    %3583 = vmatpush2.bf16.msra.mxu0 0
    %3584 = vmatprep.subr.bf16.mxu0 0
    %3585 = vmatpush2.bf16.msra.mxu0 0
    %3586 = vmatprep.subr.bf16.mxu0 0
    %3587 = vmatpush2.bf16.msra.mxu0 0
    %3588 = vmatprep.subr.bf16.mxu0 0
    %3589 = vmatpush2.bf16.msra.mxu0 0
    %3590 = vmatprep.subr.bf16.mxu0 0
    %3591 = vmatpush2.bf16.msra.mxu0 0
    %3592 = vmatprep.subr.bf16.mxu0 0
    %3593 = vmatpush2.bf16.msra.mxu0 0
    %3594 = vmatprep.subr.bf16.mxu0 0
    %3595 = vmatpush2.bf16.msra.mxu0 0
    %3596 = vmatprep.mubr.bf16.mxu0 0
    %3597 = vmatmul.mubr.bf16.gmra.mxu0 %v3562
    %v3598 = vpop.f32.mrf.mxu0
    %v3599 = vadd.f32 0.0, %v3598
    %v3600 = vpop.f32.mrf.mxu0
    %v3601 = vpop.f32.mrf.mxu0
    %v3602 = vadd.f32 0.0, %v3601
    %v3603 = vpop.f32.mrf.mxu0
    %3604 = vdwg.mxu0
    %v3606 = vsel %vm1284, %v3472, 0
    %3608 = vmatprep.subr.bf16.mxu0 0
    %3609 = vmatpush1.bf16.msra.mxu0 0
    %3610 = vmatprep.subr.bf16.mxu0 0
    %3611 = vmatpush1.bf16.msra.mxu0 0
    %3612 = vmatprep.subr.bf16.mxu0 0
    %3613 = vmatpush1.bf16.msra.mxu0 0
    %3614 = vmatprep.subr.bf16.mxu0 0
    %3615 = vmatpush1.bf16.msra.mxu0 0
    %3616 = vmatprep.subr.bf16.mxu0 0
    %3617 = vmatpush1.bf16.msra.mxu0 0
    %3618 = vmatprep.subr.bf16.mxu0 0
    %3619 = vmatpush1.bf16.msra.mxu0 0
    %3620 = vmatprep.subr.bf16.mxu0 0
    %3621 = vmatpush1.bf16.msra.mxu0 0
    %3622 = vmatprep.subr.bf16.mxu0 0
    %3623 = vmatpush1.bf16.msra.mxu0 %v3192
    %3624 = vmatprep.subr.bf16.mxu0 0
    %3625 = vmatpush2.bf16.msra.mxu0 0
    %3626 = vmatprep.subr.bf16.mxu0 0
    %3627 = vmatpush2.bf16.msra.mxu0 0
    %3628 = vmatprep.subr.bf16.mxu0 0
    %3629 = vmatpush2.bf16.msra.mxu0 0
    %3630 = vmatprep.subr.bf16.mxu0 0
    %3631 = vmatpush2.bf16.msra.mxu0 0
    %3632 = vmatprep.subr.bf16.mxu0 0
    %3633 = vmatpush2.bf16.msra.mxu0 0
    %3634 = vmatprep.subr.bf16.mxu0 0
    %3635 = vmatpush2.bf16.msra.mxu0 0
    %3636 = vmatprep.subr.bf16.mxu0 0
    %3637 = vmatpush2.bf16.msra.mxu0 0
    %3638 = vmatprep.subr.bf16.mxu0 0
    %3639 = vmatpush2.bf16.msra.mxu0 0
    %3640 = vmatprep.mubr.bf16.mxu0 0
    %3641 = vmatmul.mubr.bf16.gmra.mxu0 %v3606
    %v3642 = vpop.f32.mrf.mxu0
    %v3643 = vadd.f32 0.0, %v3642
    %v3644 = vpop.f32.mrf.mxu0
    %v3645 = vpop.f32.mrf.mxu0
    %v3646 = vadd.f32 0.0, %v3645
    %v3647 = vpop.f32.mrf.mxu0
    %3648 = vdwg.mxu0
    %v3649 = vcombine.low %v3511, %v3599
    %v3650 = vcombine.high %v3511, %v3599
    %v3652 = vunpack.c.l.s4 1983009808
    %v3653 = vunpack.c.0.s8 %v3652
    %v3654 = vlaneseq
    %v3655 = vshrl.u32 %v3654, 7
    %v3656 = vsub.s32 %v3653, %v3655
    %v3657 = vrot.slane %v3649, %v3656
    %v3659 = vunpack.c.l.s4 1983009808
    %v3660 = vunpack.c.0.s8 %v3659
    %v3661 = vlaneseq
    %v3662 = vshrl.u32 %v3661, 7
    %v3663 = vsub.s32 %v3660, %v3662
    %v3664 = vrot.slane %v3650, %v3663
    %v3665 = vcombine.low %v3555, %v3643
    %v3666 = vcombine.high %v3555, %v3643
    %v3668 = vunpack.c.l.s4 1983009808
    %v3669 = vunpack.c.0.s8 %v3668
    %v3670 = vlaneseq
    %v3671 = vshrl.u32 %v3670, 7
    %v3672 = vsub.s32 %v3669, %v3671
    %v3673 = vrot.slane %v3665, %v3672
    %v3675 = vunpack.c.l.s4 1983009808
    %v3676 = vunpack.c.0.s8 %v3675
    %v3677 = vlaneseq
    %v3678 = vshrl.u32 %v3677, 7
    %v3679 = vsub.s32 %v3676, %v3678
    %v3680 = vrot.slane %v3666, %v3679
    %v3681 = vcombine.low %v3657, %v3673
    %v3682 = vcombine.high %v3657, %v3673
    %v3684 = vunpack.c.l.s4 1934713408
    %v3685 = vunpack.c.0.s8 %v3684
    %v3686 = vlaneseq
    %v3687 = vshrl.u32 %v3686, 7
    %v3688 = vsub.s32 %v3685, %v3687
    %v3689 = vrot.slane %v3681, %v3688
    %v3691 = vunpack.c.l.s4 1934713408
    %v3692 = vunpack.c.0.s8 %v3691
    %v3693 = vlaneseq
    %v3694 = vshrl.u32 %v3693, 7
    %v3695 = vsub.s32 %v3692, %v3694
    %v3696 = vrot.slane %v3682, %v3695
    %v3697 = vcombine.low %v3664, %v3680
    %v3698 = vcombine.high %v3664, %v3680
    %v3700 = vunpack.c.l.s4 1934713408
    %v3701 = vunpack.c.0.s8 %v3700
    %v3702 = vlaneseq
    %v3703 = vshrl.u32 %v3702, 7
    %v3704 = vsub.s32 %v3701, %v3703
    %v3705 = vrot.slane %v3697, %v3704
    %v3707 = vunpack.c.l.s4 1934713408
    %v3708 = vunpack.c.0.s8 %v3707
    %v3709 = vlaneseq
    %v3710 = vshrl.u32 %v3709, 7
    %v3711 = vsub.s32 %v3708, %v3710
    %v3712 = vrot.slane %v3698, %v3711
    %v3713 = vcombine.high %v3689, 0.0
    %v3714 = vcombine.high %v3696, 0.0
    %v3715 = vcombine.high %v3705, 0.0
    %v3716 = vcombine.high %v3712, 0.0
    %v3717 = vcombine.low %v3514, %v3602
    %v3718 = vcombine.high %v3514, %v3602
    %v3720 = vunpack.c.l.s4 1983009808
    %v3721 = vunpack.c.0.s8 %v3720
    %v3722 = vlaneseq
    %v3723 = vshrl.u32 %v3722, 7
    %v3724 = vsub.s32 %v3721, %v3723
    %v3725 = vrot.slane %v3717, %v3724
    %v3727 = vunpack.c.l.s4 1983009808
    %v3728 = vunpack.c.0.s8 %v3727
    %v3729 = vlaneseq
    %v3730 = vshrl.u32 %v3729, 7
    %v3731 = vsub.s32 %v3728, %v3730
    %v3732 = vrot.slane %v3718, %v3731
    %v3733 = vcombine.low %v3558, %v3646
    %v3734 = vcombine.high %v3558, %v3646
    %v3736 = vunpack.c.l.s4 1983009808
    %v3737 = vunpack.c.0.s8 %v3736
    %v3738 = vlaneseq
    %v3739 = vshrl.u32 %v3738, 7
    %v3740 = vsub.s32 %v3737, %v3739
    %v3741 = vrot.slane %v3733, %v3740
    %v3743 = vunpack.c.l.s4 1983009808
    %v3744 = vunpack.c.0.s8 %v3743
    %v3745 = vlaneseq
    %v3746 = vshrl.u32 %v3745, 7
    %v3747 = vsub.s32 %v3744, %v3746
    %v3748 = vrot.slane %v3734, %v3747
    %v3749 = vcombine.low %v3725, %v3741
    %v3750 = vcombine.high %v3725, %v3741
    %v3752 = vunpack.c.l.s4 1934713408
    %v3753 = vunpack.c.0.s8 %v3752
    %v3754 = vlaneseq
    %v3755 = vshrl.u32 %v3754, 7
    %v3756 = vsub.s32 %v3753, %v3755
    %v3757 = vrot.slane %v3749, %v3756
    %v3759 = vunpack.c.l.s4 1934713408
    %v3760 = vunpack.c.0.s8 %v3759
    %v3761 = vlaneseq
    %v3762 = vshrl.u32 %v3761, 7
    %v3763 = vsub.s32 %v3760, %v3762
    %v3764 = vrot.slane %v3750, %v3763
    %v3765 = vcombine.low %v3732, %v3748
    %v3766 = vcombine.high %v3732, %v3748
    %v3768 = vunpack.c.l.s4 1934713408
    %v3769 = vunpack.c.0.s8 %v3768
    %v3770 = vlaneseq
    %v3771 = vshrl.u32 %v3770, 7
    %v3772 = vsub.s32 %v3769, %v3771
    %v3773 = vrot.slane %v3765, %v3772
    %v3775 = vunpack.c.l.s4 1934713408
    %v3776 = vunpack.c.0.s8 %v3775
    %v3777 = vlaneseq
    %v3778 = vshrl.u32 %v3777, 7
    %v3779 = vsub.s32 %v3776, %v3778
    %v3780 = vrot.slane %v3766, %v3779
    %v3781 = vcombine.high %v3757, 0.0
    %v3782 = vcombine.high %v3764, 0.0
    %v3783 = vcombine.high %v3773, 0.0
    %v3784 = vcombine.high %v3780, 0.0
    %v3785 = vcombine.low %v3689, %v3696
    %v3787 = vunpack.c.l.s4 1983009808
    %v3788 = vunpack.c.0.s8 %v3787
    %v3789 = vlaneseq
    %v3790 = vshrl.u32 %v3789, 7
    %v3791 = vsub.s32 %v3788, %v3790
    %v3792 = vrot.slane %v3785, %v3791
    %v3793 = vcombine.low %v3713, %v3714
    %v3795 = vunpack.c.l.s4 1983009808
    %v3796 = vunpack.c.0.s8 %v3795
    %v3797 = vlaneseq
    %v3798 = vshrl.u32 %v3797, 7
    %v3799 = vsub.s32 %v3796, %v3798
    %v3800 = vrot.slane %v3793, %v3799
    %v3801 = vcombine.low %v3705, %v3712
    %v3803 = vunpack.c.l.s4 1983009808
    %v3804 = vunpack.c.0.s8 %v3803
    %v3805 = vlaneseq
    %v3806 = vshrl.u32 %v3805, 7
    %v3807 = vsub.s32 %v3804, %v3806
    %v3808 = vrot.slane %v3801, %v3807
    %v3809 = vcombine.low %v3715, %v3716
    %v3811 = vunpack.c.l.s4 1983009808
    %v3812 = vunpack.c.0.s8 %v3811
    %v3813 = vlaneseq
    %v3814 = vshrl.u32 %v3813, 7
    %v3815 = vsub.s32 %v3812, %v3814
    %v3816 = vrot.slane %v3809, %v3815
    %v3817 = vcombine.low %v3792, %v3800
    %v3818 = vcombine.high %v3792, %v3800
    %v3820 = vunpack.c.l.s4 1934713408
    %v3821 = vunpack.c.0.s8 %v3820
    %v3822 = vlaneseq
    %v3823 = vshrl.u32 %v3822, 7
    %v3824 = vsub.s32 %v3821, %v3823
    %v3825 = vrot.slane %v3817, %v3824
    %v3827 = vunpack.c.l.s4 1934713408
    %v3828 = vunpack.c.0.s8 %v3827
    %v3829 = vlaneseq
    %v3830 = vshrl.u32 %v3829, 7
    %v3831 = vsub.s32 %v3828, %v3830
    %v3832 = vrot.slane %v3818, %v3831
    %v3833 = vcombine.low %v3808, %v3816
    %v3834 = vcombine.high %v3808, %v3816
    %v3836 = vunpack.c.l.s4 1934713408
    %v3837 = vunpack.c.0.s8 %v3836
    %v3838 = vlaneseq
    %v3839 = vshrl.u32 %v3838, 7
    %v3840 = vsub.s32 %v3837, %v3839
    %v3841 = vrot.slane %v3833, %v3840
    %v3843 = vunpack.c.l.s4 1934713408
    %v3844 = vunpack.c.0.s8 %v3843
    %v3845 = vlaneseq
    %v3846 = vshrl.u32 %v3845, 7
    %v3847 = vsub.s32 %v3844, %v3846
    %v3848 = vrot.slane %v3834, %v3847
    %v3849 = vcombine.low %v3825, %v3841
    %v3850 = vcombine.high %v3825, %v3841
    %v3851 = vcombine.low %v3832, %v3848
    %v3852 = vcombine.high %v3832, %v3848
    %v3853 = vcombine.low %v3757, %v3764
    %v3855 = vunpack.c.l.s4 1983009808
    %v3856 = vunpack.c.0.s8 %v3855
    %v3857 = vlaneseq
    %v3858 = vshrl.u32 %v3857, 7
    %v3859 = vsub.s32 %v3856, %v3858
    %v3860 = vrot.slane %v3853, %v3859
    %v3861 = vcombine.low %v3781, %v3782
    %v3863 = vunpack.c.l.s4 1983009808
    %v3864 = vunpack.c.0.s8 %v3863
    %v3865 = vlaneseq
    %v3866 = vshrl.u32 %v3865, 7
    %v3867 = vsub.s32 %v3864, %v3866
    %v3868 = vrot.slane %v3861, %v3867
    %v3869 = vcombine.low %v3773, %v3780
    %v3871 = vunpack.c.l.s4 1983009808
    %v3872 = vunpack.c.0.s8 %v3871
    %v3873 = vlaneseq
    %v3874 = vshrl.u32 %v3873, 7
    %v3875 = vsub.s32 %v3872, %v3874
    %v3876 = vrot.slane %v3869, %v3875
    %v3877 = vcombine.low %v3783, %v3784
    %v3879 = vunpack.c.l.s4 1983009808
    %v3880 = vunpack.c.0.s8 %v3879
    %v3881 = vlaneseq
    %v3882 = vshrl.u32 %v3881, 7
    %v3883 = vsub.s32 %v3880, %v3882
    %v3884 = vrot.slane %v3877, %v3883
    %v3885 = vcombine.low %v3860, %v3868
    %v3886 = vcombine.high %v3860, %v3868
    %v3888 = vunpack.c.l.s4 1934713408
    %v3889 = vunpack.c.0.s8 %v3888
    %v3890 = vlaneseq
    %v3891 = vshrl.u32 %v3890, 7
    %v3892 = vsub.s32 %v3889, %v3891
    %v3893 = vrot.slane %v3885, %v3892
    %v3895 = vunpack.c.l.s4 1934713408
    %v3896 = vunpack.c.0.s8 %v3895
    %v3897 = vlaneseq
    %v3898 = vshrl.u32 %v3897, 7
    %v3899 = vsub.s32 %v3896, %v3898
    %v3900 = vrot.slane %v3886, %v3899
    %v3901 = vcombine.low %v3876, %v3884
    %v3902 = vcombine.high %v3876, %v3884
    %v3904 = vunpack.c.l.s4 1934713408
    %v3905 = vunpack.c.0.s8 %v3904
    %v3906 = vlaneseq
    %v3907 = vshrl.u32 %v3906, 7
    %v3908 = vsub.s32 %v3905, %v3907
    %v3909 = vrot.slane %v3901, %v3908
    %v3911 = vunpack.c.l.s4 1934713408
    %v3912 = vunpack.c.0.s8 %v3911
    %v3913 = vlaneseq
    %v3914 = vshrl.u32 %v3913, 7
    %v3915 = vsub.s32 %v3912, %v3914
    %v3916 = vrot.slane %v3902, %v3915
    %v3917 = vcombine.low %v3893, %v3909
    %v3918 = vcombine.high %v3893, %v3909
    %v3919 = vcombine.low %v3900, %v3916
    %v3920 = vcombine.high %v3900, %v3916
    %3923 = vrot.lane.b32.xlu0 %v3850, 8
    %v3924 = vpop.permute.xlu0 %3923
    %3925 = vrot.lane.b32.xlu0 %v3918, 8
    %v3926 = vpop.permute.xlu0 %3925
    %3931 = vrot.lane.b32.xlu0 %v3851, 16
    %v3932 = vpop.permute.xlu0 %3931
    %3933 = vrot.lane.b32.xlu0 %v3919, 16
    %v3934 = vpop.permute.xlu0 %3933
    %3939 = vrot.lane.b32.xlu0 %v3852, 24
    %v3940 = vpop.permute.xlu0 %3939
    %3941 = vrot.lane.b32.xlu0 %v3920, 24
    %v3942 = vpop.permute.xlu0 %3941
    %v3945 = vsel %vm1095, %v3849, %v3924
    %v3946 = vsel %vm1095, %v3917, %v3926
    %v3947 = vsel %vm1284, %v3945, %v3932
    %v3948 = vsel %vm1284, %v3946, %v3934
    %v3949 = vsel %vm1853, %v3947, %v3940
    %v3950 = vsel %vm1853, %v3948, %v3942
    %v3951 = vpack.c.bf16 %v3950, %v3949
    %s3952 = scalar_lea.vmem %s4, 16
    %v3953 = vld [vmem:[%s3952] sm:$0xf]
    %v3954 = vld [vmem:[%s3952 + $0x4] sm:$0xf]
    %v3955 = vld [vmem:[%s3952 + $0x8] sm:$0xf]
    %v3956 = vld [vmem:[%s3952 + $0xc] sm:$0xf]
    %s3957 = scalar_lea.vmem %s5, 1
    %v3958 = vld [vmem:[%s3957] sm:$0x1]
    %v3960 = vlaneseq
    %v3961 = vshrl.u32 %v3960, 7
    %v3962 = vsub.s32 0, %v3961
    %v3963 = vrot.slane %v3958, %v3962
    %v3969 = vunpack.c.l.b16 %v3953
    %v3970 = vunpack.c.l.b16 %v3954
    %v3971 = vunpack.c.l.b16 %v3955
    %v3972 = vunpack.c.l.b16 %v3956
    %v3973 = vpack.c.b16 %v3970, %v3969
    %v3974 = vpack.c.b16 %v3972, %v3971
    %v3978 = vsel %vm78, %v3951, 0
    %3980 = vmatprep.subr.bf16.mxu0 0
    %3981 = vmatpush1.bf16.msra.mxu0 0
    %3982 = vmatprep.subr.bf16.mxu0 0
    %3983 = vmatpush1.bf16.msra.mxu0 0
    %3984 = vmatprep.subr.bf16.mxu0 0
    %3985 = vmatpush1.bf16.msra.mxu0 0
    %3986 = vmatprep.subr.bf16.mxu0 0
    %3987 = vmatpush1.bf16.msra.mxu0 0
    %3988 = vmatprep.subr.bf16.mxu0 0
    %3989 = vmatpush1.bf16.msra.mxu0 0
    %3990 = vmatprep.subr.bf16.mxu0 0
    %3991 = vmatpush1.bf16.msra.mxu0 0
    %3992 = vmatprep.subr.bf16.mxu0 0
    %3993 = vmatpush1.bf16.msra.mxu0 %v3974
    %3994 = vmatprep.subr.bf16.mxu0 0
    %3995 = vmatpush1.bf16.msra.mxu0 %v3973
    %3996 = vmatprep.subr.bf16.mxu0 0
    %3997 = vmatpush2.bf16.msra.mxu0 0
    %3998 = vmatprep.subr.bf16.mxu0 0
    %3999 = vmatpush2.bf16.msra.mxu0 0
    %4000 = vmatprep.subr.bf16.mxu0 0
    %4001 = vmatpush2.bf16.msra.mxu0 0
    %4002 = vmatprep.subr.bf16.mxu0 0
    %4003 = vmatpush2.bf16.msra.mxu0 0
    %4004 = vmatprep.subr.bf16.mxu0 0
    %4005 = vmatpush2.bf16.msra.mxu0 0
    %4006 = vmatprep.subr.bf16.mxu0 0
    %4007 = vmatpush2.bf16.msra.mxu0 0
    %4008 = vmatprep.subr.bf16.mxu0 0
    %4009 = vmatpush2.bf16.msra.mxu0 0
    %4010 = vmatprep.subr.bf16.mxu0 0
    %4011 = vmatpush2.bf16.msra.mxu0 0
    %4012 = vmatprep.mubr.bf16.mxu0 0
    %4013 = vmatmul.mubr.bf16.gmra.mxu0 %v3978
    %v4014 = vpop.f32.mrf.mxu0
    %v4015 = vadd.f32 %v3963, %v4014
    %v4016 = vpop.f32.mrf.mxu0
    %v4017 = vpop.f32.mrf.mxu0
    %v4018 = vadd.f32 %v3963, %v4017
    %v4019 = vpop.f32.mrf.mxu0
    %4020 = vdwg.mxu0
    %v4021 = vadd.f32 %v2171, %v4015
    %v4022 = vadd.f32 %v2172, %v4018
    %s4023 = scalar_lea.vmem %s6, 1
    %v4024 = vld [vmem:[%s4023] sm:$0x1]
    %s4025 = scalar_lea.vmem %s7, 1
    %v4026 = vld [vmem:[%s4025] sm:$0x1]
    %v4027 = vsel %vm78, %v4021, 0.0
    %4028 = vadd.xlane.f32.xlu0 %v4027
    %v4029 = vpop.xlane.xlu0 %4028
    %v4030 = vsel %vm78, %v4022, 0.0
    %4031 = vadd.xlane.f32.xlu0 %v4030
    %v4032 = vpop.xlane.xlu0 %4031
    %v4033 = vmul.f32 %v4029, %v85
    %v4034 = vmul.f32 %v4032, %v85
    %v4035 = vsub.f32 %v4021, %v4033
    %v4036 = vsub.f32 %v4022, %v4034
    %v4037 = vmul.f32 %v4035, %v4035
    %v4038 = vmul.f32 %v4036, %v4036
    %v4039 = vsel %vm78, %v4037, 0.0
    %4040 = vadd.xlane.f32.xlu0 %v4039
    %v4041 = vpop.xlane.xlu0 %4040
    %v4042 = vsel %vm78, %v4038, 0.0
    %4043 = vadd.xlane.f32.xlu0 %v4042
    %v4044 = vpop.xlane.xlu0 %4043
    %v4045 = vmul.f32 %v4041, %v85
    %v4046 = vmul.f32 %v4044, %v85
    %v4047 = vadd.f32 %v4045, 1e-05
    %v4048 = vadd.f32 %v4046, 1e-05
    %v4049 = vrsqrt.pop %v4047
    %v4050 = vrsqrt.pop %v4048
    %v4051 = vmul.f32 %v4035, %v4049
    %v4052 = vmul.f32 %v4036, %v4050
    %v4054 = vlaneseq
    %v4055 = vshrl.u32 %v4054, 7
    %v4056 = vsub.s32 0, %v4055
    %v4057 = vrot.slane %v4024, %v4056
    %v4059 = vmul.f32 %v4057, %v4051
    %v4060 = vmul.f32 %v4057, %v4052
    %v4062 = vlaneseq
    %v4063 = vshrl.u32 %v4062, 7
    %v4064 = vsub.s32 0, %v4063
    %v4065 = vrot.slane %v4026, %v4064
    %v4067 = vadd.f32 %v4059, %v4065
    %v4068 = vadd.f32 %v4060, %v4065
    %v4069 = vpack.c.bf16 %v4068, %v4067
    %s4070 = scalar_lea.vmem %s8, 16
    %v4071 = vld [vmem:[%s4070] sm:$0xf]
    %v4072 = vld [vmem:[%s4070 + $0x4] sm:$0xf]
    %v4073 = vld [vmem:[%s4070 + $0x8] sm:$0xf]
    %v4074 = vld [vmem:[%s4070 + $0xc] sm:$0xf]
    %s4075 = scalar_lea.vmem %s9, 1
    %v4076 = vld [vmem:[%s4075] sm:$0x1]
    %v4078 = vlaneseq
    %v4079 = vshrl.u32 %v4078, 7
    %v4080 = vsub.s32 0, %v4079
    %v4081 = vrot.slane %v4076, %v4080
    %v4087 = vunpack.c.l.b16 %v4071
    %v4088 = vunpack.c.l.b16 %v4072
    %v4089 = vunpack.c.l.b16 %v4073
    %v4090 = vunpack.c.l.b16 %v4074
    %v4091 = vpack.c.b16 %v4088, %v4087
    %v4092 = vpack.c.b16 %v4090, %v4089
    %v4096 = vsel %vm78, %v4069, 0
    %4098 = vmatprep.subr.bf16.mxu0 0
    %4099 = vmatpush1.bf16.msra.mxu0 0
    %4100 = vmatprep.subr.bf16.mxu0 0
    %4101 = vmatpush1.bf16.msra.mxu0 0
    %4102 = vmatprep.subr.bf16.mxu0 0
    %4103 = vmatpush1.bf16.msra.mxu0 0
    %4104 = vmatprep.subr.bf16.mxu0 0
    %4105 = vmatpush1.bf16.msra.mxu0 0
    %4106 = vmatprep.subr.bf16.mxu0 0
    %4107 = vmatpush1.bf16.msra.mxu0 0
    %4108 = vmatprep.subr.bf16.mxu0 0
    %4109 = vmatpush1.bf16.msra.mxu0 0
    %4110 = vmatprep.subr.bf16.mxu0 0
    %4111 = vmatpush1.bf16.msra.mxu0 %v4092
    %4112 = vmatprep.subr.bf16.mxu0 0
    %4113 = vmatpush1.bf16.msra.mxu0 %v4091
    %4114 = vmatprep.subr.bf16.mxu0 0
    %4115 = vmatpush2.bf16.msra.mxu0 0
    %4116 = vmatprep.subr.bf16.mxu0 0
    %4117 = vmatpush2.bf16.msra.mxu0 0
    %4118 = vmatprep.subr.bf16.mxu0 0
    %4119 = vmatpush2.bf16.msra.mxu0 0
    %4120 = vmatprep.subr.bf16.mxu0 0
    %4121 = vmatpush2.bf16.msra.mxu0 0
    %4122 = vmatprep.subr.bf16.mxu0 0
    %4123 = vmatpush2.bf16.msra.mxu0 0
    %4124 = vmatprep.subr.bf16.mxu0 0
    %4125 = vmatpush2.bf16.msra.mxu0 0
    %4126 = vmatprep.subr.bf16.mxu0 0
    %4127 = vmatpush2.bf16.msra.mxu0 0
    %4128 = vmatprep.subr.bf16.mxu0 0
    %4129 = vmatpush2.bf16.msra.mxu0 0
    %4130 = vmatprep.mubr.bf16.mxu0 0
    %4131 = vmatmul.mubr.bf16.gmra.mxu0 %v4096
    %v4132 = vpop.f32.mrf.mxu0
    %v4133 = vadd.f32 %v4081, %v4132
    %v4134 = vpop.f32.mrf.mxu0
    %v4135 = vpop.f32.mrf.mxu0
    %v4136 = vadd.f32 %v4081, %v4135
    %v4137 = vpop.f32.mrf.mxu0
    %4138 = vdwg.mxu0
    %v4139 = vmul.f32 %v4133, 0.5
    %v4140 = vmul.f32 %v4136, 0.5
    %v4141 = vmul.f32 %v4133, 0.044715
    %v4142 = vmul.f32 %v4136, 0.044715
    %v4143 = vmul.f32 %v4141, %v4133
    %v4144 = vmul.f32 %v4142, %v4136
    %v4145 = vmul.f32 %v4143, %v4133
    %v4146 = vmul.f32 %v4144, %v4136
    %v4147 = vadd.f32 %v4133, %v4145
    %v4148 = vadd.f32 %v4136, %v4146
    %v4149 = vmul.f32 %v4147, 0.7978846
    %v4150 = vmul.f32 %v4148, 0.7978846
    %v4151 = vtanh.pop %v4149
    %v4152 = vtanh.pop %v4150
    %v4153 = vadd.f32 %v4151, 1.0
    %v4154 = vadd.f32 %v4152, 1.0
    %v4155 = vmul.f32 %v4139, %v4153
    %v4156 = vmul.f32 %v4140, %v4154
    %v4157 = vpack.c.bf16 %v4156, %v4155
    %s4158 = scalar_lea.vmem %s10, 64
    %v4159 = vld [vmem:[%s4158] sm:$0xf]
    %v4160 = vld [vmem:[%s4158 + $0x4] sm:$0xf]
    %v4161 = vld [vmem:[%s4158 + $0x8] sm:$0xf]
    %v4162 = vld [vmem:[%s4158 + $0xc] sm:$0xf]
    %v4163 = vld [vmem:[%s4158 + $0x10] sm:$0xf]
    %v4164 = vld [vmem:[%s4158 + $0x14] sm:$0xf]
    %v4165 = vld [vmem:[%s4158 + $0x18] sm:$0xf]
    %v4166 = vld [vmem:[%s4158 + $0x1c] sm:$0xf]
    %v4167 = vld [vmem:[%s4158 + $0x20] sm:$0xf]
    %v4168 = vld [vmem:[%s4158 + $0x24] sm:$0xf]
    %v4169 = vld [vmem:[%s4158 + $0x28] sm:$0xf]
    %v4170 = vld [vmem:[%s4158 + $0x2c] sm:$0xf]
    %v4171 = vld [vmem:[%s4158 + $0x30] sm:$0xf]
    %v4172 = vld [vmem:[%s4158 + $0x34] sm:$0xf]
    %v4173 = vld [vmem:[%s4158 + $0x38] sm:$0xf]
    %v4174 = vld [vmem:[%s4158 + $0x3c] sm:$0xf]
    %v4191 = vunpack.c.l.b16 %v4159
    %v4192 = vunpack.c.l.b16 %v4160
    %v4193 = vunpack.c.l.b16 %v4161
    %v4194 = vunpack.c.l.b16 %v4162
    %v4195 = vunpack.c.l.b16 %v4163
    %v4196 = vunpack.c.l.b16 %v4164
    %v4197 = vunpack.c.l.b16 %v4165
    %v4198 = vunpack.c.l.b16 %v4166
    %v4199 = vunpack.c.l.b16 %v4167
    %v4200 = vunpack.c.l.b16 %v4168
    %v4201 = vunpack.c.l.b16 %v4169
    %v4202 = vunpack.c.l.b16 %v4170
    %v4203 = vunpack.c.l.b16 %v4171
    %v4204 = vunpack.c.l.b16 %v4172
    %v4205 = vunpack.c.l.b16 %v4173
    %v4206 = vunpack.c.l.b16 %v4174
    %v4207 = vpack.c.b16 %v4192, %v4191
    %v4208 = vpack.c.b16 %v4194, %v4193
    %v4209 = vpack.c.b16 %v4196, %v4195
    %v4210 = vpack.c.b16 %v4198, %v4197
    %v4211 = vpack.c.b16 %v4200, %v4199
    %v4212 = vpack.c.b16 %v4202, %v4201
    %v4213 = vpack.c.b16 %v4204, %v4203
    %v4214 = vpack.c.b16 %v4206, %v4205
    %4223 = vmatprep.subr.bf16.mxu0 0
    %4224 = vmatpush1.bf16.msra.mxu0 %v4214
    %4225 = vmatprep.subr.bf16.mxu0 0
    %4226 = vmatpush1.bf16.msra.mxu0 %v4213
    %4227 = vmatprep.subr.bf16.mxu0 0
    %4228 = vmatpush1.bf16.msra.mxu0 %v4212
    %4229 = vmatprep.subr.bf16.mxu0 0
    %4230 = vmatpush1.bf16.msra.mxu0 %v4211
    %4231 = vmatprep.subr.bf16.mxu0 0
    %4232 = vmatpush1.bf16.msra.mxu0 %v4210
    %4233 = vmatprep.subr.bf16.mxu0 0
    %4234 = vmatpush1.bf16.msra.mxu0 %v4209
    %4235 = vmatprep.subr.bf16.mxu0 0
    %4236 = vmatpush1.bf16.msra.mxu0 %v4208
    %4237 = vmatprep.subr.bf16.mxu0 0
    %4238 = vmatpush1.bf16.msra.mxu0 %v4207
    %4239 = vmatprep.subr.bf16.mxu0 0
    %4240 = vmatpush2.bf16.msra.mxu0 0
    %4241 = vmatprep.subr.bf16.mxu0 0
    %4242 = vmatpush2.bf16.msra.mxu0 0
    %4243 = vmatprep.subr.bf16.mxu0 0
    %4244 = vmatpush2.bf16.msra.mxu0 0
    %4245 = vmatprep.subr.bf16.mxu0 0
    %4246 = vmatpush2.bf16.msra.mxu0 0
    %4247 = vmatprep.subr.bf16.mxu0 0
    %4248 = vmatpush2.bf16.msra.mxu0 0
    %4249 = vmatprep.subr.bf16.mxu0 0
    %4250 = vmatpush2.bf16.msra.mxu0 0
    %4251 = vmatprep.subr.bf16.mxu0 0
    %4252 = vmatpush2.bf16.msra.mxu0 0
    %4253 = vmatprep.subr.bf16.mxu0 0
    %4254 = vmatpush2.bf16.msra.mxu0 0
    %4255 = vmatprep.mubr.bf16.mxu0 0
    %4256 = vmatmul.mubr.bf16.gmra.mxu0 %v4157
    %v4257 = vpop.f32.mrf.mxu0
    %v4258 = vadd.f32 0.0, %v4257
    %v4259 = vpop.f32.mrf.mxu0
    %v4260 = vpop.f32.mrf.mxu0
    %v4261 = vadd.f32 0.0, %v4260
    %v4262 = vpop.f32.mrf.mxu0
    %4263 = vdwg.mxu0
    %v4264 = vadd.f32 %v4021, %v4258
    %v4265 = vadd.f32 %v4022, %v4261
    %s4266 = scalar_lea.vmem %s11, 1
    %v4267 = vld [vmem:[%s4266] sm:$0x1]
    %v4269 = vlaneseq
    %v4270 = vshrl.u32 %v4269, 7
    %v4271 = vsub.s32 0, %v4270
    %v4272 = vrot.slane %v4267, %v4271
    %v4274 = vadd.f32 %v4264, %v4272
    %v4275 = vadd.f32 %v4265, %v4272
    %v4276 = vld [vmem:[%s12] sm:$0x1]
    %v4277 = vld [vmem:[%s13] sm:$0x1]
    %v4278 = vsel %vm78, %v4274, 0.0
    %4279 = vadd.xlane.f32.xlu0 %v4278
    %v4280 = vpop.xlane.xlu0 %4279
    %v4281 = vsel %vm78, %v4275, 0.0
    %4282 = vadd.xlane.f32.xlu0 %v4281
    %v4283 = vpop.xlane.xlu0 %4282
    %v4284 = vmul.f32 %v4280, %v85
    %v4285 = vmul.f32 %v4283, %v85
    %v4286 = vsub.f32 %v4274, %v4284
    %v4287 = vsub.f32 %v4275, %v4285
    %v4288 = vmul.f32 %v4286, %v4286
    %v4289 = vmul.f32 %v4287, %v4287
    %v4290 = vsel %vm78, %v4288, 0.0
    %4291 = vadd.xlane.f32.xlu0 %v4290
    %v4292 = vpop.xlane.xlu0 %4291
    %v4293 = vsel %vm78, %v4289, 0.0
    %4294 = vadd.xlane.f32.xlu0 %v4293
    %v4295 = vpop.xlane.xlu0 %4294
    %v4296 = vmul.f32 %v4292, %v85
    %v4297 = vmul.f32 %v4295, %v85
    %v4298 = vadd.f32 %v4296, 1e-05
    %v4299 = vadd.f32 %v4297, 1e-05
    %v4300 = vrsqrt.pop %v4298
    %v4301 = vrsqrt.pop %v4299
    %v4302 = vmul.f32 %v4286, %v4300
    %v4303 = vmul.f32 %v4287, %v4301
    %v4305 = vlaneseq
    %v4306 = vshrl.u32 %v4305, 7
    %v4307 = vsub.s32 0, %v4306
    %v4308 = vrot.slane %v4276, %v4307
    %v4310 = vmul.f32 %v4308, %v4302
    %v4311 = vmul.f32 %v4308, %v4303
    %v4313 = vlaneseq
    %v4314 = vshrl.u32 %v4313, 7
    %v4315 = vsub.s32 0, %v4314
    %v4316 = vrot.slane %v4277, %v4315
    %v4318 = vadd.f32 %v4310, %v4316
    %v4319 = vadd.f32 %v4311, %v4316
    %v4320 = vpack.c.bf16 %v4319, %v4318
    %v4321 = vld [vmem:[%s14] sm:$0xf]
    %v4322 = vld [vmem:[%s14 + $0x4] sm:$0xf]
    %v4323 = vld [vmem:[%s14 + $0x8] sm:$0xf]
    %v4324 = vld [vmem:[%s14 + $0xc] sm:$0xf]
    %v4329 = vunpack.c.l.b16 %v4321
    %v4330 = vunpack.c.l.b16 %v4322
    %v4331 = vunpack.c.l.b16 %v4323
    %v4332 = vunpack.c.l.b16 %v4324
    %v4333 = vpack.c.b16 %v4330, %v4329
    %v4334 = vpack.c.b16 %v4332, %v4331
    %v4338 = vsel %vm78, %v4320, 0
    %4340 = vmatprep.subr.bf16.mxu0 0
    %4341 = vmatpush1.bf16.msra.mxu0 0
    %4342 = vmatprep.subr.bf16.mxu0 0
    %4343 = vmatpush1.bf16.msra.mxu0 0
    %4344 = vmatprep.subr.bf16.mxu0 0
    %4345 = vmatpush1.bf16.msra.mxu0 0
    %4346 = vmatprep.subr.bf16.mxu0 0
    %4347 = vmatpush1.bf16.msra.mxu0 0
    %4348 = vmatprep.subr.bf16.mxu0 0
    %4349 = vmatpush1.bf16.msra.mxu0 0
    %4350 = vmatprep.subr.bf16.mxu0 0
    %4351 = vmatpush1.bf16.msra.mxu0 0
    %4352 = vmatprep.subr.bf16.mxu0 0
    %4353 = vmatpush1.bf16.msra.mxu0 %v4334
    %4354 = vmatprep.subr.bf16.mxu0 0
    %4355 = vmatpush1.bf16.msra.mxu0 %v4333
    %4356 = vmatprep.subr.bf16.mxu0 0
    %4357 = vmatpush2.bf16.msra.mxu0 0
    %4358 = vmatprep.subr.bf16.mxu0 0
    %4359 = vmatpush2.bf16.msra.mxu0 0
    %4360 = vmatprep.subr.bf16.mxu0 0
    %4361 = vmatpush2.bf16.msra.mxu0 0
    %4362 = vmatprep.subr.bf16.mxu0 0
    %4363 = vmatpush2.bf16.msra.mxu0 0
    %4364 = vmatprep.subr.bf16.mxu0 0
    %4365 = vmatpush2.bf16.msra.mxu0 0
    %4366 = vmatprep.subr.bf16.mxu0 0
    %4367 = vmatpush2.bf16.msra.mxu0 0
    %4368 = vmatprep.subr.bf16.mxu0 0
    %4369 = vmatpush2.bf16.msra.mxu0 0
    %4370 = vmatprep.subr.bf16.mxu0 0
    %4371 = vmatpush2.bf16.msra.mxu0 0
    %4372 = vmatprep.mubr.bf16.mxu0 0
    %4373 = vmatmul.mubr.bf16.gmra.mxu0 %v4338
    %v4374 = vpop.f32.mrf.mxu0
    %v4375 = vadd.f32 0.0, %v4374
    %v4376 = vpop.f32.mrf.mxu0
    %v4377 = vpop.f32.mrf.mxu0
    %v4378 = vadd.f32 0.0, %v4377
    %v4379 = vpop.f32.mrf.mxu0
    %4380 = vdwg.mxu0
    %4381 = vst [vmem:[#allocation2] sm:$0xff] %v4375
    %4382 = vst [vmem:[#allocation2 + $0x8] sm:$0xff] %v4378
    // Predicated region
    $region62: #{gpt_forward.1} parent=1 // pred_check
      _
    $region63: #{gpt_forward.1} parent=1 // pred_check_branch
      %4384 = sbr.rel (0) target = $region65
    $region64: #{gpt_forward.1} parent=1 // pred_region
      %s4386 = ssub.s32 256, 256
      %4387 = vsyncadd [#allocation3], %s4386
      %s4388 = sshll.u32 [#allocation2], 4
      %s4389 = int_to_ptr.vmem [resolvable:$true] %s4388
      %4394 = dma.vmem_to_hbm [thread:$0]  %s4389, 256, %s15, [#allocation3], 128, 128, 8
    $region65: #{gpt_forward.1} parent=1 // pred_fallthru
      _
    // Predicated region
    $region66: #{gpt_forward.1} parent=1 // pred_check
      _
    $region67: #{gpt_forward.1} parent=1 // pred_check_branch
      %4396 = sbr.rel (0) target = $region69
    $region68: #{gpt_forward.1} parent=1 // pred_region
      %4397 = dma.done [#allocation3], 256
    $region69: #{gpt_forward.1} parent=1 // pred_fallthru
      _
    %4398 = vsyncpa [#allocation3], 1

</llo_original>
